<compile_context>
chip_gen: v7x
topology: tpu7x:2x2x1
jax: 0.10.0
libtpu: 0.0.40
codegen_flags: <defaults>
</compile_context>

<pallas_src>
import jax
import jax.numpy as jnp
from jax.experimental import pallas as pl
from jax.experimental.pallas import tpu as pltpu

INPUT_DIM = 8
OUTPUT_DIM = 109
HALF = INPUT_DIM // 2
PAD_K = 16              # first-layer K padded to 16 bf16 lanes
PAD_OUT = 128           # final-layer N padded so the output store is lane-dense
ENC_DIMS = [HALF, 128, 256, 512]
BN_EPS = 1e-5
MAX_TB = 512            # batch-tile cap (activations stay tiny in VMEM)

# Row offsets inside the packed weight buffers (all multiples of 16 so bf16
# sublane-packed slices stay tile-aligned).
# wA: lane width 256  -> [ w0(16) | e1w2(128) | e2w2(128) | nw2(512) ] = 784 rows
A_W0, A_E1W2, A_E2W2, A_NW2 = 0, 16, 144, 272
# wB: lane width 512  -> [ e1w3(256) | e2w3(256) | nw1a(512) | nw1b(512) ] = 1536 rows
B_E1W3, B_E2W3, B_NW1A, B_NW1B = 0, 256, 512, 1024
# wC: (256, 128) final layer (109 real output columns, rest zero).
# bias table rows: 0=b0(256) 1=e1b2(256) 2=e2b2(256) 3=e1b3(512) 4=e2b3(512)
#                  5=nb1(512) 6=nb2(256) 7=nb3(128)


def _ceil_to(v, m):
    return ((v + m - 1) // m) * m


# --------------------------------- kernel -----------------------------------

def _grasping_kernel(x_ref, wA_ref, wB_ref, wC_ref, b_ref, out_ref):
    bf16 = jnp.bfloat16
    f32 = jnp.float32

    def bias(row, width):
        return b_ref[row:row + 1, 0:width]                    # (1, width) f32

    def lin_relu(h, w, b):
        acc = jnp.dot(h, w, preferred_element_type=f32) + b   # f32 accumulate
        return jnp.maximum(acc, 0.0).astype(bf16)             # bf16 activations

    x = x_ref[...]                                             # (TB, 16) bf16

    # Fused first layers of both encoders: block-diagonal (16, 256) weight.
    # Off-diagonal blocks are exactly zero, so x2 cannot leak into encoder 1.
    h0 = lin_relu(x, wA_ref[pl.ds(A_W0, 16), :], bias(0, 256))   # (TB, 256)
    h1 = h0[:, 0:128]                                            # encoder-1 L1 out
    h2 = h0[:, 128:256]                                          # encoder-2 L1 out

    # Encoder layer 2: (TB,128)@(128,256)
    h1 = lin_relu(h1, wA_ref[pl.ds(A_E1W2, 128), :], bias(1, 256))
    h2 = lin_relu(h2, wA_ref[pl.ds(A_E2W2, 128), :], bias(2, 256))

    # Encoder layer 3: (TB,256)@(256,512)
    h1 = lin_relu(h1, wB_ref[pl.ds(B_E1W3, 256), :], bias(3, 512))
    h2 = lin_relu(h2, wB_ref[pl.ds(B_E2W3, 256), :], bias(4, 512))

    # Head layer 0: split-K sum over the (virtual) concat -> no (TB,1024) tensor.
    acc = jnp.dot(h1, wB_ref[pl.ds(B_NW1A, 512), :], preferred_element_type=f32)
    acc = acc + jnp.dot(h2, wB_ref[pl.ds(B_NW1B, 512), :], preferred_element_type=f32)
    h = jnp.maximum(acc + bias(5, 512), 0.0).astype(bf16)        # (TB, 512)

    # Head layer 1: (TB,512)@(512,256)
    h = lin_relu(h, wA_ref[pl.ds(A_NW2, 512), :], bias(6, 256))

    # Head layer 2 (no BN/ReLU): lane-dense (TB,128) store, last 19 cols zero.
    out_ref[...] = jnp.dot(h, wC_ref[...], preferred_element_type=f32) + bias(7, 128)


# --------------------------------- wrapper ----------------------------------

def grasping_network_forward(x, params):
    """x: (B, INPUT_DIM) float32; params: dict from init_params()[0]."""
    B = x.shape[0]

    # Batch tile: multiple of 16 rows (bf16 sublane packing).  For B > 32 make
    # sure the grid has >= 2 steps so v7x's two TensorCores both get work.
    if B <= 32:
        tb = _ceil_to(max(B, 1), 16)
    else:
        tb = min(MAX_TB, _ceil_to(-(-B // 2), 16))
    b_pad = _ceil_to(B, tb)

    # Raw input, bf16, padded to 16 lanes (lanes 0..3 = x1, 4..7 = x2).
    x_in = jnp.zeros((b_pad, PAD_K), jnp.bfloat16)
    x_in = x_in.at[:B, :INPUT_DIM].set(x.astype(jnp.bfloat16))

    wA, wB, wC, bias = params["wA"], params["wB"], params["wC"], params["bias"]

    batch_map = lambda i: (i, 0)
    const_map = lambda i: (0, 0)   # packed weights stay VMEM-resident across steps

    out = pl.pallas_call(
        _grasping_kernel,
        out_shape=jax.ShapeDtypeStruct((b_pad, PAD_OUT), jnp.float32),
        grid=(b_pad // tb,),
        in_specs=[
            pl.BlockSpec((tb, PAD_K), batch_map),
            pl.BlockSpec(wA.shape, const_map),
            pl.BlockSpec(wB.shape, const_map),
            pl.BlockSpec(wC.shape, const_map),
            pl.BlockSpec(bias.shape, const_map),
        ],
        out_specs=pl.BlockSpec((tb, PAD_OUT), batch_map),
        compiler_params=pltpu.CompilerParams(
            dimension_semantics=("parallel",)),
    )(x_in, wA, wB, wC, bias)

    return out[:B, :OUTPUT_DIM]


# ------------------------- deterministic parameter setup --------------------

def _kaiming_fan_out(key, fan_in, fan_out):
    # nn.init.kaiming_normal_(mode='fan_out', nonlinearity='relu') on a PyTorch
    # (out, in) weight -> std = sqrt(2/fan_out); we store the transpose (in, out).
    std = jnp.sqrt(2.0 / fan_out)
    return jax.random.normal(key, (fan_in, fan_out), dtype=jnp.float32) * std


def _fold_bn(w, b, gamma, beta, rmean, rvar, eps=BN_EPS):
    # eval-mode BatchNorm1d folded into the preceding Linear.
    scale = gamma / jnp.sqrt(rvar + eps)
    return w * scale[None, :], (b - rmean) * scale + beta


def _default_bn(n):
    # PyTorch BatchNorm1d defaults: gamma=1, beta=0, running_mean=0, running_var=1
    return (jnp.ones((n,), jnp.float32), jnp.zeros((n,), jnp.float32),
            jnp.zeros((n,), jnp.float32), jnp.ones((n,), jnp.float32))


def init_params(key):
    """Returns (packed kernel params, unpacked f32 reference params)."""
    k_e1, k_e2, k_head = jax.random.split(key, 3)

    def encoder_layers(k):
        ws, bs = [], []
        keys = jax.random.split(k, len(ENC_DIMS) - 1)
        for i in range(len(ENC_DIMS) - 1):
            fi, fo = ENC_DIMS[i], ENC_DIMS[i + 1]
            w = _kaiming_fan_out(keys[i], fi, fo)
            b = jnp.zeros((fo,), jnp.float32)
            w, b = _fold_bn(w, b, *_default_bn(fo))
            ws.append(w)
            bs.append(b)
        return ws, bs

    w1s, b1s = encoder_layers(k_e1)   # (4,128),(128,256),(256,512)
    w2s, b2s = encoder_layers(k_e2)

    kh = jax.random.split(k_head, 3)
    nw1 = _kaiming_fan_out(kh[0], 1024, 512)
    nb1 = jnp.zeros((512,), jnp.float32)
    nw1, nb1 = _fold_bn(nw1, nb1, *_default_bn(512))
    nw2 = _kaiming_fan_out(kh[1], 512, 256)
    nb2 = jnp.zeros((256,), jnp.float32)
    nw2, nb2 = _fold_bn(nw2, nb2, *_default_bn(256))
    nw3 = _kaiming_fan_out(kh[2], 256, OUTPUT_DIM)
    nb3 = jnp.zeros((OUTPUT_DIM,), jnp.float32)

    # Fused block-diagonal first layer (16, 256): rows 0..3 -> encoder1 cols
    # 0..127, rows 4..7 -> encoder2 cols 128..255, everything else exactly zero.
    w0 = jnp.zeros((16, 256), jnp.float32)
    w0 = w0.at[0:HALF, 0:128].set(w1s[0])
    w0 = w0.at[HALF:INPUT_DIM, 128:256].set(w2s[0])
    b0 = jnp.concatenate([b1s[0], b2s[0]])

    # Packed weight buffers (bf16).
    wA = jnp.concatenate([w0, w1s[1], w2s[1], nw2], axis=0).astype(jnp.bfloat16)        # (784, 256)
    wB = jnp.concatenate([w1s[2], w2s[2], nw1[:512], nw1[512:]], axis=0).astype(jnp.bfloat16)  # (1536, 512)
    wC = jnp.zeros((256, PAD_OUT), jnp.float32).at[:, :OUTPUT_DIM].set(nw3).astype(jnp.bfloat16)

    # Bias table (8, 512) f32, zero-padded on narrower rows.
    bias = jnp.zeros((8, 512), jnp.float32)
    bias = bias.at[0, :256].set(b0)
    bias = bias.at[1, :256].set(b1s[1])
    bias = bias.at[2, :256].set(b2s[1])
    bias = bias.at[3, :].set(b1s[2])
    bias = bias.at[4, :].set(b2s[2])
    bias = bias.at[5, :].set(nb1)
    bias = bias.at[6, :256].set(nb2)
    bias = bias.at[7, :OUTPUT_DIM].set(nb3)

    packed = dict(wA=wA, wB=wB, wC=wC, bias=bias)
    ref = dict(enc1=list(zip(w1s, b1s)), enc2=list(zip(w2s, b2s)),
               head=[(nw1, nb1), (nw2, nb2), (nw3, nb3)])
    return packed, ref


# ----------------------------- plain-JAX reference --------------------------
# Uses the UNPACKED per-layer f32 weights and the original two-encoder + concat
# structure (with the same bf16 matmul/activation casts as the kernel), so it
# independently validates both the weight packing and the block-diagonal fusion.

def reference_forward(x, ref_p):
    bf16 = jnp.bfloat16

    def lin(h, w, b, relu=True):
        y = jnp.dot(h.astype(bf16), w.astype(bf16),
                    preferred_element_type=jnp.float32) + b
        if relu:
            y = jnp.maximum(y, 0.0).astype(bf16)
        return y

    h1 = x[:, :HALF]
    for w, b in ref_p["enc1"]:
        h1 = lin(h1, w, b)
    h2 = x[:, HALF:]
    for w, b in ref_p["enc2"]:
        h2 = lin(h2, w, b)

    h = jnp.concatenate([h1, h2], axis=1)                       # (B, 1024) bf16
    nw1, nb1 = ref_p["head"][0]
    h = jnp.maximum(jnp.dot(h.astype(bf16), nw1.astype(bf16),
                            preferred_element_type=jnp.float32) + nb1,
                    0.0).astype(bf16)
    nw2, nb2 = ref_p["head"][1]
    h = lin(h, nw2, nb2)
    nw3, nb3 = ref_p["head"][2]
    return jnp.dot(h.astype(bf16), nw3.astype(bf16),
                   preferred_element_type=jnp.float32) + nb3    # (B, 109) f32


# ------------------------------------ main -----------------------------------

if __name__ == "__main__":
    key = jax.random.PRNGKey(0)
    k_params, k_x = jax.random.split(key)

    batch = 8
    x = jax.random.normal(k_x, (batch, INPUT_DIM), dtype=jnp.float32)
    params, ref_params = init_params(k_params)

    out = grasping_network_forward(x, params)
    out = jax.block_until_ready(out)

    assert out.shape == (batch, OUTPUT_DIM), out.shape
    assert out.dtype == jnp.float32, out.dtype
    assert bool(jnp.all(jnp.isfinite(out)))

    ref = reference_forward(x, ref_params)
    assert bool(jnp.allclose(out, ref, rtol=2e-2, atol=2e-2)), \
        float(jnp.max(jnp.abs(out - ref)))

    print("KERNEL_OK")
</pallas_src>

<mosaic_0001>
module attributes {stable_mosaic.version = 11 : i64} {
  func.func @_grasping_kernel(%arg0: i32, %arg1: memref<16x16xbf16, #tpu.memory_space<vmem>>, %arg2: memref<784x256xbf16, #tpu.memory_space<vmem>>, %arg3: memref<1536x512xbf16, #tpu.memory_space<vmem>>, %arg4: memref<256x128xbf16, #tpu.memory_space<vmem>>, %arg5: memref<8x512xf32, #tpu.memory_space<vmem>>, %arg6: memref<16x128xf32, #tpu.memory_space<vmem>>) attributes {dimension_semantics = [#tpu.dimension_semantics<parallel>], iteration_bounds = array<i64: 1>, scalar_prefetch = 0 : i64, scratch_operands = 0 : i64, tpu.core_type = #tpu.core_type<tc>, window_params = [{transform_indices = @transform_0, window_bounds = array<i64: 16, 16>}, {pipeline_mode = #tpu.pipeline_mode<synchronous>, transform_indices = @transform_1, window_bounds = array<i64: 784, 256>}, {pipeline_mode = #tpu.pipeline_mode<synchronous>, transform_indices = @transform_2, window_bounds = array<i64: 1536, 512>}, {pipeline_mode = #tpu.pipeline_mode<synchronous>, transform_indices = @transform_3, window_bounds = array<i64: 256, 128>}, {pipeline_mode = #tpu.pipeline_mode<synchronous>, transform_indices = @transform_4, window_bounds = array<i64: 8, 512>}, {transform_indices = @transform_5, window_bounds = array<i64: 16, 128>}]} {
    %c0 = arith.constant 0 : index
    %c0_0 = arith.constant 0 : index
    %0 = vector.load %arg1[%c0, %c0_0] : memref<16x16xbf16, #tpu.memory_space<vmem>>, vector<16x16xbf16>
    %c0_1 = arith.constant 0 : index
    %c0_2 = arith.constant 0 : index
    %1 = vector.load %arg2[%c0_1, %c0_2] : memref<784x256xbf16, #tpu.memory_space<vmem>>, vector<16x256xbf16>
    %c0_3 = arith.constant 0 : index
    %c0_4 = arith.constant 0 : index
    %2 = vector.load %arg5[%c0_3, %c0_4] : memref<8x512xf32, #tpu.memory_space<vmem>>, vector<1x256xf32>
    %cst = arith.constant dense<0.000000e+00> : vector<16x256xf32>
    %3 = tpu.matmul %0, %1, %cst {dimension_numbers = #tpu.dot_dimension_numbers<[1], [0], [0], [1], [0, 0, 1, 1], [], []>} : vector<16x16xbf16>, vector<16x256xbf16>, vector<16x256xf32> -> vector<16x256xf32>
    %4 = vector.broadcast %2 : vector<1x256xf32> to vector<16x256xf32>
    %5 = arith.addf %3, %4 : vector<16x256xf32>
    %cst_5 = arith.constant 0.000000e+00 : f32
    %6 = vector.broadcast %cst_5 : f32 to vector<16x256xf32>
    %7 = arith.maximumf %5, %6 : vector<16x256xf32>
    %8 = arith.truncf %7 : vector<16x256xf32> to vector<16x256xbf16>
    %9 = vector.extract_strided_slice %8 {offsets = [0, 0], sizes = [16, 128], strides = [1, 1]} : vector<16x256xbf16> to vector<16x128xbf16>
    %10 = vector.extract_strided_slice %8 {offsets = [0, 128], sizes = [16, 128], strides = [1, 1]} : vector<16x256xbf16> to vector<16x128xbf16>
    %c16 = arith.constant 16 : index
    %c0_6 = arith.constant 0 : index
    %11 = vector.load %arg2[%c16, %c0_6] : memref<784x256xbf16, #tpu.memory_space<vmem>>, vector<128x256xbf16>
    %c1 = arith.constant 1 : index
    %c0_7 = arith.constant 0 : index
    %12 = vector.load %arg5[%c1, %c0_7] : memref<8x512xf32, #tpu.memory_space<vmem>>, vector<1x256xf32>
    %cst_8 = arith.constant dense<0.000000e+00> : vector<16x256xf32>
    %13 = tpu.matmul %9, %11, %cst_8 {dimension_numbers = #tpu.dot_dimension_numbers<[1], [0], [0], [1], [0, 0, 1, 1], [], []>} : vector<16x128xbf16>, vector<128x256xbf16>, vector<16x256xf32> -> vector<16x256xf32>
    %14 = vector.broadcast %12 : vector<1x256xf32> to vector<16x256xf32>
    %15 = arith.addf %13, %14 : vector<16x256xf32>
    %cst_9 = arith.constant 0.000000e+00 : f32
    %16 = vector.broadcast %cst_9 : f32 to vector<16x256xf32>
    %17 = arith.maximumf %15, %16 : vector<16x256xf32>
    %18 = arith.truncf %17 : vector<16x256xf32> to vector<16x256xbf16>
    %c144 = arith.constant 144 : index
    %c0_10 = arith.constant 0 : index
    %19 = vector.load %arg2[%c144, %c0_10] : memref<784x256xbf16, #tpu.memory_space<vmem>>, vector<128x256xbf16>
    %c2 = arith.constant 2 : index
    %c0_11 = arith.constant 0 : index
    %20 = vector.load %arg5[%c2, %c0_11] : memref<8x512xf32, #tpu.memory_space<vmem>>, vector<1x256xf32>
    %cst_12 = arith.constant dense<0.000000e+00> : vector<16x256xf32>
    %21 = tpu.matmul %10, %19, %cst_12 {dimension_numbers = #tpu.dot_dimension_numbers<[1], [0], [0], [1], [0, 0, 1, 1], [], []>} : vector<16x128xbf16>, vector<128x256xbf16>, vector<16x256xf32> -> vector<16x256xf32>
    %22 = vector.broadcast %20 : vector<1x256xf32> to vector<16x256xf32>
    %23 = arith.addf %21, %22 : vector<16x256xf32>
    %cst_13 = arith.constant 0.000000e+00 : f32
    %24 = vector.broadcast %cst_13 : f32 to vector<16x256xf32>
    %25 = arith.maximumf %23, %24 : vector<16x256xf32>
    %26 = arith.truncf %25 : vector<16x256xf32> to vector<16x256xbf16>
    %c0_14 = arith.constant 0 : index
    %c0_15 = arith.constant 0 : index
    %27 = vector.load %arg3[%c0_14, %c0_15] : memref<1536x512xbf16, #tpu.memory_space<vmem>>, vector<256x512xbf16>
    %c3 = arith.constant 3 : index
    %c0_16 = arith.constant 0 : index
    %28 = vector.load %arg5[%c3, %c0_16] : memref<8x512xf32, #tpu.memory_space<vmem>>, vector<1x512xf32>
    %cst_17 = arith.constant dense<0.000000e+00> : vector<16x512xf32>
    %29 = tpu.matmul %18, %27, %cst_17 {dimension_numbers = #tpu.dot_dimension_numbers<[1], [0], [0], [1], [0, 0, 1, 1], [], []>} : vector<16x256xbf16>, vector<256x512xbf16>, vector<16x512xf32> -> vector<16x512xf32>
    %30 = vector.broadcast %28 : vector<1x512xf32> to vector<16x512xf32>
    %31 = arith.addf %29, %30 : vector<16x512xf32>
    %cst_18 = arith.constant 0.000000e+00 : f32
    %32 = vector.broadcast %cst_18 : f32 to vector<16x512xf32>
    %33 = arith.maximumf %31, %32 : vector<16x512xf32>
    %34 = arith.truncf %33 : vector<16x512xf32> to vector<16x512xbf16>
    %c256 = arith.constant 256 : index
    %c0_19 = arith.constant 0 : index
    %35 = vector.load %arg3[%c256, %c0_19] : memref<1536x512xbf16, #tpu.memory_space<vmem>>, vector<256x512xbf16>
    %c4 = arith.constant 4 : index
    %c0_20 = arith.constant 0 : index
    %36 = vector.load %arg5[%c4, %c0_20] : memref<8x512xf32, #tpu.memory_space<vmem>>, vector<1x512xf32>
    %cst_21 = arith.constant dense<0.000000e+00> : vector<16x512xf32>
    %37 = tpu.matmul %26, %35, %cst_21 {dimension_numbers = #tpu.dot_dimension_numbers<[1], [0], [0], [1], [0, 0, 1, 1], [], []>} : vector<16x256xbf16>, vector<256x512xbf16>, vector<16x512xf32> -> vector<16x512xf32>
    %38 = vector.broadcast %36 : vector<1x512xf32> to vector<16x512xf32>
    %39 = arith.addf %37, %38 : vector<16x512xf32>
    %cst_22 = arith.constant 0.000000e+00 : f32
    %40 = vector.broadcast %cst_22 : f32 to vector<16x512xf32>
    %41 = arith.maximumf %39, %40 : vector<16x512xf32>
    %42 = arith.truncf %41 : vector<16x512xf32> to vector<16x512xbf16>
    %c512 = arith.constant 512 : index
    %c0_23 = arith.constant 0 : index
    %43 = vector.load %arg3[%c512, %c0_23] : memref<1536x512xbf16, #tpu.memory_space<vmem>>, vector<512x512xbf16>
    %cst_24 = arith.constant dense<0.000000e+00> : vector<16x512xf32>
    %44 = tpu.matmul %34, %43, %cst_24 {dimension_numbers = #tpu.dot_dimension_numbers<[1], [0], [0], [1], [0, 0, 1, 1], [], []>} : vector<16x512xbf16>, vector<512x512xbf16>, vector<16x512xf32> -> vector<16x512xf32>
    %c1024 = arith.constant 1024 : index
    %c0_25 = arith.constant 0 : index
    %45 = vector.load %arg3[%c1024, %c0_25] : memref<1536x512xbf16, #tpu.memory_space<vmem>>, vector<512x512xbf16>
    %cst_26 = arith.constant dense<0.000000e+00> : vector<16x512xf32>
    %46 = tpu.matmul %42, %45, %cst_26 {dimension_numbers = #tpu.dot_dimension_numbers<[1], [0], [0], [1], [0, 0, 1, 1], [], []>} : vector<16x512xbf16>, vector<512x512xbf16>, vector<16x512xf32> -> vector<16x512xf32>
    %47 = arith.addf %44, %46 : vector<16x512xf32>
    %c5 = arith.constant 5 : index
    %c0_27 = arith.constant 0 : index
    %48 = vector.load %arg5[%c5, %c0_27] : memref<8x512xf32, #tpu.memory_space<vmem>>, vector<1x512xf32>
    %49 = vector.broadcast %48 : vector<1x512xf32> to vector<16x512xf32>
    %50 = arith.addf %47, %49 : vector<16x512xf32>
    %cst_28 = arith.constant 0.000000e+00 : f32
    %51 = vector.broadcast %cst_28 : f32 to vector<16x512xf32>
    %52 = arith.maximumf %50, %51 : vector<16x512xf32>
    %53 = arith.truncf %52 : vector<16x512xf32> to vector<16x512xbf16>
    %c272 = arith.constant 272 : index
    %c0_29 = arith.constant 0 : index
    %54 = vector.load %arg2[%c272, %c0_29] : memref<784x256xbf16, #tpu.memory_space<vmem>>, vector<512x256xbf16>
    %c6 = arith.constant 6 : index
    %c0_30 = arith.constant 0 : index
    %55 = vector.load %arg5[%c6, %c0_30] : memref<8x512xf32, #tpu.memory_space<vmem>>, vector<1x256xf32>
    %cst_31 = arith.constant dense<0.000000e+00> : vector<16x256xf32>
    %56 = tpu.matmul %53, %54, %cst_31 {dimension_numbers = #tpu.dot_dimension_numbers<[1], [0], [0], [1], [0, 0, 1, 1], [], []>} : vector<16x512xbf16>, vector<512x256xbf16>, vector<16x256xf32> -> vector<16x256xf32>
    %57 = vector.broadcast %55 : vector<1x256xf32> to vector<16x256xf32>
    %58 = arith.addf %56, %57 : vector<16x256xf32>
    %cst_32 = arith.constant 0.000000e+00 : f32
    %59 = vector.broadcast %cst_32 : f32 to vector<16x256xf32>
    %60 = arith.maximumf %58, %59 : vector<16x256xf32>
    %61 = arith.truncf %60 : vector<16x256xf32> to vector<16x256xbf16>
    %c0_33 = arith.constant 0 : index
    %c0_34 = arith.constant 0 : index
    %62 = vector.load %arg4[%c0_33, %c0_34] : memref<256x128xbf16, #tpu.memory_space<vmem>>, vector<256x128xbf16>
    %cst_35 = arith.constant dense<0.000000e+00> : vector<16x128xf32>
    %63 = tpu.matmul %61, %62, %cst_35 {dimension_numbers = #tpu.dot_dimension_numbers<[1], [0], [0], [1], [0, 0, 1, 1], [], []>} : vector<16x256xbf16>, vector<256x128xbf16>, vector<16x128xf32> -> vector<16x128xf32>
    %c7 = arith.constant 7 : index
    %c0_36 = arith.constant 0 : index
    %64 = vector.load %arg5[%c7, %c0_36] : memref<8x512xf32, #tpu.memory_space<vmem>>, vector<1x128xf32>
    %65 = vector.broadcast %64 : vector<1x128xf32> to vector<16x128xf32>
    %66 = arith.addf %63, %65 : vector<16x128xf32>
    %c0_37 = arith.constant 0 : index
    %c0_38 = arith.constant 0 : index
    %67 = vector.load %arg6[%c0_37, %c0_38] : memref<16x128xf32, #tpu.memory_space<vmem>>, vector<16x128xf32>
    tpu.vector_store %arg6[%c0_37, %c0_38], %66 {strides = array<i32>} : memref<16x128xf32, #tpu.memory_space<vmem>>, vector<16x128xf32>,
    return
  }
  func.func @transform_0(%arg0: i32) -> (i32, i32) {
    %c0_i32 = arith.constant 0 : i32
    %c0_i32_0 = arith.constant 0 : i32
    return %arg0, %c0_i32 : i32, i32
  }
  func.func @transform_1(%arg0: i32) -> (i32, i32) {
    %c0_i32 = arith.constant 0 : i32
    %c0_i32_0 = arith.constant 0 : i32
    %c0_i32_1 = arith.constant 0 : i32
    return %c0_i32, %c0_i32_0 : i32, i32
  }
  func.func @transform_2(%arg0: i32) -> (i32, i32) {
    %c0_i32 = arith.constant 0 : i32
    %c0_i32_0 = arith.constant 0 : i32
    %c0_i32_1 = arith.constant 0 : i32
    return %c0_i32, %c0_i32_0 : i32, i32
  }
  func.func @transform_3(%arg0: i32) -> (i32, i32) {
    %c0_i32 = arith.constant 0 : i32
    %c0_i32_0 = arith.constant 0 : i32
    %c0_i32_1 = arith.constant 0 : i32
    return %c0_i32, %c0_i32_0 : i32, i32
  }
  func.func @transform_4(%arg0: i32) -> (i32, i32) {
    %c0_i32 = arith.constant 0 : i32
    %c0_i32_0 = arith.constant 0 : i32
    %c0_i32_1 = arith.constant 0 : i32
    return %c0_i32, %c0_i32_0 : i32, i32
  }
  func.func @transform_5(%arg0: i32) -> (i32, i32) {
    %c0_i32 = arith.constant 0 : i32
    %c0_i32_0 = arith.constant 0 : i32
    return %arg0, %c0_i32 : i32, i32
  }
}

</mosaic_0001>

<llo_original>
// kernel: tpu_custom_call.1
$region0: #{tpu_custom_call.1}
  #allocation0 [shape = 'u32[]', space=smem, size = 0x4, offset = 0x4, fixed_abs, tag = 'smem constant byte address 0x4 - core index']
  #allocation1 [shape = 'u32[144,128]{1,0:T(1,128)}', space=vmem, size = 0x12000, scoped, tag = 'internal scratch']
  %s0 = inlined_call_operand.hbm [shape: bf16[16,16], index: 0, kind: input, shape index: {}]
  %s1 = inlined_call_operand.hbm [shape: bf16[784,256], index: 1, kind: input, shape index: {}]
  %s2 = inlined_call_operand.hbm [shape: bf16[1536,512], index: 2, kind: input, shape index: {}]
  %s3 = inlined_call_operand.hbm [shape: bf16[256,128], index: 3, kind: input, shape index: {}]
  %s4 = inlined_call_operand.hbm [shape: f32[8,512], index: 4, kind: input, shape index: {}]
  %s5 = inlined_call_operand.hbm [shape: f32[16,128], index: 5, kind: output, shape index: {}]
  %s6 = sld [smem:[#allocation0]]
  $region50: #{tpu_custom_call.1} parent=0
    _
  %s8 = ssub.s32 1, %s6
  %s9 = scalar_select 0, %s8, %s6
  $region1: #{tpu_custom_call.1} parent=0
    #allocation2 [shape = 'u8[4096]{0}', space=vmem, size = 0x1000, scoped, tag = 'input window, operand 0, single buffered']
    #allocation3 [shape = 's32[1]{0}', space=sflag, size = 0x4, scoped, tag = 'scoped memory for tpu_custom_call.1']
    #allocation4 [shape = 's32[1]{0}', space=sflag, size = 0x4, scoped, tag = 'scoped memory for tpu_custom_call.1']
    #allocation5 [shape = 'u8[401408]{0}', space=vmem, size = 0x62000, scoped, tag = 'input window, operand 1, single buffered']
    #allocation6 [shape = 's32[1]{0}', space=sflag, size = 0x4, scoped, tag = 'scoped memory for tpu_custom_call.1']
    #allocation7 [shape = 'u8[1572864]{0}', space=vmem, size = 0x180000, scoped, tag = 'input window, operand 2, single buffered']
    #allocation8 [shape = 'u8[65536]{0}', space=vmem, size = 0x10000, scoped, tag = 'input window, operand 3, single buffered']
    #allocation9 [shape = 's32[1]{0}', space=sflag, size = 0x4, scoped, tag = 'scoped memory for tpu_custom_call.1']
    #allocation10 [shape = 'u8[16384]{0}', space=vmem, size = 0x4000, scoped, tag = 'input window, operand 4, single buffered']
    #allocation11 [shape = 'u8[8192]{0}', space=vmem, size = 0x2000, scoped, tag = 'output window, operand 0, single buffered']
    %10 = vsyncpa [#allocation3], 0
    %11 = vsyncpa [#allocation6], 0
    %12 = vsyncpa [#allocation9], 0
    %13 = vsyncpa [#allocation4], 0
    // Predicated region
    $region2: #{tpu_custom_call.1} parent=1 // pred_check
      _
    $region3: #{tpu_custom_call.1} parent=1 // pred_check_branch
      %15 = sbr.rel (0) target = $region5
    $region4: #{tpu_custom_call.1} parent=1 // pred_region
      %s17 = ssub.s32 128, 128
      %18 = vsyncadd [#allocation3], %s17
      %s19 = sshll.u32 [#allocation2], 4
      %s20 = int_to_ptr.vmem [resolvable:$true] %s19
      %25 = dma.hbm_to_vmem [thread:$0]  %s0, 128, %s20, [#allocation3], 64, 64, 4
    $region5: #{tpu_custom_call.1} parent=1 // pred_fallthru
      _
    // Predicated region
    $region6: #{tpu_custom_call.1} parent=1 // pred_check
      _
    $region7: #{tpu_custom_call.1} parent=1 // pred_check_branch
      %27 = sbr.rel (0) target = $region9
    $region8: #{tpu_custom_call.1} parent=1 // pred_region
      %s29 = ssub.s32 12544, 12544
      %30 = vsyncadd [#allocation6], %s29
      %s31 = sshll.u32 [#allocation5], 4
      %s32 = int_to_ptr.vmem [resolvable:$true] %s31
      %37 = dma.hbm_to_vmem [thread:$0]  %s1, 12544, %s32, [#allocation6], 128, 128, 8
    $region9: #{tpu_custom_call.1} parent=1 // pred_fallthru
      _
    // Predicated region
    $region10: #{tpu_custom_call.1} parent=1 // pred_check
      _
    $region11: #{tpu_custom_call.1} parent=1 // pred_check_branch
      %39 = sbr.rel (0) target = $region13
    $region12: #{tpu_custom_call.1} parent=1 // pred_region
      %s41 = ssub.s32 49152, 49152
      %42 = vsyncadd [#allocation6], %s41
      %s43 = sshll.u32 [#allocation7], 4
      %s44 = int_to_ptr.vmem [resolvable:$true] %s43
      %49 = dma.hbm_to_vmem [thread:$0]  %s2, 49152, %s44, [#allocation6], 256, 256, 16
    $region13: #{tpu_custom_call.1} parent=1 // pred_fallthru
      _
    // Predicated region
    $region14: #{tpu_custom_call.1} parent=1 // pred_check
      _
    $region15: #{tpu_custom_call.1} parent=1 // pred_check_branch
      %51 = sbr.rel (0) target = $region17
    $region16: #{tpu_custom_call.1} parent=1 // pred_region
      %s53 = ssub.s32 2048, 2048
      %54 = vsyncadd [#allocation9], %s53
      %s55 = sshll.u32 [#allocation8], 4
      %s56 = int_to_ptr.vmem [resolvable:$true] %s55
      %61 = dma.hbm_to_vmem [thread:$0]  %s3, 2048, %s56, [#allocation9], 64, 64, 4
    $region17: #{tpu_custom_call.1} parent=1 // pred_fallthru
      _
    // Predicated region
    $region18: #{tpu_custom_call.1} parent=1 // pred_check
      _
    $region19: #{tpu_custom_call.1} parent=1 // pred_check_branch
      %63 = sbr.rel (0) target = $region21
    $region20: #{tpu_custom_call.1} parent=1 // pred_region
      %s65 = ssub.s32 512, 512
      %66 = vsyncadd [#allocation9], %s65
      %s68 = sshll.u32 [#allocation10], 4
      %s69 = int_to_ptr.vmem [resolvable:$true] %s68
      %71 = dma.hbm_to_vmem [thread:$0]  %s4, 512, %s69, [#allocation9]
    $region21: #{tpu_custom_call.1} parent=1 // pred_fallthru
      _
    // Predicated region
    $region22: #{tpu_custom_call.1} parent=1 // pred_check
      _
    $region23: #{tpu_custom_call.1} parent=1 // pred_check_branch
      %73 = sbr.rel (0) target = $region25
    $region24: #{tpu_custom_call.1} parent=1 // pred_region
      %74 = dma.done [#allocation3], 128
    $region25: #{tpu_custom_call.1} parent=1 // pred_fallthru
      _
    // Predicated region
    $region26: #{tpu_custom_call.1} parent=1 // pred_check
      _
    $region27: #{tpu_custom_call.1} parent=1 // pred_check_branch
      %76 = sbr.rel (0) target = $region29
    $region28: #{tpu_custom_call.1} parent=1 // pred_region
      %77 = dma.done [#allocation6], 12544
    $region29: #{tpu_custom_call.1} parent=1 // pred_fallthru
      _
    // Predicated region
    $region30: #{tpu_custom_call.1} parent=1 // pred_check
      _
    $region31: #{tpu_custom_call.1} parent=1 // pred_check_branch
      %79 = sbr.rel (0) target = $region33
    $region32: #{tpu_custom_call.1} parent=1 // pred_region
      %80 = dma.done [#allocation6], 49152
    $region33: #{tpu_custom_call.1} parent=1 // pred_fallthru
      _
    // Predicated region
    $region34: #{tpu_custom_call.1} parent=1 // pred_check
      _
    $region35: #{tpu_custom_call.1} parent=1 // pred_check_branch
      %82 = sbr.rel (0) target = $region37
    $region36: #{tpu_custom_call.1} parent=1 // pred_region
      %83 = dma.done [#allocation9], 2048
    $region37: #{tpu_custom_call.1} parent=1 // pred_fallthru
      _
    // Predicated region
    $region38: #{tpu_custom_call.1} parent=1 // pred_check
      _
    $region39: #{tpu_custom_call.1} parent=1 // pred_check_branch
      %85 = sbr.rel (0) target = $region41
    $region40: #{tpu_custom_call.1} parent=1 // pred_region
      %86 = dma.done [#allocation9], 512
    $region41: #{tpu_custom_call.1} parent=1 // pred_fallthru
      _
    %v88 = vld [vmem:[#allocation2] sm:$0xf]
    %v89 = vld [vmem:[#allocation2 + $0x4] sm:$0xf]
    %v90 = vld [vmem:[#allocation5] sm:$0xff]
    %v91 = vld [vmem:[#allocation5 + $0x8] sm:$0xff]
    %v92 = vld [vmem:[#allocation10] ss:$8 sm:$0x3]
    %v94 = vlaneseq
    %v95 = vshrl.u32 %v94, 7
    %v96 = vsub.s32 0, %v95
    %v97 = vrot.slane %v92, %v96
    %v98 = vlaneseq
    %v99 = vshrl.u32 %v98, 7
    %v100 = vsub.s32 1, %v99
    %v101 = vrot.slane %v92, %v100
    %v106 = vunpack.c.l.b16 %v88
    %v107 = vunpack.c.l.b16 %v89
    %v108 = vpack.c.b16 %v107, %v106
    %v111 = vunpack.c.l.b16 %v90
    %v112 = vunpack.c.h.b16 %v90
    %v113 = vunpack.c.l.b16 %v91
    %v114 = vunpack.c.h.b16 %v91
    %v115 = vpack.c.b16 %v113, %v111
    %v116 = vpack.c.b16 %v114, %v112
    %vm119 = vcmask 130048
    %v121 = vsel %vm119, %v108, 0
    %123 = vmatprep.subr.bf16.mxu0 %v116
    %124 = vmatpush1.bf16.msra.mxu0 %v115
    %125 = vmatprep.subr.bf16.mxu0 0
    %126 = vmatpush1.bf16.msra.mxu0 0
    %127 = vmatprep.subr.bf16.mxu0 0
    %128 = vmatpush1.bf16.msra.mxu0 0
    %129 = vmatprep.subr.bf16.mxu0 0
    %130 = vmatpush1.bf16.msra.mxu0 0
    %131 = vmatprep.subr.bf16.mxu0 0
    %132 = vmatpush1.bf16.msra.mxu0 0
    %133 = vmatprep.subr.bf16.mxu0 0
    %134 = vmatpush1.bf16.msra.mxu0 0
    %135 = vmatprep.subr.bf16.mxu0 0
    %136 = vmatpush1.bf16.msra.mxu0 0
    %137 = vmatprep.subr.bf16.mxu0 0
    %138 = vmatpush1.bf16.msra.mxu0 0
    %139 = vmatprep.subr.bf16.mxu0 0
    %140 = vmatpush1.bf16.msra.mxu0 0
    %141 = vmatprep.subr.bf16.mxu0 0
    %142 = vmatpush1.bf16.msra.mxu0 0
    %143 = vmatprep.subr.bf16.mxu0 0
    %144 = vmatpush1.bf16.msra.mxu0 0
    %145 = vmatprep.subr.bf16.mxu0 0
    %146 = vmatpush1.bf16.msra.mxu0 0
    %147 = vmatprep.subr.bf16.mxu0 0
    %148 = vmatpush1.bf16.msra.mxu0 0
    %149 = vmatprep.subr.bf16.mxu0 0
    %150 = vmatpush1.bf16.msra.mxu0 0
    %151 = vmatprep.subr.bf16.mxu0 0
    %152 = vmatpush1.bf16.msra.mxu0 0
    %153 = vmatprep.subr.bf16.mxu0 0
    %154 = vmatpush1.bf16.msra.mxu0 0
    %155 = vmatprep.mubr.bf16.mxu0 0
    %156 = vmatmul.mubr.bf16.gmra.mrb[0].mxu0 %v121
    %v157 = vpop.f32.mrb[0].mxu0
    %v158 = vadd.f32 %v97, %v157
    %v159 = vpop.f32.mrb[0].mxu0
    %v160 = vadd.f32 %v101, %v159
    %v161 = vpop.f32.mrb[0].mxu0
    %v162 = vadd.f32 %v97, %v161
    %v163 = vpop.f32.mrb[0].mxu0
    %v164 = vadd.f32 %v101, %v163
    %165 = vdwg.mxu0
    %v166 = vmax.f32 %v158, 0.0
    %v167 = vmax.f32 %v160, 0.0
    %v168 = vmax.f32 %v162, 0.0
    %v169 = vmax.f32 %v164, 0.0
    %v170 = vpack.c.bf16 %v168, %v166
    %v171 = vpack.c.bf16 %v169, %v167
    %v172 = vld [vmem:[#allocation5 + $0x10] sm:$0xff]
    %v173 = vld [vmem:[#allocation5 + $0x18] sm:$0xff]
    %v174 = vld [vmem:[#allocation5 + $0x20] sm:$0xff]
    %v175 = vld [vmem:[#allocation5 + $0x28] sm:$0xff]
    %v176 = vld [vmem:[#allocation5 + $0x30] sm:$0xff]
    %v177 = vld [vmem:[#allocation5 + $0x38] sm:$0xff]
    %v178 = vld [vmem:[#allocation5 + $0x40] sm:$0xff]
    %v179 = vld [vmem:[#allocation5 + $0x48] sm:$0xff]
    %v180 = vld [vmem:[#allocation5 + $0x50] sm:$0xff]
    %v181 = vld [vmem:[#allocation5 + $0x58] sm:$0xff]
    %v182 = vld [vmem:[#allocation5 + $0x60] sm:$0xff]
    %v183 = vld [vmem:[#allocation5 + $0x68] sm:$0xff]
    %v184 = vld [vmem:[#allocation5 + $0x70] sm:$0xff]
    %v185 = vld [vmem:[#allocation5 + $0x78] sm:$0xff]
    %v186 = vld [vmem:[#allocation5 + $0x80] sm:$0xff]
    %v187 = vld [vmem:[#allocation5 + $0x88] sm:$0xff]
    %s188 = scalar_lea.vmem [#allocation10], 1
    %v189 = vld [vmem:[%s188] ss:$8 sm:$0x3]
    %v191 = vlaneseq
    %v192 = vshrl.u32 %v191, 7
    %v193 = vsub.s32 0, %v192
    %v194 = vrot.slane %v189, %v193
    %v195 = vlaneseq
    %v196 = vshrl.u32 %v195, 7
    %v197 = vsub.s32 1, %v196
    %v198 = vrot.slane %v189, %v197
    %v217 = vunpack.c.l.b16 %v172
    %v218 = vunpack.c.h.b16 %v172
    %v219 = vunpack.c.l.b16 %v173
    %v220 = vunpack.c.h.b16 %v173
    %v221 = vunpack.c.l.b16 %v174
    %v222 = vunpack.c.h.b16 %v174
    %v223 = vunpack.c.l.b16 %v175
    %v224 = vunpack.c.h.b16 %v175
    %v225 = vunpack.c.l.b16 %v176
    %v226 = vunpack.c.h.b16 %v176
    %v227 = vunpack.c.l.b16 %v177
    %v228 = vunpack.c.h.b16 %v177
    %v229 = vunpack.c.l.b16 %v178
    %v230 = vunpack.c.h.b16 %v178
    %v231 = vunpack.c.l.b16 %v179
    %v232 = vunpack.c.h.b16 %v179
    %v233 = vunpack.c.l.b16 %v180
    %v234 = vunpack.c.h.b16 %v180
    %v235 = vunpack.c.l.b16 %v181
    %v236 = vunpack.c.h.b16 %v181
    %v237 = vunpack.c.l.b16 %v182
    %v238 = vunpack.c.h.b16 %v182
    %v239 = vunpack.c.l.b16 %v183
    %v240 = vunpack.c.h.b16 %v183
    %v241 = vunpack.c.l.b16 %v184
    %v242 = vunpack.c.h.b16 %v184
    %v243 = vunpack.c.l.b16 %v185
    %v244 = vunpack.c.h.b16 %v185
    %v245 = vunpack.c.l.b16 %v186
    %v246 = vunpack.c.h.b16 %v186
    %v247 = vunpack.c.l.b16 %v187
    %v248 = vunpack.c.h.b16 %v187
    %v249 = vpack.c.b16 %v219, %v217
    %v250 = vpack.c.b16 %v220, %v218
    %v251 = vpack.c.b16 %v223, %v221
    %v252 = vpack.c.b16 %v224, %v222
    %v253 = vpack.c.b16 %v227, %v225
    %v254 = vpack.c.b16 %v228, %v226
    %v255 = vpack.c.b16 %v231, %v229
    %v256 = vpack.c.b16 %v232, %v230
    %v257 = vpack.c.b16 %v235, %v233
    %v258 = vpack.c.b16 %v236, %v234
    %v259 = vpack.c.b16 %v239, %v237
    %v260 = vpack.c.b16 %v240, %v238
    %v261 = vpack.c.b16 %v243, %v241
    %v262 = vpack.c.b16 %v244, %v242
    %v263 = vpack.c.b16 %v247, %v245
    %v264 = vpack.c.b16 %v248, %v246
    %281 = vmatprep.subr.bf16.mxu0 %v250
    %282 = vmatpush1.bf16.msra.mxu0 %v249
    %283 = vmatprep.subr.bf16.mxu0 %v252
    %284 = vmatpush1.bf16.msra.mxu0 %v251
    %285 = vmatprep.subr.bf16.mxu0 %v254
    %286 = vmatpush1.bf16.msra.mxu0 %v253
    %287 = vmatprep.subr.bf16.mxu0 %v256
    %288 = vmatpush1.bf16.msra.mxu0 %v255
    %289 = vmatprep.subr.bf16.mxu0 %v258
    %290 = vmatpush1.bf16.msra.mxu0 %v257
    %291 = vmatprep.subr.bf16.mxu0 %v260
    %292 = vmatpush1.bf16.msra.mxu0 %v259
    %293 = vmatprep.subr.bf16.mxu0 %v262
    %294 = vmatpush1.bf16.msra.mxu0 %v261
    %295 = vmatprep.subr.bf16.mxu0 %v264
    %296 = vmatpush1.bf16.msra.mxu0 %v263
    %297 = vmatprep.subr.bf16.mxu0 0
    %298 = vmatpush1.bf16.msra.mxu0 0
    %299 = vmatprep.subr.bf16.mxu0 0
    %300 = vmatpush1.bf16.msra.mxu0 0
    %301 = vmatprep.subr.bf16.mxu0 0
    %302 = vmatpush1.bf16.msra.mxu0 0
    %303 = vmatprep.subr.bf16.mxu0 0
    %304 = vmatpush1.bf16.msra.mxu0 0
    %305 = vmatprep.subr.bf16.mxu0 0
    %306 = vmatpush1.bf16.msra.mxu0 0
    %307 = vmatprep.subr.bf16.mxu0 0
    %308 = vmatpush1.bf16.msra.mxu0 0
    %309 = vmatprep.subr.bf16.mxu0 0
    %310 = vmatpush1.bf16.msra.mxu0 0
    %311 = vmatprep.subr.bf16.mxu0 0
    %312 = vmatpush1.bf16.msra.mxu0 0
    %313 = vmatprep.mubr.bf16.mxu0 0
    %314 = vmatmul.mubr.bf16.gmra.mrb[0].mxu0 %v170
    %v315 = vpop.f32.mrb[0].mxu0
    %v316 = vadd.f32 %v194, %v315
    %v317 = vpop.f32.mrb[0].mxu0
    %v318 = vadd.f32 %v198, %v317
    %v319 = vpop.f32.mrb[0].mxu0
    %v320 = vadd.f32 %v194, %v319
    %v321 = vpop.f32.mrb[0].mxu0
    %v322 = vadd.f32 %v198, %v321
    %323 = vdwg.mxu0
    %v324 = vmax.f32 %v316, 0.0
    %v325 = vmax.f32 %v318, 0.0
    %v326 = vmax.f32 %v320, 0.0
    %v327 = vmax.f32 %v322, 0.0
    %v328 = vpack.c.bf16 %v326, %v324
    %v329 = vpack.c.bf16 %v327, %v325
    %v330 = vld [vmem:[#allocation5 + $0x90] sm:$0xff]
    %v331 = vld [vmem:[#allocation5 + $0x98] sm:$0xff]
    %v332 = vld [vmem:[#allocation5 + $0xa0] sm:$0xff]
    %v333 = vld [vmem:[#allocation5 + $0xa8] sm:$0xff]
    %v334 = vld [vmem:[#allocation5 + $0xb0] sm:$0xff]
    %v335 = vld [vmem:[#allocation5 + $0xb8] sm:$0xff]
    %v336 = vld [vmem:[#allocation5 + $0xc0] sm:$0xff]
    %v337 = vld [vmem:[#allocation5 + $0xc8] sm:$0xff]
    %v338 = vld [vmem:[#allocation5 + $0xd0] sm:$0xff]
    %v339 = vld [vmem:[#allocation5 + $0xd8] sm:$0xff]
    %v340 = vld [vmem:[#allocation5 + $0xe0] sm:$0xff]
    %v341 = vld [vmem:[#allocation5 + $0xe8] sm:$0xff]
    %v342 = vld [vmem:[#allocation5 + $0xf0] sm:$0xff]
    %v343 = vld [vmem:[#allocation5 + $0xf8] sm:$0xff]
    %v344 = vld [vmem:[#allocation5 + $0x100] sm:$0xff]
    %v345 = vld [vmem:[#allocation5 + $0x108] sm:$0xff]
    %s346 = scalar_lea.vmem [#allocation10], 2
    %v347 = vld [vmem:[%s346] ss:$8 sm:$0x3]
    %v349 = vlaneseq
    %v350 = vshrl.u32 %v349, 7
    %v351 = vsub.s32 0, %v350
    %v352 = vrot.slane %v347, %v351
    %v353 = vlaneseq
    %v354 = vshrl.u32 %v353, 7
    %v355 = vsub.s32 1, %v354
    %v356 = vrot.slane %v347, %v355
    %v375 = vunpack.c.l.b16 %v330
    %v376 = vunpack.c.h.b16 %v330
    %v377 = vunpack.c.l.b16 %v331
    %v378 = vunpack.c.h.b16 %v331
    %v379 = vunpack.c.l.b16 %v332
    %v380 = vunpack.c.h.b16 %v332
    %v381 = vunpack.c.l.b16 %v333
    %v382 = vunpack.c.h.b16 %v333
    %v383 = vunpack.c.l.b16 %v334
    %v384 = vunpack.c.h.b16 %v334
    %v385 = vunpack.c.l.b16 %v335
    %v386 = vunpack.c.h.b16 %v335
    %v387 = vunpack.c.l.b16 %v336
    %v388 = vunpack.c.h.b16 %v336
    %v389 = vunpack.c.l.b16 %v337
    %v390 = vunpack.c.h.b16 %v337
    %v391 = vunpack.c.l.b16 %v338
    %v392 = vunpack.c.h.b16 %v338
    %v393 = vunpack.c.l.b16 %v339
    %v394 = vunpack.c.h.b16 %v339
    %v395 = vunpack.c.l.b16 %v340
    %v396 = vunpack.c.h.b16 %v340
    %v397 = vunpack.c.l.b16 %v341
    %v398 = vunpack.c.h.b16 %v341
    %v399 = vunpack.c.l.b16 %v342
    %v400 = vunpack.c.h.b16 %v342
    %v401 = vunpack.c.l.b16 %v343
    %v402 = vunpack.c.h.b16 %v343
    %v403 = vunpack.c.l.b16 %v344
    %v404 = vunpack.c.h.b16 %v344
    %v405 = vunpack.c.l.b16 %v345
    %v406 = vunpack.c.h.b16 %v345
    %v407 = vpack.c.b16 %v377, %v375
    %v408 = vpack.c.b16 %v378, %v376
    %v409 = vpack.c.b16 %v381, %v379
    %v410 = vpack.c.b16 %v382, %v380
    %v411 = vpack.c.b16 %v385, %v383
    %v412 = vpack.c.b16 %v386, %v384
    %v413 = vpack.c.b16 %v389, %v387
    %v414 = vpack.c.b16 %v390, %v388
    %v415 = vpack.c.b16 %v393, %v391
    %v416 = vpack.c.b16 %v394, %v392
    %v417 = vpack.c.b16 %v397, %v395
    %v418 = vpack.c.b16 %v398, %v396
    %v419 = vpack.c.b16 %v401, %v399
    %v420 = vpack.c.b16 %v402, %v400
    %v421 = vpack.c.b16 %v405, %v403
    %v422 = vpack.c.b16 %v406, %v404
    %439 = vmatprep.subr.bf16.mxu0 %v408
    %440 = vmatpush1.bf16.msra.mxu0 %v407
    %441 = vmatprep.subr.bf16.mxu0 %v410
    %442 = vmatpush1.bf16.msra.mxu0 %v409
    %443 = vmatprep.subr.bf16.mxu0 %v412
    %444 = vmatpush1.bf16.msra.mxu0 %v411
    %445 = vmatprep.subr.bf16.mxu0 %v414
    %446 = vmatpush1.bf16.msra.mxu0 %v413
    %447 = vmatprep.subr.bf16.mxu0 %v416
    %448 = vmatpush1.bf16.msra.mxu0 %v415
    %449 = vmatprep.subr.bf16.mxu0 %v418
    %450 = vmatpush1.bf16.msra.mxu0 %v417
    %451 = vmatprep.subr.bf16.mxu0 %v420
    %452 = vmatpush1.bf16.msra.mxu0 %v419
    %453 = vmatprep.subr.bf16.mxu0 %v422
    %454 = vmatpush1.bf16.msra.mxu0 %v421
    %455 = vmatprep.subr.bf16.mxu0 0
    %456 = vmatpush1.bf16.msra.mxu0 0
    %457 = vmatprep.subr.bf16.mxu0 0
    %458 = vmatpush1.bf16.msra.mxu0 0
    %459 = vmatprep.subr.bf16.mxu0 0
    %460 = vmatpush1.bf16.msra.mxu0 0
    %461 = vmatprep.subr.bf16.mxu0 0
    %462 = vmatpush1.bf16.msra.mxu0 0
    %463 = vmatprep.subr.bf16.mxu0 0
    %464 = vmatpush1.bf16.msra.mxu0 0
    %465 = vmatprep.subr.bf16.mxu0 0
    %466 = vmatpush1.bf16.msra.mxu0 0
    %467 = vmatprep.subr.bf16.mxu0 0
    %468 = vmatpush1.bf16.msra.mxu0 0
    %469 = vmatprep.subr.bf16.mxu0 0
    %470 = vmatpush1.bf16.msra.mxu0 0
    %471 = vmatprep.mubr.bf16.mxu0 0
    %472 = vmatmul.mubr.bf16.gmra.mrb[0].mxu0 %v171
    %v473 = vpop.f32.mrb[0].mxu0
    %v474 = vadd.f32 %v352, %v473
    %v475 = vpop.f32.mrb[0].mxu0
    %v476 = vadd.f32 %v356, %v475
    %v477 = vpop.f32.mrb[0].mxu0
    %v478 = vadd.f32 %v352, %v477
    %v479 = vpop.f32.mrb[0].mxu0
    %v480 = vadd.f32 %v356, %v479
    %481 = vdwg.mxu0
    %v482 = vmax.f32 %v474, 0.0
    %v483 = vmax.f32 %v476, 0.0
    %v484 = vmax.f32 %v478, 0.0
    %v485 = vmax.f32 %v480, 0.0
    %v486 = vpack.c.bf16 %v484, %v482
    %v487 = vpack.c.bf16 %v485, %v483
    %v488 = vld [vmem:[#allocation7] sm:$0xff]
    %v489 = vld [vmem:[#allocation7 + $0x8] sm:$0xff]
    %v490 = vld [vmem:[#allocation7 + $0x10] sm:$0xff]
    %v491 = vld [vmem:[#allocation7 + $0x18] sm:$0xff]
    %v492 = vld [vmem:[#allocation7 + $0x20] sm:$0xff]
    %v493 = vld [vmem:[#allocation7 + $0x28] sm:$0xff]
    %v494 = vld [vmem:[#allocation7 + $0x30] sm:$0xff]
    %v495 = vld [vmem:[#allocation7 + $0x38] sm:$0xff]
    %v496 = vld [vmem:[#allocation7 + $0x40] sm:$0xff]
    %v497 = vld [vmem:[#allocation7 + $0x48] sm:$0xff]
    %v498 = vld [vmem:[#allocation7 + $0x50] sm:$0xff]
    %v499 = vld [vmem:[#allocation7 + $0x58] sm:$0xff]
    %v500 = vld [vmem:[#allocation7 + $0x60] sm:$0xff]
    %v501 = vld [vmem:[#allocation7 + $0x68] sm:$0xff]
    %v502 = vld [vmem:[#allocation7 + $0x70] sm:$0xff]
    %v503 = vld [vmem:[#allocation7 + $0x78] sm:$0xff]
    %v504 = vld [vmem:[#allocation7 + $0x80] sm:$0xff]
    %v505 = vld [vmem:[#allocation7 + $0x88] sm:$0xff]
    %v506 = vld [vmem:[#allocation7 + $0x90] sm:$0xff]
    %v507 = vld [vmem:[#allocation7 + $0x98] sm:$0xff]
    %v508 = vld [vmem:[#allocation7 + $0xa0] sm:$0xff]
    %v509 = vld [vmem:[#allocation7 + $0xa8] sm:$0xff]
    %v510 = vld [vmem:[#allocation7 + $0xb0] sm:$0xff]
    %v511 = vld [vmem:[#allocation7 + $0xb8] sm:$0xff]
    %v512 = vld [vmem:[#allocation7 + $0xc0] sm:$0xff]
    %v513 = vld [vmem:[#allocation7 + $0xc8] sm:$0xff]
    %v514 = vld [vmem:[#allocation7 + $0xd0] sm:$0xff]
    %v515 = vld [vmem:[#allocation7 + $0xd8] sm:$0xff]
    %v516 = vld [vmem:[#allocation7 + $0xe0] sm:$0xff]
    %v517 = vld [vmem:[#allocation7 + $0xe8] sm:$0xff]
    %v518 = vld [vmem:[#allocation7 + $0xf0] sm:$0xff]
    %v519 = vld [vmem:[#allocation7 + $0xf8] sm:$0xff]
    %v520 = vld [vmem:[#allocation7 + $0x100] sm:$0xff]
    %v521 = vld [vmem:[#allocation7 + $0x108] sm:$0xff]
    %v522 = vld [vmem:[#allocation7 + $0x110] sm:$0xff]
    %v523 = vld [vmem:[#allocation7 + $0x118] sm:$0xff]
    %v524 = vld [vmem:[#allocation7 + $0x120] sm:$0xff]
    %v525 = vld [vmem:[#allocation7 + $0x128] sm:$0xff]
    %v526 = vld [vmem:[#allocation7 + $0x130] sm:$0xff]
    %v527 = vld [vmem:[#allocation7 + $0x138] sm:$0xff]
    %v528 = vld [vmem:[#allocation7 + $0x140] sm:$0xff]
    %v529 = vld [vmem:[#allocation7 + $0x148] sm:$0xff]
    %v530 = vld [vmem:[#allocation7 + $0x150] sm:$0xff]
    %v531 = vld [vmem:[#allocation7 + $0x158] sm:$0xff]
    %v532 = vld [vmem:[#allocation7 + $0x160] sm:$0xff]
    %v533 = vld [vmem:[#allocation7 + $0x168] sm:$0xff]
    %v534 = vld [vmem:[#allocation7 + $0x170] sm:$0xff]
    %v535 = vld [vmem:[#allocation7 + $0x178] sm:$0xff]
    %v536 = vld [vmem:[#allocation7 + $0x180] sm:$0xff]
    %v537 = vld [vmem:[#allocation7 + $0x188] sm:$0xff]
    %v538 = vld [vmem:[#allocation7 + $0x190] sm:$0xff]
    %v539 = vld [vmem:[#allocation7 + $0x198] sm:$0xff]
    %v540 = vld [vmem:[#allocation7 + $0x1a0] sm:$0xff]
    %v541 = vld [vmem:[#allocation7 + $0x1a8] sm:$0xff]
    %v542 = vld [vmem:[#allocation7 + $0x1b0] sm:$0xff]
    %v543 = vld [vmem:[#allocation7 + $0x1b8] sm:$0xff]
    %v544 = vld [vmem:[#allocation7 + $0x1c0] sm:$0xff]
    %v545 = vld [vmem:[#allocation7 + $0x1c8] sm:$0xff]
    %v546 = vld [vmem:[#allocation7 + $0x1d0] sm:$0xff]
    %v547 = vld [vmem:[#allocation7 + $0x1d8] sm:$0xff]
    %v548 = vld [vmem:[#allocation7 + $0x1e0] sm:$0xff]
    %v549 = vld [vmem:[#allocation7 + $0x1e8] sm:$0xff]
    %v550 = vld [vmem:[#allocation7 + $0x1f0] sm:$0xff]
    %v551 = vld [vmem:[#allocation7 + $0x1f8] sm:$0xff]
    %s552 = scalar_lea.vmem [#allocation10], 3
    %v553 = vld [vmem:[%s552] ss:$8 sm:$0xf]
    %v555 = vlaneseq
    %v556 = vshrl.u32 %v555, 7
    %v557 = vsub.s32 0, %v556
    %v558 = vrot.slane %v553, %v557
    %v559 = vlaneseq
    %v560 = vshrl.u32 %v559, 7
    %v561 = vsub.s32 1, %v560
    %v562 = vrot.slane %v553, %v561
    %v563 = vlaneseq
    %v564 = vshrl.u32 %v563, 7
    %v565 = vsub.s32 2, %v564
    %v566 = vrot.slane %v553, %v565
    %v567 = vlaneseq
    %v568 = vshrl.u32 %v567, 7
    %v569 = vsub.s32 3, %v568
    %v570 = vrot.slane %v553, %v569
    %v639 = vunpack.c.l.b16 %v488
    %v640 = vunpack.c.h.b16 %v488
    %v641 = vunpack.c.l.b16 %v489
    %v642 = vunpack.c.h.b16 %v489
    %v643 = vunpack.c.l.b16 %v490
    %v644 = vunpack.c.h.b16 %v490
    %v645 = vunpack.c.l.b16 %v491
    %v646 = vunpack.c.h.b16 %v491
    %v647 = vunpack.c.l.b16 %v492
    %v648 = vunpack.c.h.b16 %v492
    %v649 = vunpack.c.l.b16 %v493
    %v650 = vunpack.c.h.b16 %v493
    %v651 = vunpack.c.l.b16 %v494
    %v652 = vunpack.c.h.b16 %v494
    %v653 = vunpack.c.l.b16 %v495
    %v654 = vunpack.c.h.b16 %v495
    %v655 = vunpack.c.l.b16 %v496
    %v656 = vunpack.c.h.b16 %v496
    %v657 = vunpack.c.l.b16 %v497
    %v658 = vunpack.c.h.b16 %v497
    %v659 = vunpack.c.l.b16 %v498
    %v660 = vunpack.c.h.b16 %v498
    %v661 = vunpack.c.l.b16 %v499
    %v662 = vunpack.c.h.b16 %v499
    %v663 = vunpack.c.l.b16 %v500
    %v664 = vunpack.c.h.b16 %v500
    %v665 = vunpack.c.l.b16 %v501
    %v666 = vunpack.c.h.b16 %v501
    %v667 = vunpack.c.l.b16 %v502
    %v668 = vunpack.c.h.b16 %v502
    %v669 = vunpack.c.l.b16 %v503
    %v670 = vunpack.c.h.b16 %v503
    %v671 = vunpack.c.l.b16 %v504
    %v672 = vunpack.c.h.b16 %v504
    %v673 = vunpack.c.l.b16 %v505
    %v674 = vunpack.c.h.b16 %v505
    %v675 = vunpack.c.l.b16 %v506
    %v676 = vunpack.c.h.b16 %v506
    %v677 = vunpack.c.l.b16 %v507
    %v678 = vunpack.c.h.b16 %v507
    %v679 = vunpack.c.l.b16 %v508
    %v680 = vunpack.c.h.b16 %v508
    %v681 = vunpack.c.l.b16 %v509
    %v682 = vunpack.c.h.b16 %v509
    %v683 = vunpack.c.l.b16 %v510
    %v684 = vunpack.c.h.b16 %v510
    %v685 = vunpack.c.l.b16 %v511
    %v686 = vunpack.c.h.b16 %v511
    %v687 = vunpack.c.l.b16 %v512
    %v688 = vunpack.c.h.b16 %v512
    %v689 = vunpack.c.l.b16 %v513
    %v690 = vunpack.c.h.b16 %v513
    %v691 = vunpack.c.l.b16 %v514
    %v692 = vunpack.c.h.b16 %v514
    %v693 = vunpack.c.l.b16 %v515
    %v694 = vunpack.c.h.b16 %v515
    %v695 = vunpack.c.l.b16 %v516
    %v696 = vunpack.c.h.b16 %v516
    %v697 = vunpack.c.l.b16 %v517
    %v698 = vunpack.c.h.b16 %v517
    %v699 = vunpack.c.l.b16 %v518
    %v700 = vunpack.c.h.b16 %v518
    %v701 = vunpack.c.l.b16 %v519
    %v702 = vunpack.c.h.b16 %v519
    %v703 = vunpack.c.l.b16 %v520
    %v704 = vunpack.c.h.b16 %v520
    %v705 = vunpack.c.l.b16 %v521
    %v706 = vunpack.c.h.b16 %v521
    %v707 = vunpack.c.l.b16 %v522
    %v708 = vunpack.c.h.b16 %v522
    %v709 = vunpack.c.l.b16 %v523
    %v710 = vunpack.c.h.b16 %v523
    %v711 = vunpack.c.l.b16 %v524
    %v712 = vunpack.c.h.b16 %v524
    %v713 = vunpack.c.l.b16 %v525
    %v714 = vunpack.c.h.b16 %v525
    %v715 = vunpack.c.l.b16 %v526
    %v716 = vunpack.c.h.b16 %v526
    %v717 = vunpack.c.l.b16 %v527
    %v718 = vunpack.c.h.b16 %v527
    %v719 = vunpack.c.l.b16 %v528
    %v720 = vunpack.c.h.b16 %v528
    %v721 = vunpack.c.l.b16 %v529
    %v722 = vunpack.c.h.b16 %v529
    %v723 = vunpack.c.l.b16 %v530
    %v724 = vunpack.c.h.b16 %v530
    %v725 = vunpack.c.l.b16 %v531
    %v726 = vunpack.c.h.b16 %v531
    %v727 = vunpack.c.l.b16 %v532
    %v728 = vunpack.c.h.b16 %v532
    %v729 = vunpack.c.l.b16 %v533
    %v730 = vunpack.c.h.b16 %v533
    %v731 = vunpack.c.l.b16 %v534
    %v732 = vunpack.c.h.b16 %v534
    %v733 = vunpack.c.l.b16 %v535
    %v734 = vunpack.c.h.b16 %v535
    %v735 = vunpack.c.l.b16 %v536
    %v736 = vunpack.c.h.b16 %v536
    %v737 = vunpack.c.l.b16 %v537
    %v738 = vunpack.c.h.b16 %v537
    %v739 = vunpack.c.l.b16 %v538
    %v740 = vunpack.c.h.b16 %v538
    %v741 = vunpack.c.l.b16 %v539
    %v742 = vunpack.c.h.b16 %v539
    %v743 = vunpack.c.l.b16 %v540
    %v744 = vunpack.c.h.b16 %v540
    %v745 = vunpack.c.l.b16 %v541
    %v746 = vunpack.c.h.b16 %v541
    %v747 = vunpack.c.l.b16 %v542
    %v748 = vunpack.c.h.b16 %v542
    %v749 = vunpack.c.l.b16 %v543
    %v750 = vunpack.c.h.b16 %v543
    %v751 = vunpack.c.l.b16 %v544
    %v752 = vunpack.c.h.b16 %v544
    %v753 = vunpack.c.l.b16 %v545
    %v754 = vunpack.c.h.b16 %v545
    %v755 = vunpack.c.l.b16 %v546
    %v756 = vunpack.c.h.b16 %v546
    %v757 = vunpack.c.l.b16 %v547
    %v758 = vunpack.c.h.b16 %v547
    %v759 = vunpack.c.l.b16 %v548
    %v760 = vunpack.c.h.b16 %v548
    %v761 = vunpack.c.l.b16 %v549
    %v762 = vunpack.c.h.b16 %v549
    %v763 = vunpack.c.l.b16 %v550
    %v764 = vunpack.c.h.b16 %v550
    %v765 = vunpack.c.l.b16 %v551
    %v766 = vunpack.c.h.b16 %v551
    %v767 = vpack.c.b16 %v643, %v639
    %v768 = vpack.c.b16 %v644, %v640
    %v769 = vpack.c.b16 %v645, %v641
    %v770 = vpack.c.b16 %v646, %v642
    %v771 = vpack.c.b16 %v651, %v647
    %v772 = vpack.c.b16 %v652, %v648
    %v773 = vpack.c.b16 %v653, %v649
    %v774 = vpack.c.b16 %v654, %v650
    %v775 = vpack.c.b16 %v659, %v655
    %v776 = vpack.c.b16 %v660, %v656
    %v777 = vpack.c.b16 %v661, %v657
    %v778 = vpack.c.b16 %v662, %v658
    %v779 = vpack.c.b16 %v667, %v663
    %v780 = vpack.c.b16 %v668, %v664
    %v781 = vpack.c.b16 %v669, %v665
    %v782 = vpack.c.b16 %v670, %v666
    %v783 = vpack.c.b16 %v675, %v671
    %v784 = vpack.c.b16 %v676, %v672
    %v785 = vpack.c.b16 %v677, %v673
    %v786 = vpack.c.b16 %v678, %v674
    %v787 = vpack.c.b16 %v683, %v679
    %v788 = vpack.c.b16 %v684, %v680
    %v789 = vpack.c.b16 %v685, %v681
    %v790 = vpack.c.b16 %v686, %v682
    %v791 = vpack.c.b16 %v691, %v687
    %v792 = vpack.c.b16 %v692, %v688
    %v793 = vpack.c.b16 %v693, %v689
    %v794 = vpack.c.b16 %v694, %v690
    %v795 = vpack.c.b16 %v699, %v695
    %v796 = vpack.c.b16 %v700, %v696
    %v797 = vpack.c.b16 %v701, %v697
    %v798 = vpack.c.b16 %v702, %v698
    %v799 = vpack.c.b16 %v707, %v703
    %v800 = vpack.c.b16 %v708, %v704
    %v801 = vpack.c.b16 %v709, %v705
    %v802 = vpack.c.b16 %v710, %v706
    %v803 = vpack.c.b16 %v715, %v711
    %v804 = vpack.c.b16 %v716, %v712
    %v805 = vpack.c.b16 %v717, %v713
    %v806 = vpack.c.b16 %v718, %v714
    %v807 = vpack.c.b16 %v723, %v719
    %v808 = vpack.c.b16 %v724, %v720
    %v809 = vpack.c.b16 %v725, %v721
    %v810 = vpack.c.b16 %v726, %v722
    %v811 = vpack.c.b16 %v731, %v727
    %v812 = vpack.c.b16 %v732, %v728
    %v813 = vpack.c.b16 %v733, %v729
    %v814 = vpack.c.b16 %v734, %v730
    %v815 = vpack.c.b16 %v739, %v735
    %v816 = vpack.c.b16 %v740, %v736
    %v817 = vpack.c.b16 %v741, %v737
    %v818 = vpack.c.b16 %v742, %v738
    %v819 = vpack.c.b16 %v747, %v743
    %v820 = vpack.c.b16 %v748, %v744
    %v821 = vpack.c.b16 %v749, %v745
    %v822 = vpack.c.b16 %v750, %v746
    %v823 = vpack.c.b16 %v755, %v751
    %v824 = vpack.c.b16 %v756, %v752
    %v825 = vpack.c.b16 %v757, %v753
    %v826 = vpack.c.b16 %v758, %v754
    %v827 = vpack.c.b16 %v763, %v759
    %v828 = vpack.c.b16 %v764, %v760
    %v829 = vpack.c.b16 %v765, %v761
    %v830 = vpack.c.b16 %v766, %v762
    %895 = vmatprep.subr.bf16.mxu0 %v768
    %896 = vmatpush1.bf16.msra.mxu0 %v767
    %897 = vmatprep.subr.bf16.mxu0 %v772
    %898 = vmatpush1.bf16.msra.mxu0 %v771
    %899 = vmatprep.subr.bf16.mxu0 %v776
    %900 = vmatpush1.bf16.msra.mxu0 %v775
    %901 = vmatprep.subr.bf16.mxu0 %v780
    %902 = vmatpush1.bf16.msra.mxu0 %v779
    %903 = vmatprep.subr.bf16.mxu0 %v784
    %904 = vmatpush1.bf16.msra.mxu0 %v783
    %905 = vmatprep.subr.bf16.mxu0 %v788
    %906 = vmatpush1.bf16.msra.mxu0 %v787
    %907 = vmatprep.subr.bf16.mxu0 %v792
    %908 = vmatpush1.bf16.msra.mxu0 %v791
    %909 = vmatprep.subr.bf16.mxu0 %v796
    %910 = vmatpush1.bf16.msra.mxu0 %v795
    %911 = vmatprep.subr.bf16.mxu0 %v800
    %912 = vmatpush1.bf16.msra.mxu0 %v799
    %913 = vmatprep.subr.bf16.mxu0 %v804
    %914 = vmatpush1.bf16.msra.mxu0 %v803
    %915 = vmatprep.subr.bf16.mxu0 %v808
    %916 = vmatpush1.bf16.msra.mxu0 %v807
    %917 = vmatprep.subr.bf16.mxu0 %v812
    %918 = vmatpush1.bf16.msra.mxu0 %v811
    %919 = vmatprep.subr.bf16.mxu0 %v816
    %920 = vmatpush1.bf16.msra.mxu0 %v815
    %921 = vmatprep.subr.bf16.mxu0 %v820
    %922 = vmatpush1.bf16.msra.mxu0 %v819
    %923 = vmatprep.subr.bf16.mxu0 %v824
    %924 = vmatpush1.bf16.msra.mxu0 %v823
    %925 = vmatprep.subr.bf16.mxu0 %v828
    %926 = vmatpush1.bf16.msra.mxu0 %v827
    %927 = vmatprep.mubr.bf16.mxu0 %v329
    %928 = vmatmul.mubr.bf16.gmra.mrb[0].mxu0 %v328
    %v929 = vpop.f32.mrb[0].mxu0
    %v930 = vadd.f32 %v558, %v929
    %v931 = vpop.f32.mrb[0].mxu0
    %v932 = vadd.f32 %v562, %v931
    %v933 = vpop.f32.mrb[0].mxu0
    %v934 = vadd.f32 %v558, %v933
    %v935 = vpop.f32.mrb[0].mxu0
    %v936 = vadd.f32 %v562, %v935
    %937 = vdwg.mxu0
    %938 = vmatprep.subr.bf16.mxu0 %v770
    %939 = vmatpush1.bf16.msra.mxu0 %v769
    %940 = vmatprep.subr.bf16.mxu0 %v774
    %941 = vmatpush1.bf16.msra.mxu0 %v773
    %942 = vmatprep.subr.bf16.mxu0 %v778
    %943 = vmatpush1.bf16.msra.mxu0 %v777
    %944 = vmatprep.subr.bf16.mxu0 %v782
    %945 = vmatpush1.bf16.msra.mxu0 %v781
    %946 = vmatprep.subr.bf16.mxu0 %v786
    %947 = vmatpush1.bf16.msra.mxu0 %v785
    %948 = vmatprep.subr.bf16.mxu0 %v790
    %949 = vmatpush1.bf16.msra.mxu0 %v789
    %950 = vmatprep.subr.bf16.mxu0 %v794
    %951 = vmatpush1.bf16.msra.mxu0 %v793
    %952 = vmatprep.subr.bf16.mxu0 %v798
    %953 = vmatpush1.bf16.msra.mxu0 %v797
    %954 = vmatprep.subr.bf16.mxu0 %v802
    %955 = vmatpush1.bf16.msra.mxu0 %v801
    %956 = vmatprep.subr.bf16.mxu0 %v806
    %957 = vmatpush1.bf16.msra.mxu0 %v805
    %958 = vmatprep.subr.bf16.mxu0 %v810
    %959 = vmatpush1.bf16.msra.mxu0 %v809
    %960 = vmatprep.subr.bf16.mxu0 %v814
    %961 = vmatpush1.bf16.msra.mxu0 %v813
    %962 = vmatprep.subr.bf16.mxu0 %v818
    %963 = vmatpush1.bf16.msra.mxu0 %v817
    %964 = vmatprep.subr.bf16.mxu0 %v822
    %965 = vmatpush1.bf16.msra.mxu0 %v821
    %966 = vmatprep.subr.bf16.mxu0 %v826
    %967 = vmatpush1.bf16.msra.mxu0 %v825
    %968 = vmatprep.subr.bf16.mxu0 %v830
    %969 = vmatpush1.bf16.msra.mxu0 %v829
    %970 = vmatprep.mubr.bf16.mxu0 %v329
    %971 = vmatmul.mubr.bf16.gmra.mrb[0].mxu0 %v328
    %v972 = vpop.f32.mrb[0].mxu0
    %v973 = vadd.f32 %v566, %v972
    %v974 = vpop.f32.mrb[0].mxu0
    %v975 = vadd.f32 %v570, %v974
    %v976 = vpop.f32.mrb[0].mxu0
    %v977 = vadd.f32 %v566, %v976
    %v978 = vpop.f32.mrb[0].mxu0
    %v979 = vadd.f32 %v570, %v978
    %980 = vdwg.mxu0
    %v981 = vmax.f32 %v930, 0.0
    %v982 = vmax.f32 %v932, 0.0
    %v983 = vmax.f32 %v973, 0.0
    %v984 = vmax.f32 %v975, 0.0
    %v985 = vmax.f32 %v934, 0.0
    %v986 = vmax.f32 %v936, 0.0
    %v987 = vmax.f32 %v977, 0.0
    %v988 = vmax.f32 %v979, 0.0
    %v989 = vpack.c.bf16 %v985, %v981
    %v990 = vpack.c.bf16 %v986, %v982
    %v991 = vpack.c.bf16 %v987, %v983
    %v992 = vpack.c.bf16 %v988, %v984
    %v993 = vld [vmem:[#allocation7 + $0x200] sm:$0xff]
    %v994 = vld [vmem:[#allocation7 + $0x208] sm:$0xff]
    %v995 = vld [vmem:[#allocation7 + $0x210] sm:$0xff]
    %v996 = vld [vmem:[#allocation7 + $0x218] sm:$0xff]
    %v997 = vld [vmem:[#allocation7 + $0x220] sm:$0xff]
    %v998 = vld [vmem:[#allocation7 + $0x228] sm:$0xff]
    %v999 = vld [vmem:[#allocation7 + $0x230] sm:$0xff]
    %v1000 = vld [vmem:[#allocation7 + $0x238] sm:$0xff]
    %v1001 = vld [vmem:[#allocation7 + $0x240] sm:$0xff]
    %v1002 = vld [vmem:[#allocation7 + $0x248] sm:$0xff]
    %v1003 = vld [vmem:[#allocation7 + $0x250] sm:$0xff]
    %v1004 = vld [vmem:[#allocation7 + $0x258] sm:$0xff]
    %v1005 = vld [vmem:[#allocation7 + $0x260] sm:$0xff]
    %v1006 = vld [vmem:[#allocation7 + $0x268] sm:$0xff]
    %v1007 = vld [vmem:[#allocation7 + $0x270] sm:$0xff]
    %v1008 = vld [vmem:[#allocation7 + $0x278] sm:$0xff]
    %v1009 = vld [vmem:[#allocation7 + $0x280] sm:$0xff]
    %v1010 = vld [vmem:[#allocation7 + $0x288] sm:$0xff]
    %v1011 = vld [vmem:[#allocation7 + $0x290] sm:$0xff]
    %v1012 = vld [vmem:[#allocation7 + $0x298] sm:$0xff]
    %v1013 = vld [vmem:[#allocation7 + $0x2a0] sm:$0xff]
    %v1014 = vld [vmem:[#allocation7 + $0x2a8] sm:$0xff]
    %v1015 = vld [vmem:[#allocation7 + $0x2b0] sm:$0xff]
    %v1016 = vld [vmem:[#allocation7 + $0x2b8] sm:$0xff]
    %v1017 = vld [vmem:[#allocation7 + $0x2c0] sm:$0xff]
    %v1018 = vld [vmem:[#allocation7 + $0x2c8] sm:$0xff]
    %v1019 = vld [vmem:[#allocation7 + $0x2d0] sm:$0xff]
    %v1020 = vld [vmem:[#allocation7 + $0x2d8] sm:$0xff]
    %v1021 = vld [vmem:[#allocation7 + $0x2e0] sm:$0xff]
    %v1022 = vld [vmem:[#allocation7 + $0x2e8] sm:$0xff]
    %v1023 = vld [vmem:[#allocation7 + $0x2f0] sm:$0xff]
    %v1024 = vld [vmem:[#allocation7 + $0x2f8] sm:$0xff]
    %v1025 = vld [vmem:[#allocation7 + $0x300] sm:$0xff]
    %v1026 = vld [vmem:[#allocation7 + $0x308] sm:$0xff]
    %v1027 = vld [vmem:[#allocation7 + $0x310] sm:$0xff]
    %v1028 = vld [vmem:[#allocation7 + $0x318] sm:$0xff]
    %v1029 = vld [vmem:[#allocation7 + $0x320] sm:$0xff]
    %v1030 = vld [vmem:[#allocation7 + $0x328] sm:$0xff]
    %v1031 = vld [vmem:[#allocation7 + $0x330] sm:$0xff]
    %v1032 = vld [vmem:[#allocation7 + $0x338] sm:$0xff]
    %v1033 = vld [vmem:[#allocation7 + $0x340] sm:$0xff]
    %v1034 = vld [vmem:[#allocation7 + $0x348] sm:$0xff]
    %v1035 = vld [vmem:[#allocation7 + $0x350] sm:$0xff]
    %v1036 = vld [vmem:[#allocation7 + $0x358] sm:$0xff]
    %v1037 = vld [vmem:[#allocation7 + $0x360] sm:$0xff]
    %v1038 = vld [vmem:[#allocation7 + $0x368] sm:$0xff]
    %v1039 = vld [vmem:[#allocation7 + $0x370] sm:$0xff]
    %v1040 = vld [vmem:[#allocation7 + $0x378] sm:$0xff]
    %v1041 = vld [vmem:[#allocation7 + $0x380] sm:$0xff]
    %v1042 = vld [vmem:[#allocation7 + $0x388] sm:$0xff]
    %v1043 = vld [vmem:[#allocation7 + $0x390] sm:$0xff]
    %v1044 = vld [vmem:[#allocation7 + $0x398] sm:$0xff]
    %v1045 = vld [vmem:[#allocation7 + $0x3a0] sm:$0xff]
    %v1046 = vld [vmem:[#allocation7 + $0x3a8] sm:$0xff]
    %v1047 = vld [vmem:[#allocation7 + $0x3b0] sm:$0xff]
    %v1048 = vld [vmem:[#allocation7 + $0x3b8] sm:$0xff]
    %v1049 = vld [vmem:[#allocation7 + $0x3c0] sm:$0xff]
    %v1050 = vld [vmem:[#allocation7 + $0x3c8] sm:$0xff]
    %v1051 = vld [vmem:[#allocation7 + $0x3d0] sm:$0xff]
    %v1052 = vld [vmem:[#allocation7 + $0x3d8] sm:$0xff]
    %v1053 = vld [vmem:[#allocation7 + $0x3e0] sm:$0xff]
    %v1054 = vld [vmem:[#allocation7 + $0x3e8] sm:$0xff]
    %v1055 = vld [vmem:[#allocation7 + $0x3f0] sm:$0xff]
    %v1056 = vld [vmem:[#allocation7 + $0x3f8] sm:$0xff]
    %s1057 = scalar_lea.vmem [#allocation10], 4
    %v1058 = vld [vmem:[%s1057] ss:$8 sm:$0xf]
    %v1060 = vlaneseq
    %v1061 = vshrl.u32 %v1060, 7
    %v1062 = vsub.s32 0, %v1061
    %v1063 = vrot.slane %v1058, %v1062
    %v1064 = vlaneseq
    %v1065 = vshrl.u32 %v1064, 7
    %v1066 = vsub.s32 1, %v1065
    %v1067 = vrot.slane %v1058, %v1066
    %v1068 = vlaneseq
    %v1069 = vshrl.u32 %v1068, 7
    %v1070 = vsub.s32 2, %v1069
    %v1071 = vrot.slane %v1058, %v1070
    %v1072 = vlaneseq
    %v1073 = vshrl.u32 %v1072, 7
    %v1074 = vsub.s32 3, %v1073
    %v1075 = vrot.slane %v1058, %v1074
    %v1144 = vunpack.c.l.b16 %v993
    %v1145 = vunpack.c.h.b16 %v993
    %v1146 = vunpack.c.l.b16 %v994
    %v1147 = vunpack.c.h.b16 %v994
    %v1148 = vunpack.c.l.b16 %v995
    %v1149 = vunpack.c.h.b16 %v995
    %v1150 = vunpack.c.l.b16 %v996
    %v1151 = vunpack.c.h.b16 %v996
    %v1152 = vunpack.c.l.b16 %v997
    %v1153 = vunpack.c.h.b16 %v997
    %v1154 = vunpack.c.l.b16 %v998
    %v1155 = vunpack.c.h.b16 %v998
    %v1156 = vunpack.c.l.b16 %v999
    %v1157 = vunpack.c.h.b16 %v999
    %v1158 = vunpack.c.l.b16 %v1000
    %v1159 = vunpack.c.h.b16 %v1000
    %v1160 = vunpack.c.l.b16 %v1001
    %v1161 = vunpack.c.h.b16 %v1001
    %v1162 = vunpack.c.l.b16 %v1002
    %v1163 = vunpack.c.h.b16 %v1002
    %v1164 = vunpack.c.l.b16 %v1003
    %v1165 = vunpack.c.h.b16 %v1003
    %v1166 = vunpack.c.l.b16 %v1004
    %v1167 = vunpack.c.h.b16 %v1004
    %v1168 = vunpack.c.l.b16 %v1005
    %v1169 = vunpack.c.h.b16 %v1005
    %v1170 = vunpack.c.l.b16 %v1006
    %v1171 = vunpack.c.h.b16 %v1006
    %v1172 = vunpack.c.l.b16 %v1007
    %v1173 = vunpack.c.h.b16 %v1007
    %v1174 = vunpack.c.l.b16 %v1008
    %v1175 = vunpack.c.h.b16 %v1008
    %v1176 = vunpack.c.l.b16 %v1009
    %v1177 = vunpack.c.h.b16 %v1009
    %v1178 = vunpack.c.l.b16 %v1010
    %v1179 = vunpack.c.h.b16 %v1010
    %v1180 = vunpack.c.l.b16 %v1011
    %v1181 = vunpack.c.h.b16 %v1011
    %v1182 = vunpack.c.l.b16 %v1012
    %v1183 = vunpack.c.h.b16 %v1012
    %v1184 = vunpack.c.l.b16 %v1013
    %v1185 = vunpack.c.h.b16 %v1013
    %v1186 = vunpack.c.l.b16 %v1014
    %v1187 = vunpack.c.h.b16 %v1014
    %v1188 = vunpack.c.l.b16 %v1015
    %v1189 = vunpack.c.h.b16 %v1015
    %v1190 = vunpack.c.l.b16 %v1016
    %v1191 = vunpack.c.h.b16 %v1016
    %v1192 = vunpack.c.l.b16 %v1017
    %v1193 = vunpack.c.h.b16 %v1017
    %v1194 = vunpack.c.l.b16 %v1018
    %v1195 = vunpack.c.h.b16 %v1018
    %v1196 = vunpack.c.l.b16 %v1019
    %v1197 = vunpack.c.h.b16 %v1019
    %v1198 = vunpack.c.l.b16 %v1020
    %v1199 = vunpack.c.h.b16 %v1020
    %v1200 = vunpack.c.l.b16 %v1021
    %v1201 = vunpack.c.h.b16 %v1021
    %v1202 = vunpack.c.l.b16 %v1022
    %v1203 = vunpack.c.h.b16 %v1022
    %v1204 = vunpack.c.l.b16 %v1023
    %v1205 = vunpack.c.h.b16 %v1023
    %v1206 = vunpack.c.l.b16 %v1024
    %v1207 = vunpack.c.h.b16 %v1024
    %v1208 = vunpack.c.l.b16 %v1025
    %v1209 = vunpack.c.h.b16 %v1025
    %v1210 = vunpack.c.l.b16 %v1026
    %v1211 = vunpack.c.h.b16 %v1026
    %v1212 = vunpack.c.l.b16 %v1027
    %v1213 = vunpack.c.h.b16 %v1027
    %v1214 = vunpack.c.l.b16 %v1028
    %v1215 = vunpack.c.h.b16 %v1028
    %v1216 = vunpack.c.l.b16 %v1029
    %v1217 = vunpack.c.h.b16 %v1029
    %v1218 = vunpack.c.l.b16 %v1030
    %v1219 = vunpack.c.h.b16 %v1030
    %v1220 = vunpack.c.l.b16 %v1031
    %v1221 = vunpack.c.h.b16 %v1031
    %v1222 = vunpack.c.l.b16 %v1032
    %v1223 = vunpack.c.h.b16 %v1032
    %v1224 = vunpack.c.l.b16 %v1033
    %v1225 = vunpack.c.h.b16 %v1033
    %v1226 = vunpack.c.l.b16 %v1034
    %v1227 = vunpack.c.h.b16 %v1034
    %v1228 = vunpack.c.l.b16 %v1035
    %v1229 = vunpack.c.h.b16 %v1035
    %v1230 = vunpack.c.l.b16 %v1036
    %v1231 = vunpack.c.h.b16 %v1036
    %v1232 = vunpack.c.l.b16 %v1037
    %v1233 = vunpack.c.h.b16 %v1037
    %v1234 = vunpack.c.l.b16 %v1038
    %v1235 = vunpack.c.h.b16 %v1038
    %v1236 = vunpack.c.l.b16 %v1039
    %v1237 = vunpack.c.h.b16 %v1039
    %v1238 = vunpack.c.l.b16 %v1040
    %v1239 = vunpack.c.h.b16 %v1040
    %v1240 = vunpack.c.l.b16 %v1041
    %v1241 = vunpack.c.h.b16 %v1041
    %v1242 = vunpack.c.l.b16 %v1042
    %v1243 = vunpack.c.h.b16 %v1042
    %v1244 = vunpack.c.l.b16 %v1043
    %v1245 = vunpack.c.h.b16 %v1043
    %v1246 = vunpack.c.l.b16 %v1044
    %v1247 = vunpack.c.h.b16 %v1044
    %v1248 = vunpack.c.l.b16 %v1045
    %v1249 = vunpack.c.h.b16 %v1045
    %v1250 = vunpack.c.l.b16 %v1046
    %v1251 = vunpack.c.h.b16 %v1046
    %v1252 = vunpack.c.l.b16 %v1047
    %v1253 = vunpack.c.h.b16 %v1047
    %v1254 = vunpack.c.l.b16 %v1048
    %v1255 = vunpack.c.h.b16 %v1048
    %v1256 = vunpack.c.l.b16 %v1049
    %v1257 = vunpack.c.h.b16 %v1049
    %v1258 = vunpack.c.l.b16 %v1050
    %v1259 = vunpack.c.h.b16 %v1050
    %v1260 = vunpack.c.l.b16 %v1051
    %v1261 = vunpack.c.h.b16 %v1051
    %v1262 = vunpack.c.l.b16 %v1052
    %v1263 = vunpack.c.h.b16 %v1052
    %v1264 = vunpack.c.l.b16 %v1053
    %v1265 = vunpack.c.h.b16 %v1053
    %v1266 = vunpack.c.l.b16 %v1054
    %v1267 = vunpack.c.h.b16 %v1054
    %v1268 = vunpack.c.l.b16 %v1055
    %v1269 = vunpack.c.h.b16 %v1055
    %v1270 = vunpack.c.l.b16 %v1056
    %v1271 = vunpack.c.h.b16 %v1056
    %v1272 = vpack.c.b16 %v1148, %v1144
    %v1273 = vpack.c.b16 %v1149, %v1145
    %v1274 = vpack.c.b16 %v1150, %v1146
    %v1275 = vpack.c.b16 %v1151, %v1147
    %v1276 = vpack.c.b16 %v1156, %v1152
    %v1277 = vpack.c.b16 %v1157, %v1153
    %v1278 = vpack.c.b16 %v1158, %v1154
    %v1279 = vpack.c.b16 %v1159, %v1155
    %v1280 = vpack.c.b16 %v1164, %v1160
    %v1281 = vpack.c.b16 %v1165, %v1161
    %v1282 = vpack.c.b16 %v1166, %v1162
    %v1283 = vpack.c.b16 %v1167, %v1163
    %v1284 = vpack.c.b16 %v1172, %v1168
    %v1285 = vpack.c.b16 %v1173, %v1169
    %v1286 = vpack.c.b16 %v1174, %v1170
    %v1287 = vpack.c.b16 %v1175, %v1171
    %v1288 = vpack.c.b16 %v1180, %v1176
    %v1289 = vpack.c.b16 %v1181, %v1177
    %v1290 = vpack.c.b16 %v1182, %v1178
    %v1291 = vpack.c.b16 %v1183, %v1179
    %v1292 = vpack.c.b16 %v1188, %v1184
    %v1293 = vpack.c.b16 %v1189, %v1185
    %v1294 = vpack.c.b16 %v1190, %v1186
    %v1295 = vpack.c.b16 %v1191, %v1187
    %v1296 = vpack.c.b16 %v1196, %v1192
    %v1297 = vpack.c.b16 %v1197, %v1193
    %v1298 = vpack.c.b16 %v1198, %v1194
    %v1299 = vpack.c.b16 %v1199, %v1195
    %v1300 = vpack.c.b16 %v1204, %v1200
    %v1301 = vpack.c.b16 %v1205, %v1201
    %v1302 = vpack.c.b16 %v1206, %v1202
    %v1303 = vpack.c.b16 %v1207, %v1203
    %v1304 = vpack.c.b16 %v1212, %v1208
    %v1305 = vpack.c.b16 %v1213, %v1209
    %v1306 = vpack.c.b16 %v1214, %v1210
    %v1307 = vpack.c.b16 %v1215, %v1211
    %v1308 = vpack.c.b16 %v1220, %v1216
    %v1309 = vpack.c.b16 %v1221, %v1217
    %v1310 = vpack.c.b16 %v1222, %v1218
    %v1311 = vpack.c.b16 %v1223, %v1219
    %v1312 = vpack.c.b16 %v1228, %v1224
    %v1313 = vpack.c.b16 %v1229, %v1225
    %v1314 = vpack.c.b16 %v1230, %v1226
    %v1315 = vpack.c.b16 %v1231, %v1227
    %v1316 = vpack.c.b16 %v1236, %v1232
    %v1317 = vpack.c.b16 %v1237, %v1233
    %v1318 = vpack.c.b16 %v1238, %v1234
    %v1319 = vpack.c.b16 %v1239, %v1235
    %v1320 = vpack.c.b16 %v1244, %v1240
    %v1321 = vpack.c.b16 %v1245, %v1241
    %v1322 = vpack.c.b16 %v1246, %v1242
    %v1323 = vpack.c.b16 %v1247, %v1243
    %v1324 = vpack.c.b16 %v1252, %v1248
    %v1325 = vpack.c.b16 %v1253, %v1249
    %v1326 = vpack.c.b16 %v1254, %v1250
    %v1327 = vpack.c.b16 %v1255, %v1251
    %v1328 = vpack.c.b16 %v1260, %v1256
    %v1329 = vpack.c.b16 %v1261, %v1257
    %v1330 = vpack.c.b16 %v1262, %v1258
    %v1331 = vpack.c.b16 %v1263, %v1259
    %v1332 = vpack.c.b16 %v1268, %v1264
    %v1333 = vpack.c.b16 %v1269, %v1265
    %v1334 = vpack.c.b16 %v1270, %v1266
    %v1335 = vpack.c.b16 %v1271, %v1267
    %1400 = vmatprep.subr.bf16.mxu0 %v1273
    %1401 = vmatpush1.bf16.msra.mxu0 %v1272
    %1402 = vmatprep.subr.bf16.mxu0 %v1277
    %1403 = vmatpush1.bf16.msra.mxu0 %v1276
    %1404 = vmatprep.subr.bf16.mxu0 %v1281
    %1405 = vmatpush1.bf16.msra.mxu0 %v1280
    %1406 = vmatprep.subr.bf16.mxu0 %v1285
    %1407 = vmatpush1.bf16.msra.mxu0 %v1284
    %1408 = vmatprep.subr.bf16.mxu0 %v1289
    %1409 = vmatpush1.bf16.msra.mxu0 %v1288
    %1410 = vmatprep.subr.bf16.mxu0 %v1293
    %1411 = vmatpush1.bf16.msra.mxu0 %v1292
    %1412 = vmatprep.subr.bf16.mxu0 %v1297
    %1413 = vmatpush1.bf16.msra.mxu0 %v1296
    %1414 = vmatprep.subr.bf16.mxu0 %v1301
    %1415 = vmatpush1.bf16.msra.mxu0 %v1300
    %1416 = vmatprep.subr.bf16.mxu0 %v1305
    %1417 = vmatpush1.bf16.msra.mxu0 %v1304
    %1418 = vmatprep.subr.bf16.mxu0 %v1309
    %1419 = vmatpush1.bf16.msra.mxu0 %v1308
    %1420 = vmatprep.subr.bf16.mxu0 %v1313
    %1421 = vmatpush1.bf16.msra.mxu0 %v1312
    %1422 = vmatprep.subr.bf16.mxu0 %v1317
    %1423 = vmatpush1.bf16.msra.mxu0 %v1316
    %1424 = vmatprep.subr.bf16.mxu0 %v1321
    %1425 = vmatpush1.bf16.msra.mxu0 %v1320
    %1426 = vmatprep.subr.bf16.mxu0 %v1325
    %1427 = vmatpush1.bf16.msra.mxu0 %v1324
    %1428 = vmatprep.subr.bf16.mxu0 %v1329
    %1429 = vmatpush1.bf16.msra.mxu0 %v1328
    %1430 = vmatprep.subr.bf16.mxu0 %v1333
    %1431 = vmatpush1.bf16.msra.mxu0 %v1332
    %1432 = vmatprep.mubr.bf16.mxu0 %v487
    %1433 = vmatmul.mubr.bf16.gmra.mrb[0].mxu0 %v486
    %v1434 = vpop.f32.mrb[0].mxu0
    %v1435 = vadd.f32 %v1063, %v1434
    %v1436 = vpop.f32.mrb[0].mxu0
    %v1437 = vadd.f32 %v1067, %v1436
    %v1438 = vpop.f32.mrb[0].mxu0
    %v1439 = vadd.f32 %v1063, %v1438
    %v1440 = vpop.f32.mrb[0].mxu0
    %v1441 = vadd.f32 %v1067, %v1440
    %1442 = vdwg.mxu0
    %1443 = vmatprep.subr.bf16.mxu0 %v1275
    %1444 = vmatpush1.bf16.msra.mxu0 %v1274
    %1445 = vmatprep.subr.bf16.mxu0 %v1279
    %1446 = vmatpush1.bf16.msra.mxu0 %v1278
    %1447 = vmatprep.subr.bf16.mxu0 %v1283
    %1448 = vmatpush1.bf16.msra.mxu0 %v1282
    %1449 = vmatprep.subr.bf16.mxu0 %v1287
    %1450 = vmatpush1.bf16.msra.mxu0 %v1286
    %1451 = vmatprep.subr.bf16.mxu0 %v1291
    %1452 = vmatpush1.bf16.msra.mxu0 %v1290
    %1453 = vmatprep.subr.bf16.mxu0 %v1295
    %1454 = vmatpush1.bf16.msra.mxu0 %v1294
    %1455 = vmatprep.subr.bf16.mxu0 %v1299
    %1456 = vmatpush1.bf16.msra.mxu0 %v1298
    %1457 = vmatprep.subr.bf16.mxu0 %v1303
    %1458 = vmatpush1.bf16.msra.mxu0 %v1302
    %1459 = vmatprep.subr.bf16.mxu0 %v1307
    %1460 = vmatpush1.bf16.msra.mxu0 %v1306
    %1461 = vmatprep.subr.bf16.mxu0 %v1311
    %1462 = vmatpush1.bf16.msra.mxu0 %v1310
    %1463 = vmatprep.subr.bf16.mxu0 %v1315
    %1464 = vmatpush1.bf16.msra.mxu0 %v1314
    %1465 = vmatprep.subr.bf16.mxu0 %v1319
    %1466 = vmatpush1.bf16.msra.mxu0 %v1318
    %1467 = vmatprep.subr.bf16.mxu0 %v1323
    %1468 = vmatpush1.bf16.msra.mxu0 %v1322
    %1469 = vmatprep.subr.bf16.mxu0 %v1327
    %1470 = vmatpush1.bf16.msra.mxu0 %v1326
    %1471 = vmatprep.subr.bf16.mxu0 %v1331
    %1472 = vmatpush1.bf16.msra.mxu0 %v1330
    %1473 = vmatprep.subr.bf16.mxu0 %v1335
    %1474 = vmatpush1.bf16.msra.mxu0 %v1334
    %1475 = vmatprep.mubr.bf16.mxu0 %v487
    %1476 = vmatmul.mubr.bf16.gmra.mrb[0].mxu0 %v486
    %v1477 = vpop.f32.mrb[0].mxu0
    %v1478 = vadd.f32 %v1071, %v1477
    %v1479 = vpop.f32.mrb[0].mxu0
    %v1480 = vadd.f32 %v1075, %v1479
    %v1481 = vpop.f32.mrb[0].mxu0
    %v1482 = vadd.f32 %v1071, %v1481
    %v1483 = vpop.f32.mrb[0].mxu0
    %v1484 = vadd.f32 %v1075, %v1483
    %1485 = vdwg.mxu0
    %v1486 = vmax.f32 %v1435, 0.0
    %v1487 = vmax.f32 %v1437, 0.0
    %v1488 = vmax.f32 %v1478, 0.0
    %v1489 = vmax.f32 %v1480, 0.0
    %v1490 = vmax.f32 %v1439, 0.0
    %v1491 = vmax.f32 %v1441, 0.0
    %v1492 = vmax.f32 %v1482, 0.0
    %v1493 = vmax.f32 %v1484, 0.0
    %v1494 = vpack.c.bf16 %v1490, %v1486
    %v1495 = vpack.c.bf16 %v1491, %v1487
    %v1496 = vpack.c.bf16 %v1492, %v1488
    %v1497 = vpack.c.bf16 %v1493, %v1489
    %v1498 = vld [vmem:[#allocation7 + $0x400] sm:$0xff]
    %v1499 = vld [vmem:[#allocation7 + $0x408] sm:$0xff]
    %v1500 = vld [vmem:[#allocation7 + $0x410] sm:$0xff]
    %v1501 = vld [vmem:[#allocation7 + $0x418] sm:$0xff]
    %v1502 = vld [vmem:[#allocation7 + $0x420] sm:$0xff]
    %v1503 = vld [vmem:[#allocation7 + $0x428] sm:$0xff]
    %v1504 = vld [vmem:[#allocation7 + $0x430] sm:$0xff]
    %v1505 = vld [vmem:[#allocation7 + $0x438] sm:$0xff]
    %v1506 = vld [vmem:[#allocation7 + $0x440] sm:$0xff]
    %v1507 = vld [vmem:[#allocation7 + $0x448] sm:$0xff]
    %v1508 = vld [vmem:[#allocation7 + $0x450] sm:$0xff]
    %v1509 = vld [vmem:[#allocation7 + $0x458] sm:$0xff]
    %v1510 = vld [vmem:[#allocation7 + $0x460] sm:$0xff]
    %v1511 = vld [vmem:[#allocation7 + $0x468] sm:$0xff]
    %v1512 = vld [vmem:[#allocation7 + $0x470] sm:$0xff]
    %v1513 = vld [vmem:[#allocation7 + $0x478] sm:$0xff]
    %v1514 = vld [vmem:[#allocation7 + $0x480] sm:$0xff]
    %v1515 = vld [vmem:[#allocation7 + $0x488] sm:$0xff]
    %v1516 = vld [vmem:[#allocation7 + $0x490] sm:$0xff]
    %v1517 = vld [vmem:[#allocation7 + $0x498] sm:$0xff]
    %v1518 = vld [vmem:[#allocation7 + $0x4a0] sm:$0xff]
    %v1519 = vld [vmem:[#allocation7 + $0x4a8] sm:$0xff]
    %v1520 = vld [vmem:[#allocation7 + $0x4b0] sm:$0xff]
    %v1521 = vld [vmem:[#allocation7 + $0x4b8] sm:$0xff]
    %v1522 = vld [vmem:[#allocation7 + $0x4c0] sm:$0xff]
    %v1523 = vld [vmem:[#allocation7 + $0x4c8] sm:$0xff]
    %v1524 = vld [vmem:[#allocation7 + $0x4d0] sm:$0xff]
    %v1525 = vld [vmem:[#allocation7 + $0x4d8] sm:$0xff]
    %v1526 = vld [vmem:[#allocation7 + $0x4e0] sm:$0xff]
    %v1527 = vld [vmem:[#allocation7 + $0x4e8] sm:$0xff]
    %v1528 = vld [vmem:[#allocation7 + $0x4f0] sm:$0xff]
    %v1529 = vld [vmem:[#allocation7 + $0x4f8] sm:$0xff]
    %v1530 = vld [vmem:[#allocation7 + $0x500] sm:$0xff]
    %v1531 = vld [vmem:[#allocation7 + $0x508] sm:$0xff]
    %v1532 = vld [vmem:[#allocation7 + $0x510] sm:$0xff]
    %v1533 = vld [vmem:[#allocation7 + $0x518] sm:$0xff]
    %v1534 = vld [vmem:[#allocation7 + $0x520] sm:$0xff]
    %v1535 = vld [vmem:[#allocation7 + $0x528] sm:$0xff]
    %v1536 = vld [vmem:[#allocation7 + $0x530] sm:$0xff]
    %v1537 = vld [vmem:[#allocation7 + $0x538] sm:$0xff]
    %v1538 = vld [vmem:[#allocation7 + $0x540] sm:$0xff]
    %v1539 = vld [vmem:[#allocation7 + $0x548] sm:$0xff]
    %v1540 = vld [vmem:[#allocation7 + $0x550] sm:$0xff]
    %v1541 = vld [vmem:[#allocation7 + $0x558] sm:$0xff]
    %v1542 = vld [vmem:[#allocation7 + $0x560] sm:$0xff]
    %v1543 = vld [vmem:[#allocation7 + $0x568] sm:$0xff]
    %v1544 = vld [vmem:[#allocation7 + $0x570] sm:$0xff]
    %v1545 = vld [vmem:[#allocation7 + $0x578] sm:$0xff]
    %v1546 = vld [vmem:[#allocation7 + $0x580] sm:$0xff]
    %v1547 = vld [vmem:[#allocation7 + $0x588] sm:$0xff]
    %v1548 = vld [vmem:[#allocation7 + $0x590] sm:$0xff]
    %v1549 = vld [vmem:[#allocation7 + $0x598] sm:$0xff]
    %v1550 = vld [vmem:[#allocation7 + $0x5a0] sm:$0xff]
    %v1551 = vld [vmem:[#allocation7 + $0x5a8] sm:$0xff]
    %v1552 = vld [vmem:[#allocation7 + $0x5b0] sm:$0xff]
    %v1553 = vld [vmem:[#allocation7 + $0x5b8] sm:$0xff]
    %v1554 = vld [vmem:[#allocation7 + $0x5c0] sm:$0xff]
    %v1555 = vld [vmem:[#allocation7 + $0x5c8] sm:$0xff]
    %v1556 = vld [vmem:[#allocation7 + $0x5d0] sm:$0xff]
    %v1557 = vld [vmem:[#allocation7 + $0x5d8] sm:$0xff]
    %v1558 = vld [vmem:[#allocation7 + $0x5e0] sm:$0xff]
    %v1559 = vld [vmem:[#allocation7 + $0x5e8] sm:$0xff]
    %v1560 = vld [vmem:[#allocation7 + $0x5f0] sm:$0xff]
    %v1561 = vld [vmem:[#allocation7 + $0x5f8] sm:$0xff]
    %v1562 = vld [vmem:[#allocation7 + $0x600] sm:$0xff]
    %v1563 = vld [vmem:[#allocation7 + $0x608] sm:$0xff]
    %v1564 = vld [vmem:[#allocation7 + $0x610] sm:$0xff]
    %v1565 = vld [vmem:[#allocation7 + $0x618] sm:$0xff]
    %v1566 = vld [vmem:[#allocation7 + $0x620] sm:$0xff]
    %v1567 = vld [vmem:[#allocation7 + $0x628] sm:$0xff]
    %v1568 = vld [vmem:[#allocation7 + $0x630] sm:$0xff]
    %v1569 = vld [vmem:[#allocation7 + $0x638] sm:$0xff]
    %v1570 = vld [vmem:[#allocation7 + $0x640] sm:$0xff]
    %v1571 = vld [vmem:[#allocation7 + $0x648] sm:$0xff]
    %v1572 = vld [vmem:[#allocation7 + $0x650] sm:$0xff]
    %v1573 = vld [vmem:[#allocation7 + $0x658] sm:$0xff]
    %v1574 = vld [vmem:[#allocation7 + $0x660] sm:$0xff]
    %v1575 = vld [vmem:[#allocation7 + $0x668] sm:$0xff]
    %v1576 = vld [vmem:[#allocation7 + $0x670] sm:$0xff]
    %v1577 = vld [vmem:[#allocation7 + $0x678] sm:$0xff]
    %v1578 = vld [vmem:[#allocation7 + $0x680] sm:$0xff]
    %v1579 = vld [vmem:[#allocation7 + $0x688] sm:$0xff]
    %v1580 = vld [vmem:[#allocation7 + $0x690] sm:$0xff]
    %v1581 = vld [vmem:[#allocation7 + $0x698] sm:$0xff]
    %v1582 = vld [vmem:[#allocation7 + $0x6a0] sm:$0xff]
    %v1583 = vld [vmem:[#allocation7 + $0x6a8] sm:$0xff]
    %v1584 = vld [vmem:[#allocation7 + $0x6b0] sm:$0xff]
    %v1585 = vld [vmem:[#allocation7 + $0x6b8] sm:$0xff]
    %v1586 = vld [vmem:[#allocation7 + $0x6c0] sm:$0xff]
    %v1587 = vld [vmem:[#allocation7 + $0x6c8] sm:$0xff]
    %v1588 = vld [vmem:[#allocation7 + $0x6d0] sm:$0xff]
    %v1589 = vld [vmem:[#allocation7 + $0x6d8] sm:$0xff]
    %v1590 = vld [vmem:[#allocation7 + $0x6e0] sm:$0xff]
    %v1591 = vld [vmem:[#allocation7 + $0x6e8] sm:$0xff]
    %v1592 = vld [vmem:[#allocation7 + $0x6f0] sm:$0xff]
    %v1593 = vld [vmem:[#allocation7 + $0x6f8] sm:$0xff]
    %v1594 = vld [vmem:[#allocation7 + $0x700] sm:$0xff]
    %v1595 = vld [vmem:[#allocation7 + $0x708] sm:$0xff]
    %v1596 = vld [vmem:[#allocation7 + $0x710] sm:$0xff]
    %v1597 = vld [vmem:[#allocation7 + $0x718] sm:$0xff]
    %v1598 = vld [vmem:[#allocation7 + $0x720] sm:$0xff]
    %v1599 = vld [vmem:[#allocation7 + $0x728] sm:$0xff]
    %v1600 = vld [vmem:[#allocation7 + $0x730] sm:$0xff]
    %v1601 = vld [vmem:[#allocation7 + $0x738] sm:$0xff]
    %v1602 = vld [vmem:[#allocation7 + $0x740] sm:$0xff]
    %v1603 = vld [vmem:[#allocation7 + $0x748] sm:$0xff]
    %v1604 = vld [vmem:[#allocation7 + $0x750] sm:$0xff]
    %v1605 = vld [vmem:[#allocation7 + $0x758] sm:$0xff]
    %v1606 = vld [vmem:[#allocation7 + $0x760] sm:$0xff]
    %v1607 = vld [vmem:[#allocation7 + $0x768] sm:$0xff]
    %v1608 = vld [vmem:[#allocation7 + $0x770] sm:$0xff]
    %v1609 = vld [vmem:[#allocation7 + $0x778] sm:$0xff]
    %v1610 = vld [vmem:[#allocation7 + $0x780] sm:$0xff]
    %v1611 = vld [vmem:[#allocation7 + $0x788] sm:$0xff]
    %v1612 = vld [vmem:[#allocation7 + $0x790] sm:$0xff]
    %v1613 = vld [vmem:[#allocation7 + $0x798] sm:$0xff]
    %v1614 = vld [vmem:[#allocation7 + $0x7a0] sm:$0xff]
    %v1615 = vld [vmem:[#allocation7 + $0x7a8] sm:$0xff]
    %v1616 = vld [vmem:[#allocation7 + $0x7b0] sm:$0xff]
    %v1617 = vld [vmem:[#allocation7 + $0x7b8] sm:$0xff]
    %v1618 = vld [vmem:[#allocation7 + $0x7c0] sm:$0xff]
    %v1619 = vld [vmem:[#allocation7 + $0x7c8] sm:$0xff]
    %v1620 = vld [vmem:[#allocation7 + $0x7d0] sm:$0xff]
    %v1621 = vld [vmem:[#allocation7 + $0x7d8] sm:$0xff]
    %v1622 = vld [vmem:[#allocation7 + $0x7e0] sm:$0xff]
    %v1623 = vld [vmem:[#allocation7 + $0x7e8] sm:$0xff]
    %v1624 = vld [vmem:[#allocation7 + $0x7f0] sm:$0xff]
    %v1625 = vld [vmem:[#allocation7 + $0x7f8] sm:$0xff]
    %v1626 = vld [vmem:[#allocation7 + $0x800] sm:$0xff]
    %v1627 = vld [vmem:[#allocation7 + $0x808] sm:$0xff]
    %v1628 = vld [vmem:[#allocation7 + $0x810] sm:$0xff]
    %v1629 = vld [vmem:[#allocation7 + $0x818] sm:$0xff]
    %v1630 = vld [vmem:[#allocation7 + $0x820] sm:$0xff]
    %v1631 = vld [vmem:[#allocation7 + $0x828] sm:$0xff]
    %v1632 = vld [vmem:[#allocation7 + $0x830] sm:$0xff]
    %v1633 = vld [vmem:[#allocation7 + $0x838] sm:$0xff]
    %v1634 = vld [vmem:[#allocation7 + $0x840] sm:$0xff]
    %v1635 = vld [vmem:[#allocation7 + $0x848] sm:$0xff]
    %v1636 = vld [vmem:[#allocation7 + $0x850] sm:$0xff]
    %v1637 = vld [vmem:[#allocation7 + $0x858] sm:$0xff]
    %v1638 = vld [vmem:[#allocation7 + $0x860] sm:$0xff]
    %v1639 = vld [vmem:[#allocation7 + $0x868] sm:$0xff]
    %v1640 = vld [vmem:[#allocation7 + $0x870] sm:$0xff]
    %v1641 = vld [vmem:[#allocation7 + $0x878] sm:$0xff]
    %v1642 = vld [vmem:[#allocation7 + $0x880] sm:$0xff]
    %v1643 = vld [vmem:[#allocation7 + $0x888] sm:$0xff]
    %v1644 = vld [vmem:[#allocation7 + $0x890] sm:$0xff]
    %v1645 = vld [vmem:[#allocation7 + $0x898] sm:$0xff]
    %v1646 = vld [vmem:[#allocation7 + $0x8a0] sm:$0xff]
    %v1647 = vld [vmem:[#allocation7 + $0x8a8] sm:$0xff]
    %v1648 = vld [vmem:[#allocation7 + $0x8b0] sm:$0xff]
    %v1649 = vld [vmem:[#allocation7 + $0x8b8] sm:$0xff]
    %v1650 = vld [vmem:[#allocation7 + $0x8c0] sm:$0xff]
    %v1651 = vld [vmem:[#allocation7 + $0x8c8] sm:$0xff]
    %v1652 = vld [vmem:[#allocation7 + $0x8d0] sm:$0xff]
    %v1653 = vld [vmem:[#allocation7 + $0x8d8] sm:$0xff]
    %v1654 = vld [vmem:[#allocation7 + $0x8e0] sm:$0xff]
    %v1655 = vld [vmem:[#allocation7 + $0x8e8] sm:$0xff]
    %v1656 = vld [vmem:[#allocation7 + $0x8f0] sm:$0xff]
    %v1657 = vld [vmem:[#allocation7 + $0x8f8] sm:$0xff]
    %v1658 = vld [vmem:[#allocation7 + $0x900] sm:$0xff]
    %v1659 = vld [vmem:[#allocation7 + $0x908] sm:$0xff]
    %v1660 = vld [vmem:[#allocation7 + $0x910] sm:$0xff]
    %v1661 = vld [vmem:[#allocation7 + $0x918] sm:$0xff]
    %v1662 = vld [vmem:[#allocation7 + $0x920] sm:$0xff]
    %v1663 = vld [vmem:[#allocation7 + $0x928] sm:$0xff]
    %v1664 = vld [vmem:[#allocation7 + $0x930] sm:$0xff]
    %v1665 = vld [vmem:[#allocation7 + $0x938] sm:$0xff]
    %v1666 = vld [vmem:[#allocation7 + $0x940] sm:$0xff]
    %v1667 = vld [vmem:[#allocation7 + $0x948] sm:$0xff]
    %v1668 = vld [vmem:[#allocation7 + $0x950] sm:$0xff]
    %v1669 = vld [vmem:[#allocation7 + $0x958] sm:$0xff]
    %v1670 = vld [vmem:[#allocation7 + $0x960] sm:$0xff]
    %v1671 = vld [vmem:[#allocation7 + $0x968] sm:$0xff]
    %v1672 = vld [vmem:[#allocation7 + $0x970] sm:$0xff]
    %v1673 = vld [vmem:[#allocation7 + $0x978] sm:$0xff]
    %v1674 = vld [vmem:[#allocation7 + $0x980] sm:$0xff]
    %v1675 = vld [vmem:[#allocation7 + $0x988] sm:$0xff]
    %v1676 = vld [vmem:[#allocation7 + $0x990] sm:$0xff]
    %v1677 = vld [vmem:[#allocation7 + $0x998] sm:$0xff]
    %v1678 = vld [vmem:[#allocation7 + $0x9a0] sm:$0xff]
    %v1679 = vld [vmem:[#allocation7 + $0x9a8] sm:$0xff]
    %v1680 = vld [vmem:[#allocation7 + $0x9b0] sm:$0xff]
    %v1681 = vld [vmem:[#allocation7 + $0x9b8] sm:$0xff]
    %v1682 = vld [vmem:[#allocation7 + $0x9c0] sm:$0xff]
    %v1683 = vld [vmem:[#allocation7 + $0x9c8] sm:$0xff]
    %v1684 = vld [vmem:[#allocation7 + $0x9d0] sm:$0xff]
    %v1685 = vld [vmem:[#allocation7 + $0x9d8] sm:$0xff]
    %v1686 = vld [vmem:[#allocation7 + $0x9e0] sm:$0xff]
    %v1687 = vld [vmem:[#allocation7 + $0x9e8] sm:$0xff]
    %v1688 = vld [vmem:[#allocation7 + $0x9f0] sm:$0xff]
    %v1689 = vld [vmem:[#allocation7 + $0x9f8] sm:$0xff]
    %v1690 = vld [vmem:[#allocation7 + $0xa00] sm:$0xff]
    %v1691 = vld [vmem:[#allocation7 + $0xa08] sm:$0xff]
    %v1692 = vld [vmem:[#allocation7 + $0xa10] sm:$0xff]
    %v1693 = vld [vmem:[#allocation7 + $0xa18] sm:$0xff]
    %v1694 = vld [vmem:[#allocation7 + $0xa20] sm:$0xff]
    %v1695 = vld [vmem:[#allocation7 + $0xa28] sm:$0xff]
    %v1696 = vld [vmem:[#allocation7 + $0xa30] sm:$0xff]
    %v1697 = vld [vmem:[#allocation7 + $0xa38] sm:$0xff]
    %v1698 = vld [vmem:[#allocation7 + $0xa40] sm:$0xff]
    %v1699 = vld [vmem:[#allocation7 + $0xa48] sm:$0xff]
    %v1700 = vld [vmem:[#allocation7 + $0xa50] sm:$0xff]
    %v1701 = vld [vmem:[#allocation7 + $0xa58] sm:$0xff]
    %v1702 = vld [vmem:[#allocation7 + $0xa60] sm:$0xff]
    %v1703 = vld [vmem:[#allocation7 + $0xa68] sm:$0xff]
    %v1704 = vld [vmem:[#allocation7 + $0xa70] sm:$0xff]
    %v1705 = vld [vmem:[#allocation7 + $0xa78] sm:$0xff]
    %v1706 = vld [vmem:[#allocation7 + $0xa80] sm:$0xff]
    %v1707 = vld [vmem:[#allocation7 + $0xa88] sm:$0xff]
    %v1708 = vld [vmem:[#allocation7 + $0xa90] sm:$0xff]
    %v1709 = vld [vmem:[#allocation7 + $0xa98] sm:$0xff]
    %v1710 = vld [vmem:[#allocation7 + $0xaa0] sm:$0xff]
    %v1711 = vld [vmem:[#allocation7 + $0xaa8] sm:$0xff]
    %v1712 = vld [vmem:[#allocation7 + $0xab0] sm:$0xff]
    %v1713 = vld [vmem:[#allocation7 + $0xab8] sm:$0xff]
    %v1714 = vld [vmem:[#allocation7 + $0xac0] sm:$0xff]
    %v1715 = vld [vmem:[#allocation7 + $0xac8] sm:$0xff]
    %v1716 = vld [vmem:[#allocation7 + $0xad0] sm:$0xff]
    %v1717 = vld [vmem:[#allocation7 + $0xad8] sm:$0xff]
    %v1718 = vld [vmem:[#allocation7 + $0xae0] sm:$0xff]
    %v1719 = vld [vmem:[#allocation7 + $0xae8] sm:$0xff]
    %v1720 = vld [vmem:[#allocation7 + $0xaf0] sm:$0xff]
    %v1721 = vld [vmem:[#allocation7 + $0xaf8] sm:$0xff]
    %v1722 = vld [vmem:[#allocation7 + $0xb00] sm:$0xff]
    %v1723 = vld [vmem:[#allocation7 + $0xb08] sm:$0xff]
    %v1724 = vld [vmem:[#allocation7 + $0xb10] sm:$0xff]
    %v1725 = vld [vmem:[#allocation7 + $0xb18] sm:$0xff]
    %v1726 = vld [vmem:[#allocation7 + $0xb20] sm:$0xff]
    %v1727 = vld [vmem:[#allocation7 + $0xb28] sm:$0xff]
    %v1728 = vld [vmem:[#allocation7 + $0xb30] sm:$0xff]
    %v1729 = vld [vmem:[#allocation7 + $0xb38] sm:$0xff]
    %v1730 = vld [vmem:[#allocation7 + $0xb40] sm:$0xff]
    %v1731 = vld [vmem:[#allocation7 + $0xb48] sm:$0xff]
    %v1732 = vld [vmem:[#allocation7 + $0xb50] sm:$0xff]
    %v1733 = vld [vmem:[#allocation7 + $0xb58] sm:$0xff]
    %v1734 = vld [vmem:[#allocation7 + $0xb60] sm:$0xff]
    %v1735 = vld [vmem:[#allocation7 + $0xb68] sm:$0xff]
    %v1736 = vld [vmem:[#allocation7 + $0xb70] sm:$0xff]
    %v1737 = vld [vmem:[#allocation7 + $0xb78] sm:$0xff]
    %v1738 = vld [vmem:[#allocation7 + $0xb80] sm:$0xff]
    %v1739 = vld [vmem:[#allocation7 + $0xb88] sm:$0xff]
    %v1740 = vld [vmem:[#allocation7 + $0xb90] sm:$0xff]
    %v1741 = vld [vmem:[#allocation7 + $0xb98] sm:$0xff]
    %v1742 = vld [vmem:[#allocation7 + $0xba0] sm:$0xff]
    %v1743 = vld [vmem:[#allocation7 + $0xba8] sm:$0xff]
    %v1744 = vld [vmem:[#allocation7 + $0xbb0] sm:$0xff]
    %v1745 = vld [vmem:[#allocation7 + $0xbb8] sm:$0xff]
    %v1746 = vld [vmem:[#allocation7 + $0xbc0] sm:$0xff]
    %v1747 = vld [vmem:[#allocation7 + $0xbc8] sm:$0xff]
    %v1748 = vld [vmem:[#allocation7 + $0xbd0] sm:$0xff]
    %v1749 = vld [vmem:[#allocation7 + $0xbd8] sm:$0xff]
    %v1750 = vld [vmem:[#allocation7 + $0xbe0] sm:$0xff]
    %v1751 = vld [vmem:[#allocation7 + $0xbe8] sm:$0xff]
    %v1752 = vld [vmem:[#allocation7 + $0xbf0] sm:$0xff]
    %v1753 = vld [vmem:[#allocation7 + $0xbf8] sm:$0xff]
    %v1882 = vunpack.c.l.b16 %v1626
    %v1883 = vunpack.c.h.b16 %v1626
    %v1884 = vunpack.c.l.b16 %v1627
    %v1885 = vunpack.c.h.b16 %v1627
    %v1886 = vunpack.c.l.b16 %v1628
    %v1887 = vunpack.c.h.b16 %v1628
    %v1888 = vunpack.c.l.b16 %v1629
    %v1889 = vunpack.c.h.b16 %v1629
    %v1890 = vunpack.c.l.b16 %v1630
    %v1891 = vunpack.c.h.b16 %v1630
    %v1892 = vunpack.c.l.b16 %v1631
    %v1893 = vunpack.c.h.b16 %v1631
    %v1894 = vunpack.c.l.b16 %v1632
    %v1895 = vunpack.c.h.b16 %v1632
    %v1896 = vunpack.c.l.b16 %v1633
    %v1897 = vunpack.c.h.b16 %v1633
    %v1898 = vunpack.c.l.b16 %v1634
    %v1899 = vunpack.c.h.b16 %v1634
    %v1900 = vunpack.c.l.b16 %v1635
    %v1901 = vunpack.c.h.b16 %v1635
    %v1902 = vunpack.c.l.b16 %v1636
    %v1903 = vunpack.c.h.b16 %v1636
    %v1904 = vunpack.c.l.b16 %v1637
    %v1905 = vunpack.c.h.b16 %v1637
    %v1906 = vunpack.c.l.b16 %v1638
    %v1907 = vunpack.c.h.b16 %v1638
    %v1908 = vunpack.c.l.b16 %v1639
    %v1909 = vunpack.c.h.b16 %v1639
    %v1910 = vunpack.c.l.b16 %v1640
    %v1911 = vunpack.c.h.b16 %v1640
    %v1912 = vunpack.c.l.b16 %v1641
    %v1913 = vunpack.c.h.b16 %v1641
    %v1914 = vunpack.c.l.b16 %v1642
    %v1915 = vunpack.c.h.b16 %v1642
    %v1916 = vunpack.c.l.b16 %v1643
    %v1917 = vunpack.c.h.b16 %v1643
    %v1918 = vunpack.c.l.b16 %v1644
    %v1919 = vunpack.c.h.b16 %v1644
    %v1920 = vunpack.c.l.b16 %v1645
    %v1921 = vunpack.c.h.b16 %v1645
    %v1922 = vunpack.c.l.b16 %v1646
    %v1923 = vunpack.c.h.b16 %v1646
    %v1924 = vunpack.c.l.b16 %v1647
    %v1925 = vunpack.c.h.b16 %v1647
    %v1926 = vunpack.c.l.b16 %v1648
    %v1927 = vunpack.c.h.b16 %v1648
    %v1928 = vunpack.c.l.b16 %v1649
    %v1929 = vunpack.c.h.b16 %v1649
    %v1930 = vunpack.c.l.b16 %v1650
    %v1931 = vunpack.c.h.b16 %v1650
    %v1932 = vunpack.c.l.b16 %v1651
    %v1933 = vunpack.c.h.b16 %v1651
    %v1934 = vunpack.c.l.b16 %v1652
    %v1935 = vunpack.c.h.b16 %v1652
    %v1936 = vunpack.c.l.b16 %v1653
    %v1937 = vunpack.c.h.b16 %v1653
    %v1938 = vunpack.c.l.b16 %v1654
    %v1939 = vunpack.c.h.b16 %v1654
    %v1940 = vunpack.c.l.b16 %v1655
    %v1941 = vunpack.c.h.b16 %v1655
    %v1942 = vunpack.c.l.b16 %v1656
    %v1943 = vunpack.c.h.b16 %v1656
    %v1944 = vunpack.c.l.b16 %v1657
    %v1945 = vunpack.c.h.b16 %v1657
    %v1946 = vunpack.c.l.b16 %v1658
    %v1947 = vunpack.c.h.b16 %v1658
    %v1948 = vunpack.c.l.b16 %v1659
    %v1949 = vunpack.c.h.b16 %v1659
    %v1950 = vunpack.c.l.b16 %v1660
    %v1951 = vunpack.c.h.b16 %v1660
    %v1952 = vunpack.c.l.b16 %v1661
    %v1953 = vunpack.c.h.b16 %v1661
    %v1954 = vunpack.c.l.b16 %v1662
    %v1955 = vunpack.c.h.b16 %v1662
    %v1956 = vunpack.c.l.b16 %v1663
    %v1957 = vunpack.c.h.b16 %v1663
    %v1958 = vunpack.c.l.b16 %v1664
    %v1959 = vunpack.c.h.b16 %v1664
    %v1960 = vunpack.c.l.b16 %v1665
    %v1961 = vunpack.c.h.b16 %v1665
    %v1962 = vunpack.c.l.b16 %v1666
    %v1963 = vunpack.c.h.b16 %v1666
    %v1964 = vunpack.c.l.b16 %v1667
    %v1965 = vunpack.c.h.b16 %v1667
    %v1966 = vunpack.c.l.b16 %v1668
    %v1967 = vunpack.c.h.b16 %v1668
    %v1968 = vunpack.c.l.b16 %v1669
    %v1969 = vunpack.c.h.b16 %v1669
    %v1970 = vunpack.c.l.b16 %v1670
    %v1971 = vunpack.c.h.b16 %v1670
    %v1972 = vunpack.c.l.b16 %v1671
    %v1973 = vunpack.c.h.b16 %v1671
    %v1974 = vunpack.c.l.b16 %v1672
    %v1975 = vunpack.c.h.b16 %v1672
    %v1976 = vunpack.c.l.b16 %v1673
    %v1977 = vunpack.c.h.b16 %v1673
    %v1978 = vunpack.c.l.b16 %v1674
    %v1979 = vunpack.c.h.b16 %v1674
    %v1980 = vunpack.c.l.b16 %v1675
    %v1981 = vunpack.c.h.b16 %v1675
    %v1982 = vunpack.c.l.b16 %v1676
    %v1983 = vunpack.c.h.b16 %v1676
    %v1984 = vunpack.c.l.b16 %v1677
    %v1985 = vunpack.c.h.b16 %v1677
    %v1986 = vunpack.c.l.b16 %v1678
    %v1987 = vunpack.c.h.b16 %v1678
    %v1988 = vunpack.c.l.b16 %v1679
    %v1989 = vunpack.c.h.b16 %v1679
    %v1990 = vunpack.c.l.b16 %v1680
    %v1991 = vunpack.c.h.b16 %v1680
    %v1992 = vunpack.c.l.b16 %v1681
    %v1993 = vunpack.c.h.b16 %v1681
    %v1994 = vunpack.c.l.b16 %v1682
    %v1995 = vunpack.c.h.b16 %v1682
    %v1996 = vunpack.c.l.b16 %v1683
    %v1997 = vunpack.c.h.b16 %v1683
    %v1998 = vunpack.c.l.b16 %v1684
    %v1999 = vunpack.c.h.b16 %v1684
    %v2000 = vunpack.c.l.b16 %v1685
    %v2001 = vunpack.c.h.b16 %v1685
    %v2002 = vunpack.c.l.b16 %v1686
    %v2003 = vunpack.c.h.b16 %v1686
    %v2004 = vunpack.c.l.b16 %v1687
    %v2005 = vunpack.c.h.b16 %v1687
    %v2006 = vunpack.c.l.b16 %v1688
    %v2007 = vunpack.c.h.b16 %v1688
    %v2008 = vunpack.c.l.b16 %v1689
    %v2009 = vunpack.c.h.b16 %v1689
    %v2010 = vunpack.c.l.b16 %v1690
    %v2011 = vunpack.c.h.b16 %v1690
    %v2012 = vunpack.c.l.b16 %v1691
    %v2013 = vunpack.c.h.b16 %v1691
    %v2014 = vunpack.c.l.b16 %v1692
    %v2015 = vunpack.c.h.b16 %v1692
    %v2016 = vunpack.c.l.b16 %v1693
    %v2017 = vunpack.c.h.b16 %v1693
    %v2018 = vunpack.c.l.b16 %v1694
    %v2019 = vunpack.c.h.b16 %v1694
    %v2020 = vunpack.c.l.b16 %v1695
    %v2021 = vunpack.c.h.b16 %v1695
    %v2022 = vunpack.c.l.b16 %v1696
    %v2023 = vunpack.c.h.b16 %v1696
    %v2024 = vunpack.c.l.b16 %v1697
    %v2025 = vunpack.c.h.b16 %v1697
    %v2026 = vunpack.c.l.b16 %v1698
    %v2027 = vunpack.c.h.b16 %v1698
    %v2028 = vunpack.c.l.b16 %v1699
    %v2029 = vunpack.c.h.b16 %v1699
    %v2030 = vunpack.c.l.b16 %v1700
    %v2031 = vunpack.c.h.b16 %v1700
    %v2032 = vunpack.c.l.b16 %v1701
    %v2033 = vunpack.c.h.b16 %v1701
    %v2034 = vunpack.c.l.b16 %v1702
    %v2035 = vunpack.c.h.b16 %v1702
    %v2036 = vunpack.c.l.b16 %v1703
    %v2037 = vunpack.c.h.b16 %v1703
    %v2038 = vunpack.c.l.b16 %v1704
    %v2039 = vunpack.c.h.b16 %v1704
    %v2040 = vunpack.c.l.b16 %v1705
    %v2041 = vunpack.c.h.b16 %v1705
    %v2042 = vunpack.c.l.b16 %v1706
    %v2043 = vunpack.c.h.b16 %v1706
    %v2044 = vunpack.c.l.b16 %v1707
    %v2045 = vunpack.c.h.b16 %v1707
    %v2046 = vunpack.c.l.b16 %v1708
    %v2047 = vunpack.c.h.b16 %v1708
    %v2048 = vunpack.c.l.b16 %v1709
    %v2049 = vunpack.c.h.b16 %v1709
    %v2050 = vunpack.c.l.b16 %v1710
    %v2051 = vunpack.c.h.b16 %v1710
    %v2052 = vunpack.c.l.b16 %v1711
    %v2053 = vunpack.c.h.b16 %v1711
    %v2054 = vunpack.c.l.b16 %v1712
    %v2055 = vunpack.c.h.b16 %v1712
    %v2056 = vunpack.c.l.b16 %v1713
    %v2057 = vunpack.c.h.b16 %v1713
    %v2058 = vunpack.c.l.b16 %v1714
    %v2059 = vunpack.c.h.b16 %v1714
    %v2060 = vunpack.c.l.b16 %v1715
    %v2061 = vunpack.c.h.b16 %v1715
    %v2062 = vunpack.c.l.b16 %v1716
    %v2063 = vunpack.c.h.b16 %v1716
    %v2064 = vunpack.c.l.b16 %v1717
    %v2065 = vunpack.c.h.b16 %v1717
    %v2066 = vunpack.c.l.b16 %v1718
    %v2067 = vunpack.c.h.b16 %v1718
    %v2068 = vunpack.c.l.b16 %v1719
    %v2069 = vunpack.c.h.b16 %v1719
    %v2070 = vunpack.c.l.b16 %v1720
    %v2071 = vunpack.c.h.b16 %v1720
    %v2072 = vunpack.c.l.b16 %v1721
    %v2073 = vunpack.c.h.b16 %v1721
    %v2074 = vunpack.c.l.b16 %v1722
    %v2075 = vunpack.c.h.b16 %v1722
    %v2076 = vunpack.c.l.b16 %v1723
    %v2077 = vunpack.c.h.b16 %v1723
    %v2078 = vunpack.c.l.b16 %v1724
    %v2079 = vunpack.c.h.b16 %v1724
    %v2080 = vunpack.c.l.b16 %v1725
    %v2081 = vunpack.c.h.b16 %v1725
    %v2082 = vunpack.c.l.b16 %v1726
    %v2083 = vunpack.c.h.b16 %v1726
    %v2084 = vunpack.c.l.b16 %v1727
    %v2085 = vunpack.c.h.b16 %v1727
    %v2086 = vunpack.c.l.b16 %v1728
    %v2087 = vunpack.c.h.b16 %v1728
    %v2088 = vunpack.c.l.b16 %v1729
    %v2089 = vunpack.c.h.b16 %v1729
    %v2090 = vunpack.c.l.b16 %v1730
    %v2091 = vunpack.c.h.b16 %v1730
    %v2092 = vunpack.c.l.b16 %v1731
    %v2093 = vunpack.c.h.b16 %v1731
    %v2094 = vunpack.c.l.b16 %v1732
    %v2095 = vunpack.c.h.b16 %v1732
    %v2096 = vunpack.c.l.b16 %v1733
    %v2097 = vunpack.c.h.b16 %v1733
    %v2098 = vunpack.c.l.b16 %v1734
    %v2099 = vunpack.c.h.b16 %v1734
    %v2100 = vunpack.c.l.b16 %v1735
    %v2101 = vunpack.c.h.b16 %v1735
    %v2102 = vunpack.c.l.b16 %v1736
    %v2103 = vunpack.c.h.b16 %v1736
    %v2104 = vunpack.c.l.b16 %v1737
    %v2105 = vunpack.c.h.b16 %v1737
    %v2106 = vunpack.c.l.b16 %v1738
    %v2107 = vunpack.c.h.b16 %v1738
    %v2108 = vunpack.c.l.b16 %v1739
    %v2109 = vunpack.c.h.b16 %v1739
    %v2110 = vunpack.c.l.b16 %v1740
    %v2111 = vunpack.c.h.b16 %v1740
    %v2112 = vunpack.c.l.b16 %v1741
    %v2113 = vunpack.c.h.b16 %v1741
    %v2114 = vunpack.c.l.b16 %v1742
    %v2115 = vunpack.c.h.b16 %v1742
    %v2116 = vunpack.c.l.b16 %v1743
    %v2117 = vunpack.c.h.b16 %v1743
    %v2118 = vunpack.c.l.b16 %v1744
    %v2119 = vunpack.c.h.b16 %v1744
    %v2120 = vunpack.c.l.b16 %v1745
    %v2121 = vunpack.c.h.b16 %v1745
    %v2122 = vunpack.c.l.b16 %v1746
    %v2123 = vunpack.c.h.b16 %v1746
    %v2124 = vunpack.c.l.b16 %v1747
    %v2125 = vunpack.c.h.b16 %v1747
    %v2126 = vunpack.c.l.b16 %v1748
    %v2127 = vunpack.c.h.b16 %v1748
    %v2128 = vunpack.c.l.b16 %v1749
    %v2129 = vunpack.c.h.b16 %v1749
    %v2130 = vunpack.c.l.b16 %v1750
    %v2131 = vunpack.c.h.b16 %v1750
    %v2132 = vunpack.c.l.b16 %v1751
    %v2133 = vunpack.c.h.b16 %v1751
    %v2134 = vunpack.c.l.b16 %v1752
    %v2135 = vunpack.c.h.b16 %v1752
    %v2136 = vunpack.c.l.b16 %v1753
    %v2137 = vunpack.c.h.b16 %v1753
    %v2138 = vpack.c.b16 %v1886, %v1882
    %v2139 = vpack.c.b16 %v1887, %v1883
    %v2140 = vpack.c.b16 %v1888, %v1884
    %v2141 = vpack.c.b16 %v1889, %v1885
    %v2142 = vpack.c.b16 %v1894, %v1890
    %v2143 = vpack.c.b16 %v1895, %v1891
    %v2144 = vpack.c.b16 %v1896, %v1892
    %v2145 = vpack.c.b16 %v1897, %v1893
    %v2146 = vpack.c.b16 %v1902, %v1898
    %v2147 = vpack.c.b16 %v1903, %v1899
    %v2148 = vpack.c.b16 %v1904, %v1900
    %v2149 = vpack.c.b16 %v1905, %v1901
    %v2150 = vpack.c.b16 %v1910, %v1906
    %v2151 = vpack.c.b16 %v1911, %v1907
    %v2152 = vpack.c.b16 %v1912, %v1908
    %v2153 = vpack.c.b16 %v1913, %v1909
    %v2154 = vpack.c.b16 %v1918, %v1914
    %v2155 = vpack.c.b16 %v1919, %v1915
    %v2156 = vpack.c.b16 %v1920, %v1916
    %v2157 = vpack.c.b16 %v1921, %v1917
    %v2158 = vpack.c.b16 %v1926, %v1922
    %v2159 = vpack.c.b16 %v1927, %v1923
    %v2160 = vpack.c.b16 %v1928, %v1924
    %v2161 = vpack.c.b16 %v1929, %v1925
    %v2162 = vpack.c.b16 %v1934, %v1930
    %v2163 = vpack.c.b16 %v1935, %v1931
    %v2164 = vpack.c.b16 %v1936, %v1932
    %v2165 = vpack.c.b16 %v1937, %v1933
    %v2166 = vpack.c.b16 %v1942, %v1938
    %v2167 = vpack.c.b16 %v1943, %v1939
    %v2168 = vpack.c.b16 %v1944, %v1940
    %v2169 = vpack.c.b16 %v1945, %v1941
    %v2170 = vpack.c.b16 %v1950, %v1946
    %v2171 = vpack.c.b16 %v1951, %v1947
    %v2172 = vpack.c.b16 %v1952, %v1948
    %v2173 = vpack.c.b16 %v1953, %v1949
    %v2174 = vpack.c.b16 %v1958, %v1954
    %v2175 = vpack.c.b16 %v1959, %v1955
    %v2176 = vpack.c.b16 %v1960, %v1956
    %v2177 = vpack.c.b16 %v1961, %v1957
    %v2178 = vpack.c.b16 %v1966, %v1962
    %v2179 = vpack.c.b16 %v1967, %v1963
    %v2180 = vpack.c.b16 %v1968, %v1964
    %v2181 = vpack.c.b16 %v1969, %v1965
    %v2182 = vpack.c.b16 %v1974, %v1970
    %v2183 = vpack.c.b16 %v1975, %v1971
    %v2184 = vpack.c.b16 %v1976, %v1972
    %v2185 = vpack.c.b16 %v1977, %v1973
    %v2186 = vpack.c.b16 %v1982, %v1978
    %v2187 = vpack.c.b16 %v1983, %v1979
    %v2188 = vpack.c.b16 %v1984, %v1980
    %v2189 = vpack.c.b16 %v1985, %v1981
    %v2190 = vpack.c.b16 %v1990, %v1986
    %v2191 = vpack.c.b16 %v1991, %v1987
    %v2192 = vpack.c.b16 %v1992, %v1988
    %v2193 = vpack.c.b16 %v1993, %v1989
    %v2194 = vpack.c.b16 %v1998, %v1994
    %v2195 = vpack.c.b16 %v1999, %v1995
    %v2196 = vpack.c.b16 %v2000, %v1996
    %v2197 = vpack.c.b16 %v2001, %v1997
    %v2198 = vpack.c.b16 %v2006, %v2002
    %v2199 = vpack.c.b16 %v2007, %v2003
    %v2200 = vpack.c.b16 %v2008, %v2004
    %v2201 = vpack.c.b16 %v2009, %v2005
    %v2202 = vpack.c.b16 %v2014, %v2010
    %v2203 = vpack.c.b16 %v2015, %v2011
    %v2204 = vpack.c.b16 %v2016, %v2012
    %v2205 = vpack.c.b16 %v2017, %v2013
    %v2206 = vpack.c.b16 %v2022, %v2018
    %v2207 = vpack.c.b16 %v2023, %v2019
    %v2208 = vpack.c.b16 %v2024, %v2020
    %v2209 = vpack.c.b16 %v2025, %v2021
    %v2210 = vpack.c.b16 %v2030, %v2026
    %v2211 = vpack.c.b16 %v2031, %v2027
    %v2212 = vpack.c.b16 %v2032, %v2028
    %v2213 = vpack.c.b16 %v2033, %v2029
    %v2214 = vpack.c.b16 %v2038, %v2034
    %v2215 = vpack.c.b16 %v2039, %v2035
    %v2216 = vpack.c.b16 %v2040, %v2036
    %v2217 = vpack.c.b16 %v2041, %v2037
    %v2218 = vpack.c.b16 %v2046, %v2042
    %v2219 = vpack.c.b16 %v2047, %v2043
    %v2220 = vpack.c.b16 %v2048, %v2044
    %v2221 = vpack.c.b16 %v2049, %v2045
    %v2222 = vpack.c.b16 %v2054, %v2050
    %v2223 = vpack.c.b16 %v2055, %v2051
    %v2224 = vpack.c.b16 %v2056, %v2052
    %v2225 = vpack.c.b16 %v2057, %v2053
    %v2226 = vpack.c.b16 %v2062, %v2058
    %v2227 = vpack.c.b16 %v2063, %v2059
    %v2228 = vpack.c.b16 %v2064, %v2060
    %v2229 = vpack.c.b16 %v2065, %v2061
    %v2230 = vpack.c.b16 %v2070, %v2066
    %v2231 = vpack.c.b16 %v2071, %v2067
    %v2232 = vpack.c.b16 %v2072, %v2068
    %v2233 = vpack.c.b16 %v2073, %v2069
    %v2234 = vpack.c.b16 %v2078, %v2074
    %v2235 = vpack.c.b16 %v2079, %v2075
    %v2236 = vpack.c.b16 %v2080, %v2076
    %v2237 = vpack.c.b16 %v2081, %v2077
    %v2238 = vpack.c.b16 %v2086, %v2082
    %v2239 = vpack.c.b16 %v2087, %v2083
    %v2240 = vpack.c.b16 %v2088, %v2084
    %v2241 = vpack.c.b16 %v2089, %v2085
    %v2242 = vpack.c.b16 %v2094, %v2090
    %v2243 = vpack.c.b16 %v2095, %v2091
    %v2244 = vpack.c.b16 %v2096, %v2092
    %v2245 = vpack.c.b16 %v2097, %v2093
    %v2246 = vpack.c.b16 %v2102, %v2098
    %v2247 = vpack.c.b16 %v2103, %v2099
    %v2248 = vpack.c.b16 %v2104, %v2100
    %v2249 = vpack.c.b16 %v2105, %v2101
    %v2250 = vpack.c.b16 %v2110, %v2106
    %v2251 = vpack.c.b16 %v2111, %v2107
    %v2252 = vpack.c.b16 %v2112, %v2108
    %v2253 = vpack.c.b16 %v2113, %v2109
    %v2254 = vpack.c.b16 %v2118, %v2114
    %v2255 = vpack.c.b16 %v2119, %v2115
    %v2256 = vpack.c.b16 %v2120, %v2116
    %v2257 = vpack.c.b16 %v2121, %v2117
    %v2258 = vpack.c.b16 %v2126, %v2122
    %v2259 = vpack.c.b16 %v2127, %v2123
    %v2260 = vpack.c.b16 %v2128, %v2124
    %v2261 = vpack.c.b16 %v2129, %v2125
    %v2262 = vpack.c.b16 %v2134, %v2130
    %v2263 = vpack.c.b16 %v2135, %v2131
    %v2264 = vpack.c.b16 %v2136, %v2132
    %v2265 = vpack.c.b16 %v2137, %v2133
    %2394 = vmatprep.subr.bf16.mxu0 %v2139
    %2395 = vmatpush1.bf16.msra.mxu0 %v2138
    %2396 = vmatprep.subr.bf16.mxu0 %v2143
    %2397 = vmatpush1.bf16.msra.mxu0 %v2142
    %2398 = vmatprep.subr.bf16.mxu0 %v2147
    %2399 = vmatpush1.bf16.msra.mxu0 %v2146
    %2400 = vmatprep.subr.bf16.mxu0 %v2151
    %2401 = vmatpush1.bf16.msra.mxu0 %v2150
    %2402 = vmatprep.subr.bf16.mxu0 %v2155
    %2403 = vmatpush1.bf16.msra.mxu0 %v2154
    %2404 = vmatprep.subr.bf16.mxu0 %v2159
    %2405 = vmatpush1.bf16.msra.mxu0 %v2158
    %2406 = vmatprep.subr.bf16.mxu0 %v2163
    %2407 = vmatpush1.bf16.msra.mxu0 %v2162
    %2408 = vmatprep.subr.bf16.mxu0 %v2167
    %2409 = vmatpush1.bf16.msra.mxu0 %v2166
    %2410 = vmatprep.subr.bf16.mxu0 %v2171
    %2411 = vmatpush1.bf16.msra.mxu0 %v2170
    %2412 = vmatprep.subr.bf16.mxu0 %v2175
    %2413 = vmatpush1.bf16.msra.mxu0 %v2174
    %2414 = vmatprep.subr.bf16.mxu0 %v2179
    %2415 = vmatpush1.bf16.msra.mxu0 %v2178
    %2416 = vmatprep.subr.bf16.mxu0 %v2183
    %2417 = vmatpush1.bf16.msra.mxu0 %v2182
    %2418 = vmatprep.subr.bf16.mxu0 %v2187
    %2419 = vmatpush1.bf16.msra.mxu0 %v2186
    %2420 = vmatprep.subr.bf16.mxu0 %v2191
    %2421 = vmatpush1.bf16.msra.mxu0 %v2190
    %2422 = vmatprep.subr.bf16.mxu0 %v2195
    %2423 = vmatpush1.bf16.msra.mxu0 %v2194
    %2424 = vmatprep.subr.bf16.mxu0 %v2199
    %2425 = vmatpush1.bf16.msra.mxu0 %v2198
    %2426 = vmatprep.mubr.bf16.mxu0 %v1495
    %2427 = vmatmul.mubr.bf16.gmra.mrb[0].mxu0 %v1494
    %v2428 = vpop.f32.mrb[0].mxu0
    %v2429 = vadd.f32 0.0, %v2428
    %v2430 = vpop.f32.mrb[0].mxu0
    %v2431 = vadd.f32 0.0, %v2430
    %v2432 = vpop.f32.mrb[0].mxu0
    %v2433 = vadd.f32 0.0, %v2432
    %v2434 = vpop.f32.mrb[0].mxu0
    %v2435 = vadd.f32 0.0, %v2434
    %2436 = vdwg.mxu0
    %2437 = vmatprep.subr.bf16.mxu0 %v2203
    %2438 = vmatpush1.bf16.msra.mxu0 %v2202
    %2439 = vmatprep.subr.bf16.mxu0 %v2207
    %2440 = vmatpush1.bf16.msra.mxu0 %v2206
    %2441 = vmatprep.subr.bf16.mxu0 %v2211
    %2442 = vmatpush1.bf16.msra.mxu0 %v2210
    %2443 = vmatprep.subr.bf16.mxu0 %v2215
    %2444 = vmatpush1.bf16.msra.mxu0 %v2214
    %2445 = vmatprep.subr.bf16.mxu0 %v2219
    %2446 = vmatpush1.bf16.msra.mxu0 %v2218
    %2447 = vmatprep.subr.bf16.mxu0 %v2223
    %2448 = vmatpush1.bf16.msra.mxu0 %v2222
    %2449 = vmatprep.subr.bf16.mxu0 %v2227
    %2450 = vmatpush1.bf16.msra.mxu0 %v2226
    %2451 = vmatprep.subr.bf16.mxu0 %v2231
    %2452 = vmatpush1.bf16.msra.mxu0 %v2230
    %2453 = vmatprep.subr.bf16.mxu0 %v2235
    %2454 = vmatpush1.bf16.msra.mxu0 %v2234
    %2455 = vmatprep.subr.bf16.mxu0 %v2239
    %2456 = vmatpush1.bf16.msra.mxu0 %v2238
    %2457 = vmatprep.subr.bf16.mxu0 %v2243
    %2458 = vmatpush1.bf16.msra.mxu0 %v2242
    %2459 = vmatprep.subr.bf16.mxu0 %v2247
    %2460 = vmatpush1.bf16.msra.mxu0 %v2246
    %2461 = vmatprep.subr.bf16.mxu0 %v2251
    %2462 = vmatpush1.bf16.msra.mxu0 %v2250
    %2463 = vmatprep.subr.bf16.mxu0 %v2255
    %2464 = vmatpush1.bf16.msra.mxu0 %v2254
    %2465 = vmatprep.subr.bf16.mxu0 %v2259
    %2466 = vmatpush1.bf16.msra.mxu0 %v2258
    %2467 = vmatprep.subr.bf16.mxu0 %v2263
    %2468 = vmatpush1.bf16.msra.mxu0 %v2262
    %2469 = vmatprep.mubr.bf16.mxu0 %v1497
    %2470 = vmatmul.mubr.bf16.gmra.mrb[0].mxu0 %v1496
    %v2471 = vpop.f32.mrb[0].mxu0
    %v2472 = vadd.f32 %v2429, %v2471
    %v2473 = vpop.f32.mrb[0].mxu0
    %v2474 = vadd.f32 %v2431, %v2473
    %v2475 = vpop.f32.mrb[0].mxu0
    %v2476 = vadd.f32 %v2433, %v2475
    %v2477 = vpop.f32.mrb[0].mxu0
    %v2478 = vadd.f32 %v2435, %v2477
    %2479 = vdwg.mxu0
    %2480 = vmatprep.subr.bf16.mxu0 %v2141
    %2481 = vmatpush1.bf16.msra.mxu0 %v2140
    %2482 = vmatprep.subr.bf16.mxu0 %v2145
    %2483 = vmatpush1.bf16.msra.mxu0 %v2144
    %2484 = vmatprep.subr.bf16.mxu0 %v2149
    %2485 = vmatpush1.bf16.msra.mxu0 %v2148
    %2486 = vmatprep.subr.bf16.mxu0 %v2153
    %2487 = vmatpush1.bf16.msra.mxu0 %v2152
    %2488 = vmatprep.subr.bf16.mxu0 %v2157
    %2489 = vmatpush1.bf16.msra.mxu0 %v2156
    %2490 = vmatprep.subr.bf16.mxu0 %v2161
    %2491 = vmatpush1.bf16.msra.mxu0 %v2160
    %2492 = vmatprep.subr.bf16.mxu0 %v2165
    %2493 = vmatpush1.bf16.msra.mxu0 %v2164
    %2494 = vmatprep.subr.bf16.mxu0 %v2169
    %2495 = vmatpush1.bf16.msra.mxu0 %v2168
    %2496 = vmatprep.subr.bf16.mxu0 %v2173
    %2497 = vmatpush1.bf16.msra.mxu0 %v2172
    %2498 = vmatprep.subr.bf16.mxu0 %v2177
    %2499 = vmatpush1.bf16.msra.mxu0 %v2176
    %2500 = vmatprep.subr.bf16.mxu0 %v2181
    %2501 = vmatpush1.bf16.msra.mxu0 %v2180
    %2502 = vmatprep.subr.bf16.mxu0 %v2185
    %2503 = vmatpush1.bf16.msra.mxu0 %v2184
    %2504 = vmatprep.subr.bf16.mxu0 %v2189
    %2505 = vmatpush1.bf16.msra.mxu0 %v2188
    %2506 = vmatprep.subr.bf16.mxu0 %v2193
    %2507 = vmatpush1.bf16.msra.mxu0 %v2192
    %2508 = vmatprep.subr.bf16.mxu0 %v2197
    %2509 = vmatpush1.bf16.msra.mxu0 %v2196
    %2510 = vmatprep.subr.bf16.mxu0 %v2201
    %2511 = vmatpush1.bf16.msra.mxu0 %v2200
    %2512 = vmatprep.mubr.bf16.mxu0 %v1495
    %2513 = vmatmul.mubr.bf16.gmra.mrb[0].mxu0 %v1494
    %v2514 = vpop.f32.mrb[0].mxu0
    %v2515 = vadd.f32 0.0, %v2514
    %v2516 = vpop.f32.mrb[0].mxu0
    %v2517 = vadd.f32 0.0, %v2516
    %v2518 = vpop.f32.mrb[0].mxu0
    %v2519 = vadd.f32 0.0, %v2518
    %v2520 = vpop.f32.mrb[0].mxu0
    %v2521 = vadd.f32 0.0, %v2520
    %2522 = vdwg.mxu0
    %2523 = vmatprep.subr.bf16.mxu0 %v2205
    %2524 = vmatpush1.bf16.msra.mxu0 %v2204
    %2525 = vmatprep.subr.bf16.mxu0 %v2209
    %2526 = vmatpush1.bf16.msra.mxu0 %v2208
    %2527 = vmatprep.subr.bf16.mxu0 %v2213
    %2528 = vmatpush1.bf16.msra.mxu0 %v2212
    %2529 = vmatprep.subr.bf16.mxu0 %v2217
    %2530 = vmatpush1.bf16.msra.mxu0 %v2216
    %2531 = vmatprep.subr.bf16.mxu0 %v2221
    %2532 = vmatpush1.bf16.msra.mxu0 %v2220
    %2533 = vmatprep.subr.bf16.mxu0 %v2225
    %2534 = vmatpush1.bf16.msra.mxu0 %v2224
    %2535 = vmatprep.subr.bf16.mxu0 %v2229
    %2536 = vmatpush1.bf16.msra.mxu0 %v2228
    %2537 = vmatprep.subr.bf16.mxu0 %v2233
    %2538 = vmatpush1.bf16.msra.mxu0 %v2232
    %2539 = vmatprep.subr.bf16.mxu0 %v2237
    %2540 = vmatpush1.bf16.msra.mxu0 %v2236
    %2541 = vmatprep.subr.bf16.mxu0 %v2241
    %2542 = vmatpush1.bf16.msra.mxu0 %v2240
    %2543 = vmatprep.subr.bf16.mxu0 %v2245
    %2544 = vmatpush1.bf16.msra.mxu0 %v2244
    %2545 = vmatprep.subr.bf16.mxu0 %v2249
    %2546 = vmatpush1.bf16.msra.mxu0 %v2248
    %2547 = vmatprep.subr.bf16.mxu0 %v2253
    %2548 = vmatpush1.bf16.msra.mxu0 %v2252
    %2549 = vmatprep.subr.bf16.mxu0 %v2257
    %2550 = vmatpush1.bf16.msra.mxu0 %v2256
    %2551 = vmatprep.subr.bf16.mxu0 %v2261
    %2552 = vmatpush1.bf16.msra.mxu0 %v2260
    %2553 = vmatprep.subr.bf16.mxu0 %v2265
    %2554 = vmatpush1.bf16.msra.mxu0 %v2264
    %2555 = vmatprep.mubr.bf16.mxu0 %v1497
    %2556 = vmatmul.mubr.bf16.gmra.mrb[0].mxu0 %v1496
    %v2557 = vpop.f32.mrb[0].mxu0
    %v2558 = vadd.f32 %v2515, %v2557
    %v2559 = vpop.f32.mrb[0].mxu0
    %v2560 = vadd.f32 %v2517, %v2559
    %v2561 = vpop.f32.mrb[0].mxu0
    %v2562 = vadd.f32 %v2519, %v2561
    %v2563 = vpop.f32.mrb[0].mxu0
    %v2564 = vadd.f32 %v2521, %v2563
    %2565 = vdwg.mxu0
    %v2694 = vunpack.c.l.b16 %v1498
    %v2695 = vunpack.c.h.b16 %v1498
    %v2696 = vunpack.c.l.b16 %v1499
    %v2697 = vunpack.c.h.b16 %v1499
    %v2698 = vunpack.c.l.b16 %v1500
    %v2699 = vunpack.c.h.b16 %v1500
    %v2700 = vunpack.c.l.b16 %v1501
    %v2701 = vunpack.c.h.b16 %v1501
    %v2702 = vunpack.c.l.b16 %v1502
    %v2703 = vunpack.c.h.b16 %v1502
    %v2704 = vunpack.c.l.b16 %v1503
    %v2705 = vunpack.c.h.b16 %v1503
    %v2706 = vunpack.c.l.b16 %v1504
    %v2707 = vunpack.c.h.b16 %v1504
    %v2708 = vunpack.c.l.b16 %v1505
    %v2709 = vunpack.c.h.b16 %v1505
    %v2710 = vunpack.c.l.b16 %v1506
    %v2711 = vunpack.c.h.b16 %v1506
    %v2712 = vunpack.c.l.b16 %v1507
    %v2713 = vunpack.c.h.b16 %v1507
    %v2714 = vunpack.c.l.b16 %v1508
    %v2715 = vunpack.c.h.b16 %v1508
    %v2716 = vunpack.c.l.b16 %v1509
    %v2717 = vunpack.c.h.b16 %v1509
    %v2718 = vunpack.c.l.b16 %v1510
    %v2719 = vunpack.c.h.b16 %v1510
    %v2720 = vunpack.c.l.b16 %v1511
    %v2721 = vunpack.c.h.b16 %v1511
    %v2722 = vunpack.c.l.b16 %v1512
    %v2723 = vunpack.c.h.b16 %v1512
    %v2724 = vunpack.c.l.b16 %v1513
    %v2725 = vunpack.c.h.b16 %v1513
    %v2726 = vunpack.c.l.b16 %v1514
    %v2727 = vunpack.c.h.b16 %v1514
    %v2728 = vunpack.c.l.b16 %v1515
    %v2729 = vunpack.c.h.b16 %v1515
    %v2730 = vunpack.c.l.b16 %v1516
    %v2731 = vunpack.c.h.b16 %v1516
    %v2732 = vunpack.c.l.b16 %v1517
    %v2733 = vunpack.c.h.b16 %v1517
    %v2734 = vunpack.c.l.b16 %v1518
    %v2735 = vunpack.c.h.b16 %v1518
    %v2736 = vunpack.c.l.b16 %v1519
    %v2737 = vunpack.c.h.b16 %v1519
    %v2738 = vunpack.c.l.b16 %v1520
    %v2739 = vunpack.c.h.b16 %v1520
    %v2740 = vunpack.c.l.b16 %v1521
    %v2741 = vunpack.c.h.b16 %v1521
    %v2742 = vunpack.c.l.b16 %v1522
    %v2743 = vunpack.c.h.b16 %v1522
    %v2744 = vunpack.c.l.b16 %v1523
    %v2745 = vunpack.c.h.b16 %v1523
    %v2746 = vunpack.c.l.b16 %v1524
    %v2747 = vunpack.c.h.b16 %v1524
    %v2748 = vunpack.c.l.b16 %v1525
    %v2749 = vunpack.c.h.b16 %v1525
    %v2750 = vunpack.c.l.b16 %v1526
    %v2751 = vunpack.c.h.b16 %v1526
    %v2752 = vunpack.c.l.b16 %v1527
    %v2753 = vunpack.c.h.b16 %v1527
    %v2754 = vunpack.c.l.b16 %v1528
    %v2755 = vunpack.c.h.b16 %v1528
    %v2756 = vunpack.c.l.b16 %v1529
    %v2757 = vunpack.c.h.b16 %v1529
    %v2758 = vunpack.c.l.b16 %v1530
    %v2759 = vunpack.c.h.b16 %v1530
    %v2760 = vunpack.c.l.b16 %v1531
    %v2761 = vunpack.c.h.b16 %v1531
    %v2762 = vunpack.c.l.b16 %v1532
    %v2763 = vunpack.c.h.b16 %v1532
    %v2764 = vunpack.c.l.b16 %v1533
    %v2765 = vunpack.c.h.b16 %v1533
    %v2766 = vunpack.c.l.b16 %v1534
    %v2767 = vunpack.c.h.b16 %v1534
    %v2768 = vunpack.c.l.b16 %v1535
    %v2769 = vunpack.c.h.b16 %v1535
    %v2770 = vunpack.c.l.b16 %v1536
    %v2771 = vunpack.c.h.b16 %v1536
    %v2772 = vunpack.c.l.b16 %v1537
    %v2773 = vunpack.c.h.b16 %v1537
    %v2774 = vunpack.c.l.b16 %v1538
    %v2775 = vunpack.c.h.b16 %v1538
    %v2776 = vunpack.c.l.b16 %v1539
    %v2777 = vunpack.c.h.b16 %v1539
    %v2778 = vunpack.c.l.b16 %v1540
    %v2779 = vunpack.c.h.b16 %v1540
    %v2780 = vunpack.c.l.b16 %v1541
    %v2781 = vunpack.c.h.b16 %v1541
    %v2782 = vunpack.c.l.b16 %v1542
    %v2783 = vunpack.c.h.b16 %v1542
    %v2784 = vunpack.c.l.b16 %v1543
    %v2785 = vunpack.c.h.b16 %v1543
    %v2786 = vunpack.c.l.b16 %v1544
    %v2787 = vunpack.c.h.b16 %v1544
    %v2788 = vunpack.c.l.b16 %v1545
    %v2789 = vunpack.c.h.b16 %v1545
    %v2790 = vunpack.c.l.b16 %v1546
    %v2791 = vunpack.c.h.b16 %v1546
    %v2792 = vunpack.c.l.b16 %v1547
    %v2793 = vunpack.c.h.b16 %v1547
    %v2794 = vunpack.c.l.b16 %v1548
    %v2795 = vunpack.c.h.b16 %v1548
    %v2796 = vunpack.c.l.b16 %v1549
    %v2797 = vunpack.c.h.b16 %v1549
    %v2798 = vunpack.c.l.b16 %v1550
    %v2799 = vunpack.c.h.b16 %v1550
    %v2800 = vunpack.c.l.b16 %v1551
    %v2801 = vunpack.c.h.b16 %v1551
    %v2802 = vunpack.c.l.b16 %v1552
    %v2803 = vunpack.c.h.b16 %v1552
    %v2804 = vunpack.c.l.b16 %v1553
    %v2805 = vunpack.c.h.b16 %v1553
    %v2806 = vunpack.c.l.b16 %v1554
    %v2807 = vunpack.c.h.b16 %v1554
    %v2808 = vunpack.c.l.b16 %v1555
    %v2809 = vunpack.c.h.b16 %v1555
    %v2810 = vunpack.c.l.b16 %v1556
    %v2811 = vunpack.c.h.b16 %v1556
    %v2812 = vunpack.c.l.b16 %v1557
    %v2813 = vunpack.c.h.b16 %v1557
    %v2814 = vunpack.c.l.b16 %v1558
    %v2815 = vunpack.c.h.b16 %v1558
    %v2816 = vunpack.c.l.b16 %v1559
    %v2817 = vunpack.c.h.b16 %v1559
    %v2818 = vunpack.c.l.b16 %v1560
    %v2819 = vunpack.c.h.b16 %v1560
    %v2820 = vunpack.c.l.b16 %v1561
    %v2821 = vunpack.c.h.b16 %v1561
    %v2822 = vunpack.c.l.b16 %v1562
    %v2823 = vunpack.c.h.b16 %v1562
    %v2824 = vunpack.c.l.b16 %v1563
    %v2825 = vunpack.c.h.b16 %v1563
    %v2826 = vunpack.c.l.b16 %v1564
    %v2827 = vunpack.c.h.b16 %v1564
    %v2828 = vunpack.c.l.b16 %v1565
    %v2829 = vunpack.c.h.b16 %v1565
    %v2830 = vunpack.c.l.b16 %v1566
    %v2831 = vunpack.c.h.b16 %v1566
    %v2832 = vunpack.c.l.b16 %v1567
    %v2833 = vunpack.c.h.b16 %v1567
    %v2834 = vunpack.c.l.b16 %v1568
    %v2835 = vunpack.c.h.b16 %v1568
    %v2836 = vunpack.c.l.b16 %v1569
    %v2837 = vunpack.c.h.b16 %v1569
    %v2838 = vunpack.c.l.b16 %v1570
    %v2839 = vunpack.c.h.b16 %v1570
    %v2840 = vunpack.c.l.b16 %v1571
    %v2841 = vunpack.c.h.b16 %v1571
    %v2842 = vunpack.c.l.b16 %v1572
    %v2843 = vunpack.c.h.b16 %v1572
    %v2844 = vunpack.c.l.b16 %v1573
    %v2845 = vunpack.c.h.b16 %v1573
    %v2846 = vunpack.c.l.b16 %v1574
    %v2847 = vunpack.c.h.b16 %v1574
    %v2848 = vunpack.c.l.b16 %v1575
    %v2849 = vunpack.c.h.b16 %v1575
    %v2850 = vunpack.c.l.b16 %v1576
    %v2851 = vunpack.c.h.b16 %v1576
    %v2852 = vunpack.c.l.b16 %v1577
    %v2853 = vunpack.c.h.b16 %v1577
    %v2854 = vunpack.c.l.b16 %v1578
    %v2855 = vunpack.c.h.b16 %v1578
    %v2856 = vunpack.c.l.b16 %v1579
    %v2857 = vunpack.c.h.b16 %v1579
    %v2858 = vunpack.c.l.b16 %v1580
    %v2859 = vunpack.c.h.b16 %v1580
    %v2860 = vunpack.c.l.b16 %v1581
    %v2861 = vunpack.c.h.b16 %v1581
    %v2862 = vunpack.c.l.b16 %v1582
    %v2863 = vunpack.c.h.b16 %v1582
    %v2864 = vunpack.c.l.b16 %v1583
    %v2865 = vunpack.c.h.b16 %v1583
    %v2866 = vunpack.c.l.b16 %v1584
    %v2867 = vunpack.c.h.b16 %v1584
    %v2868 = vunpack.c.l.b16 %v1585
    %v2869 = vunpack.c.h.b16 %v1585
    %v2870 = vunpack.c.l.b16 %v1586
    %v2871 = vunpack.c.h.b16 %v1586
    %v2872 = vunpack.c.l.b16 %v1587
    %v2873 = vunpack.c.h.b16 %v1587
    %v2874 = vunpack.c.l.b16 %v1588
    %v2875 = vunpack.c.h.b16 %v1588
    %v2876 = vunpack.c.l.b16 %v1589
    %v2877 = vunpack.c.h.b16 %v1589
    %v2878 = vunpack.c.l.b16 %v1590
    %v2879 = vunpack.c.h.b16 %v1590
    %v2880 = vunpack.c.l.b16 %v1591
    %v2881 = vunpack.c.h.b16 %v1591
    %v2882 = vunpack.c.l.b16 %v1592
    %v2883 = vunpack.c.h.b16 %v1592
    %v2884 = vunpack.c.l.b16 %v1593
    %v2885 = vunpack.c.h.b16 %v1593
    %v2886 = vunpack.c.l.b16 %v1594
    %v2887 = vunpack.c.h.b16 %v1594
    %v2888 = vunpack.c.l.b16 %v1595
    %v2889 = vunpack.c.h.b16 %v1595
    %v2890 = vunpack.c.l.b16 %v1596
    %v2891 = vunpack.c.h.b16 %v1596
    %v2892 = vunpack.c.l.b16 %v1597
    %v2893 = vunpack.c.h.b16 %v1597
    %v2894 = vunpack.c.l.b16 %v1598
    %v2895 = vunpack.c.h.b16 %v1598
    %v2896 = vunpack.c.l.b16 %v1599
    %v2897 = vunpack.c.h.b16 %v1599
    %v2898 = vunpack.c.l.b16 %v1600
    %v2899 = vunpack.c.h.b16 %v1600
    %v2900 = vunpack.c.l.b16 %v1601
    %v2901 = vunpack.c.h.b16 %v1601
    %v2902 = vunpack.c.l.b16 %v1602
    %v2903 = vunpack.c.h.b16 %v1602
    %v2904 = vunpack.c.l.b16 %v1603
    %v2905 = vunpack.c.h.b16 %v1603
    %v2906 = vunpack.c.l.b16 %v1604
    %v2907 = vunpack.c.h.b16 %v1604
    %v2908 = vunpack.c.l.b16 %v1605
    %v2909 = vunpack.c.h.b16 %v1605
    %v2910 = vunpack.c.l.b16 %v1606
    %v2911 = vunpack.c.h.b16 %v1606
    %v2912 = vunpack.c.l.b16 %v1607
    %v2913 = vunpack.c.h.b16 %v1607
    %v2914 = vunpack.c.l.b16 %v1608
    %v2915 = vunpack.c.h.b16 %v1608
    %v2916 = vunpack.c.l.b16 %v1609
    %v2917 = vunpack.c.h.b16 %v1609
    %v2918 = vunpack.c.l.b16 %v1610
    %v2919 = vunpack.c.h.b16 %v1610
    %v2920 = vunpack.c.l.b16 %v1611
    %v2921 = vunpack.c.h.b16 %v1611
    %v2922 = vunpack.c.l.b16 %v1612
    %v2923 = vunpack.c.h.b16 %v1612
    %v2924 = vunpack.c.l.b16 %v1613
    %v2925 = vunpack.c.h.b16 %v1613
    %v2926 = vunpack.c.l.b16 %v1614
    %v2927 = vunpack.c.h.b16 %v1614
    %v2928 = vunpack.c.l.b16 %v1615
    %v2929 = vunpack.c.h.b16 %v1615
    %v2930 = vunpack.c.l.b16 %v1616
    %v2931 = vunpack.c.h.b16 %v1616
    %v2932 = vunpack.c.l.b16 %v1617
    %v2933 = vunpack.c.h.b16 %v1617
    %v2934 = vunpack.c.l.b16 %v1618
    %v2935 = vunpack.c.h.b16 %v1618
    %v2936 = vunpack.c.l.b16 %v1619
    %v2937 = vunpack.c.h.b16 %v1619
    %v2938 = vunpack.c.l.b16 %v1620
    %v2939 = vunpack.c.h.b16 %v1620
    %v2940 = vunpack.c.l.b16 %v1621
    %v2941 = vunpack.c.h.b16 %v1621
    %v2942 = vunpack.c.l.b16 %v1622
    %v2943 = vunpack.c.h.b16 %v1622
    %v2944 = vunpack.c.l.b16 %v1623
    %v2945 = vunpack.c.h.b16 %v1623
    %v2946 = vunpack.c.l.b16 %v1624
    %v2947 = vunpack.c.h.b16 %v1624
    %v2948 = vunpack.c.l.b16 %v1625
    %v2949 = vunpack.c.h.b16 %v1625
    %v2950 = vpack.c.b16 %v2698, %v2694
    %v2951 = vpack.c.b16 %v2699, %v2695
    %v2952 = vpack.c.b16 %v2700, %v2696
    %v2953 = vpack.c.b16 %v2701, %v2697
    %v2954 = vpack.c.b16 %v2706, %v2702
    %v2955 = vpack.c.b16 %v2707, %v2703
    %v2956 = vpack.c.b16 %v2708, %v2704
    %v2957 = vpack.c.b16 %v2709, %v2705
    %v2958 = vpack.c.b16 %v2714, %v2710
    %v2959 = vpack.c.b16 %v2715, %v2711
    %v2960 = vpack.c.b16 %v2716, %v2712
    %v2961 = vpack.c.b16 %v2717, %v2713
    %v2962 = vpack.c.b16 %v2722, %v2718
    %v2963 = vpack.c.b16 %v2723, %v2719
    %v2964 = vpack.c.b16 %v2724, %v2720
    %v2965 = vpack.c.b16 %v2725, %v2721
    %v2966 = vpack.c.b16 %v2730, %v2726
    %v2967 = vpack.c.b16 %v2731, %v2727
    %v2968 = vpack.c.b16 %v2732, %v2728
    %v2969 = vpack.c.b16 %v2733, %v2729
    %v2970 = vpack.c.b16 %v2738, %v2734
    %v2971 = vpack.c.b16 %v2739, %v2735
    %v2972 = vpack.c.b16 %v2740, %v2736
    %v2973 = vpack.c.b16 %v2741, %v2737
    %v2974 = vpack.c.b16 %v2746, %v2742
    %v2975 = vpack.c.b16 %v2747, %v2743
    %v2976 = vpack.c.b16 %v2748, %v2744
    %v2977 = vpack.c.b16 %v2749, %v2745
    %v2978 = vpack.c.b16 %v2754, %v2750
    %v2979 = vpack.c.b16 %v2755, %v2751
    %v2980 = vpack.c.b16 %v2756, %v2752
    %v2981 = vpack.c.b16 %v2757, %v2753
    %v2982 = vpack.c.b16 %v2762, %v2758
    %v2983 = vpack.c.b16 %v2763, %v2759
    %v2984 = vpack.c.b16 %v2764, %v2760
    %v2985 = vpack.c.b16 %v2765, %v2761
    %v2986 = vpack.c.b16 %v2770, %v2766
    %v2987 = vpack.c.b16 %v2771, %v2767
    %v2988 = vpack.c.b16 %v2772, %v2768
    %v2989 = vpack.c.b16 %v2773, %v2769
    %v2990 = vpack.c.b16 %v2778, %v2774
    %v2991 = vpack.c.b16 %v2779, %v2775
    %v2992 = vpack.c.b16 %v2780, %v2776
    %v2993 = vpack.c.b16 %v2781, %v2777
    %v2994 = vpack.c.b16 %v2786, %v2782
    %v2995 = vpack.c.b16 %v2787, %v2783
    %v2996 = vpack.c.b16 %v2788, %v2784
    %v2997 = vpack.c.b16 %v2789, %v2785
    %v2998 = vpack.c.b16 %v2794, %v2790
    %v2999 = vpack.c.b16 %v2795, %v2791
    %v3000 = vpack.c.b16 %v2796, %v2792
    %v3001 = vpack.c.b16 %v2797, %v2793
    %v3002 = vpack.c.b16 %v2802, %v2798
    %v3003 = vpack.c.b16 %v2803, %v2799
    %v3004 = vpack.c.b16 %v2804, %v2800
    %v3005 = vpack.c.b16 %v2805, %v2801
    %v3006 = vpack.c.b16 %v2810, %v2806
    %v3007 = vpack.c.b16 %v2811, %v2807
    %v3008 = vpack.c.b16 %v2812, %v2808
    %v3009 = vpack.c.b16 %v2813, %v2809
    %v3010 = vpack.c.b16 %v2818, %v2814
    %v3011 = vpack.c.b16 %v2819, %v2815
    %v3012 = vpack.c.b16 %v2820, %v2816
    %v3013 = vpack.c.b16 %v2821, %v2817
    %v3014 = vpack.c.b16 %v2826, %v2822
    %v3015 = vpack.c.b16 %v2827, %v2823
    %v3016 = vpack.c.b16 %v2828, %v2824
    %v3017 = vpack.c.b16 %v2829, %v2825
    %v3018 = vpack.c.b16 %v2834, %v2830
    %v3019 = vpack.c.b16 %v2835, %v2831
    %v3020 = vpack.c.b16 %v2836, %v2832
    %v3021 = vpack.c.b16 %v2837, %v2833
    %v3022 = vpack.c.b16 %v2842, %v2838
    %v3023 = vpack.c.b16 %v2843, %v2839
    %v3024 = vpack.c.b16 %v2844, %v2840
    %v3025 = vpack.c.b16 %v2845, %v2841
    %v3026 = vpack.c.b16 %v2850, %v2846
    %v3027 = vpack.c.b16 %v2851, %v2847
    %v3028 = vpack.c.b16 %v2852, %v2848
    %v3029 = vpack.c.b16 %v2853, %v2849
    %v3030 = vpack.c.b16 %v2858, %v2854
    %v3031 = vpack.c.b16 %v2859, %v2855
    %v3032 = vpack.c.b16 %v2860, %v2856
    %v3033 = vpack.c.b16 %v2861, %v2857
    %v3034 = vpack.c.b16 %v2866, %v2862
    %v3035 = vpack.c.b16 %v2867, %v2863
    %v3036 = vpack.c.b16 %v2868, %v2864
    %v3037 = vpack.c.b16 %v2869, %v2865
    %v3038 = vpack.c.b16 %v2874, %v2870
    %v3039 = vpack.c.b16 %v2875, %v2871
    %v3040 = vpack.c.b16 %v2876, %v2872
    %v3041 = vpack.c.b16 %v2877, %v2873
    %v3042 = vpack.c.b16 %v2882, %v2878
    %v3043 = vpack.c.b16 %v2883, %v2879
    %v3044 = vpack.c.b16 %v2884, %v2880
    %v3045 = vpack.c.b16 %v2885, %v2881
    %v3046 = vpack.c.b16 %v2890, %v2886
    %v3047 = vpack.c.b16 %v2891, %v2887
    %v3048 = vpack.c.b16 %v2892, %v2888
    %v3049 = vpack.c.b16 %v2893, %v2889
    %v3050 = vpack.c.b16 %v2898, %v2894
    %v3051 = vpack.c.b16 %v2899, %v2895
    %v3052 = vpack.c.b16 %v2900, %v2896
    %v3053 = vpack.c.b16 %v2901, %v2897
    %v3054 = vpack.c.b16 %v2906, %v2902
    %v3055 = vpack.c.b16 %v2907, %v2903
    %v3056 = vpack.c.b16 %v2908, %v2904
    %v3057 = vpack.c.b16 %v2909, %v2905
    %v3058 = vpack.c.b16 %v2914, %v2910
    %v3059 = vpack.c.b16 %v2915, %v2911
    %v3060 = vpack.c.b16 %v2916, %v2912
    %v3061 = vpack.c.b16 %v2917, %v2913
    %v3062 = vpack.c.b16 %v2922, %v2918
    %v3063 = vpack.c.b16 %v2923, %v2919
    %v3064 = vpack.c.b16 %v2924, %v2920
    %v3065 = vpack.c.b16 %v2925, %v2921
    %v3066 = vpack.c.b16 %v2930, %v2926
    %v3067 = vpack.c.b16 %v2931, %v2927
    %v3068 = vpack.c.b16 %v2932, %v2928
    %v3069 = vpack.c.b16 %v2933, %v2929
    %v3070 = vpack.c.b16 %v2938, %v2934
    %v3071 = vpack.c.b16 %v2939, %v2935
    %v3072 = vpack.c.b16 %v2940, %v2936
    %v3073 = vpack.c.b16 %v2941, %v2937
    %v3074 = vpack.c.b16 %v2946, %v2942
    %v3075 = vpack.c.b16 %v2947, %v2943
    %v3076 = vpack.c.b16 %v2948, %v2944
    %v3077 = vpack.c.b16 %v2949, %v2945
    %3206 = vmatprep.subr.bf16.mxu0 %v2951
    %3207 = vmatpush1.bf16.msra.mxu0 %v2950
    %3208 = vmatprep.subr.bf16.mxu0 %v2955
    %3209 = vmatpush1.bf16.msra.mxu0 %v2954
    %3210 = vmatprep.subr.bf16.mxu0 %v2959
    %3211 = vmatpush1.bf16.msra.mxu0 %v2958
    %3212 = vmatprep.subr.bf16.mxu0 %v2963
    %3213 = vmatpush1.bf16.msra.mxu0 %v2962
    %3214 = vmatprep.subr.bf16.mxu0 %v2967
    %3215 = vmatpush1.bf16.msra.mxu0 %v2966
    %3216 = vmatprep.subr.bf16.mxu0 %v2971
    %3217 = vmatpush1.bf16.msra.mxu0 %v2970
    %3218 = vmatprep.subr.bf16.mxu0 %v2975
    %3219 = vmatpush1.bf16.msra.mxu0 %v2974
    %3220 = vmatprep.subr.bf16.mxu0 %v2979
    %3221 = vmatpush1.bf16.msra.mxu0 %v2978
    %3222 = vmatprep.subr.bf16.mxu0 %v2983
    %3223 = vmatpush1.bf16.msra.mxu0 %v2982
    %3224 = vmatprep.subr.bf16.mxu0 %v2987
    %3225 = vmatpush1.bf16.msra.mxu0 %v2986
    %3226 = vmatprep.subr.bf16.mxu0 %v2991
    %3227 = vmatpush1.bf16.msra.mxu0 %v2990
    %3228 = vmatprep.subr.bf16.mxu0 %v2995
    %3229 = vmatpush1.bf16.msra.mxu0 %v2994
    %3230 = vmatprep.subr.bf16.mxu0 %v2999
    %3231 = vmatpush1.bf16.msra.mxu0 %v2998
    %3232 = vmatprep.subr.bf16.mxu0 %v3003
    %3233 = vmatpush1.bf16.msra.mxu0 %v3002
    %3234 = vmatprep.subr.bf16.mxu0 %v3007
    %3235 = vmatpush1.bf16.msra.mxu0 %v3006
    %3236 = vmatprep.subr.bf16.mxu0 %v3011
    %3237 = vmatpush1.bf16.msra.mxu0 %v3010
    %3238 = vmatprep.mubr.bf16.mxu0 %v990
    %3239 = vmatmul.mubr.bf16.gmra.mrb[0].mxu0 %v989
    %v3240 = vpop.f32.mrb[0].mxu0
    %v3241 = vadd.f32 %v2472, %v3240
    %v3242 = vpop.f32.mrb[0].mxu0
    %v3243 = vadd.f32 %v2474, %v3242
    %v3244 = vpop.f32.mrb[0].mxu0
    %v3245 = vadd.f32 %v2476, %v3244
    %v3246 = vpop.f32.mrb[0].mxu0
    %v3247 = vadd.f32 %v2478, %v3246
    %3248 = vdwg.mxu0
    %3249 = vmatprep.subr.bf16.mxu0 %v3015
    %3250 = vmatpush1.bf16.msra.mxu0 %v3014
    %3251 = vmatprep.subr.bf16.mxu0 %v3019
    %3252 = vmatpush1.bf16.msra.mxu0 %v3018
    %3253 = vmatprep.subr.bf16.mxu0 %v3023
    %3254 = vmatpush1.bf16.msra.mxu0 %v3022
    %3255 = vmatprep.subr.bf16.mxu0 %v3027
    %3256 = vmatpush1.bf16.msra.mxu0 %v3026
    %3257 = vmatprep.subr.bf16.mxu0 %v3031
    %3258 = vmatpush1.bf16.msra.mxu0 %v3030
    %3259 = vmatprep.subr.bf16.mxu0 %v3035
    %3260 = vmatpush1.bf16.msra.mxu0 %v3034
    %3261 = vmatprep.subr.bf16.mxu0 %v3039
    %3262 = vmatpush1.bf16.msra.mxu0 %v3038
    %3263 = vmatprep.subr.bf16.mxu0 %v3043
    %3264 = vmatpush1.bf16.msra.mxu0 %v3042
    %3265 = vmatprep.subr.bf16.mxu0 %v3047
    %3266 = vmatpush1.bf16.msra.mxu0 %v3046
    %3267 = vmatprep.subr.bf16.mxu0 %v3051
    %3268 = vmatpush1.bf16.msra.mxu0 %v3050
    %3269 = vmatprep.subr.bf16.mxu0 %v3055
    %3270 = vmatpush1.bf16.msra.mxu0 %v3054
    %3271 = vmatprep.subr.bf16.mxu0 %v3059
    %3272 = vmatpush1.bf16.msra.mxu0 %v3058
    %3273 = vmatprep.subr.bf16.mxu0 %v3063
    %3274 = vmatpush1.bf16.msra.mxu0 %v3062
    %3275 = vmatprep.subr.bf16.mxu0 %v3067
    %3276 = vmatpush1.bf16.msra.mxu0 %v3066
    %3277 = vmatprep.subr.bf16.mxu0 %v3071
    %3278 = vmatpush1.bf16.msra.mxu0 %v3070
    %3279 = vmatprep.subr.bf16.mxu0 %v3075
    %3280 = vmatpush1.bf16.msra.mxu0 %v3074
    %3281 = vmatprep.mubr.bf16.mxu0 %v992
    %3282 = vmatmul.mubr.bf16.gmra.mrb[0].mxu0 %v991
    %v3283 = vpop.f32.mrb[0].mxu0
    %v3284 = vadd.f32 %v3241, %v3283
    %v3285 = vpop.f32.mrb[0].mxu0
    %v3286 = vadd.f32 %v3243, %v3285
    %v3287 = vpop.f32.mrb[0].mxu0
    %v3288 = vadd.f32 %v3245, %v3287
    %v3289 = vpop.f32.mrb[0].mxu0
    %v3290 = vadd.f32 %v3247, %v3289
    %3291 = vdwg.mxu0
    %3292 = vmatprep.subr.bf16.mxu0 %v2953
    %3293 = vmatpush1.bf16.msra.mxu0 %v2952
    %3294 = vmatprep.subr.bf16.mxu0 %v2957
    %3295 = vmatpush1.bf16.msra.mxu0 %v2956
    %3296 = vmatprep.subr.bf16.mxu0 %v2961
    %3297 = vmatpush1.bf16.msra.mxu0 %v2960
    %3298 = vmatprep.subr.bf16.mxu0 %v2965
    %3299 = vmatpush1.bf16.msra.mxu0 %v2964
    %3300 = vmatprep.subr.bf16.mxu0 %v2969
    %3301 = vmatpush1.bf16.msra.mxu0 %v2968
    %3302 = vmatprep.subr.bf16.mxu0 %v2973
    %3303 = vmatpush1.bf16.msra.mxu0 %v2972
    %3304 = vmatprep.subr.bf16.mxu0 %v2977
    %3305 = vmatpush1.bf16.msra.mxu0 %v2976
    %3306 = vmatprep.subr.bf16.mxu0 %v2981
    %3307 = vmatpush1.bf16.msra.mxu0 %v2980
    %3308 = vmatprep.subr.bf16.mxu0 %v2985
    %3309 = vmatpush1.bf16.msra.mxu0 %v2984
    %3310 = vmatprep.subr.bf16.mxu0 %v2989
    %3311 = vmatpush1.bf16.msra.mxu0 %v2988
    %3312 = vmatprep.subr.bf16.mxu0 %v2993
    %3313 = vmatpush1.bf16.msra.mxu0 %v2992
    %3314 = vmatprep.subr.bf16.mxu0 %v2997
    %3315 = vmatpush1.bf16.msra.mxu0 %v2996
    %3316 = vmatprep.subr.bf16.mxu0 %v3001
    %3317 = vmatpush1.bf16.msra.mxu0 %v3000
    %3318 = vmatprep.subr.bf16.mxu0 %v3005
    %3319 = vmatpush1.bf16.msra.mxu0 %v3004
    %3320 = vmatprep.subr.bf16.mxu0 %v3009
    %3321 = vmatpush1.bf16.msra.mxu0 %v3008
    %3322 = vmatprep.subr.bf16.mxu0 %v3013
    %3323 = vmatpush1.bf16.msra.mxu0 %v3012
    %3324 = vmatprep.mubr.bf16.mxu0 %v990
    %3325 = vmatmul.mubr.bf16.gmra.mrb[0].mxu0 %v989
    %v3326 = vpop.f32.mrb[0].mxu0
    %v3327 = vadd.f32 %v2558, %v3326
    %v3328 = vpop.f32.mrb[0].mxu0
    %v3329 = vadd.f32 %v2560, %v3328
    %v3330 = vpop.f32.mrb[0].mxu0
    %v3331 = vadd.f32 %v2562, %v3330
    %v3332 = vpop.f32.mrb[0].mxu0
    %v3333 = vadd.f32 %v2564, %v3332
    %3334 = vdwg.mxu0
    %3335 = vmatprep.subr.bf16.mxu0 %v3017
    %3336 = vmatpush1.bf16.msra.mxu0 %v3016
    %3337 = vmatprep.subr.bf16.mxu0 %v3021
    %3338 = vmatpush1.bf16.msra.mxu0 %v3020
    %3339 = vmatprep.subr.bf16.mxu0 %v3025
    %3340 = vmatpush1.bf16.msra.mxu0 %v3024
    %3341 = vmatprep.subr.bf16.mxu0 %v3029
    %3342 = vmatpush1.bf16.msra.mxu0 %v3028
    %3343 = vmatprep.subr.bf16.mxu0 %v3033
    %3344 = vmatpush1.bf16.msra.mxu0 %v3032
    %3345 = vmatprep.subr.bf16.mxu0 %v3037
    %3346 = vmatpush1.bf16.msra.mxu0 %v3036
    %3347 = vmatprep.subr.bf16.mxu0 %v3041
    %3348 = vmatpush1.bf16.msra.mxu0 %v3040
    %3349 = vmatprep.subr.bf16.mxu0 %v3045
    %3350 = vmatpush1.bf16.msra.mxu0 %v3044
    %3351 = vmatprep.subr.bf16.mxu0 %v3049
    %3352 = vmatpush1.bf16.msra.mxu0 %v3048
    %3353 = vmatprep.subr.bf16.mxu0 %v3053
    %3354 = vmatpush1.bf16.msra.mxu0 %v3052
    %3355 = vmatprep.subr.bf16.mxu0 %v3057
    %3356 = vmatpush1.bf16.msra.mxu0 %v3056
    %3357 = vmatprep.subr.bf16.mxu0 %v3061
    %3358 = vmatpush1.bf16.msra.mxu0 %v3060
    %3359 = vmatprep.subr.bf16.mxu0 %v3065
    %3360 = vmatpush1.bf16.msra.mxu0 %v3064
    %3361 = vmatprep.subr.bf16.mxu0 %v3069
    %3362 = vmatpush1.bf16.msra.mxu0 %v3068
    %3363 = vmatprep.subr.bf16.mxu0 %v3073
    %3364 = vmatpush1.bf16.msra.mxu0 %v3072
    %3365 = vmatprep.subr.bf16.mxu0 %v3077
    %3366 = vmatpush1.bf16.msra.mxu0 %v3076
    %3367 = vmatprep.mubr.bf16.mxu0 %v992
    %3368 = vmatmul.mubr.bf16.gmra.mrb[0].mxu0 %v991
    %v3369 = vpop.f32.mrb[0].mxu0
    %v3370 = vadd.f32 %v3327, %v3369
    %v3371 = vpop.f32.mrb[0].mxu0
    %v3372 = vadd.f32 %v3329, %v3371
    %v3373 = vpop.f32.mrb[0].mxu0
    %v3374 = vadd.f32 %v3331, %v3373
    %v3375 = vpop.f32.mrb[0].mxu0
    %v3376 = vadd.f32 %v3333, %v3375
    %3377 = vdwg.mxu0
    %s3378 = scalar_lea.vmem [#allocation10], 5
    %v3379 = vld [vmem:[%s3378] ss:$8 sm:$0xf]
    %v3381 = vlaneseq
    %v3382 = vshrl.u32 %v3381, 7
    %v3383 = vsub.s32 0, %v3382
    %v3384 = vrot.slane %v3379, %v3383
    %v3385 = vlaneseq
    %v3386 = vshrl.u32 %v3385, 7
    %v3387 = vsub.s32 1, %v3386
    %v3388 = vrot.slane %v3379, %v3387
    %v3389 = vlaneseq
    %v3390 = vshrl.u32 %v3389, 7
    %v3391 = vsub.s32 2, %v3390
    %v3392 = vrot.slane %v3379, %v3391
    %v3393 = vlaneseq
    %v3394 = vshrl.u32 %v3393, 7
    %v3395 = vsub.s32 3, %v3394
    %v3396 = vrot.slane %v3379, %v3395
    %v3401 = vadd.f32 %v3284, %v3384
    %v3402 = vadd.f32 %v3286, %v3388
    %v3403 = vadd.f32 %v3370, %v3392
    %v3404 = vadd.f32 %v3372, %v3396
    %v3405 = vadd.f32 %v3288, %v3384
    %v3406 = vadd.f32 %v3290, %v3388
    %v3407 = vadd.f32 %v3374, %v3392
    %v3408 = vadd.f32 %v3376, %v3396
    %v3409 = vmax.f32 %v3401, 0.0
    %v3410 = vmax.f32 %v3402, 0.0
    %v3411 = vmax.f32 %v3403, 0.0
    %v3412 = vmax.f32 %v3404, 0.0
    %v3413 = vmax.f32 %v3405, 0.0
    %v3414 = vmax.f32 %v3406, 0.0
    %v3415 = vmax.f32 %v3407, 0.0
    %v3416 = vmax.f32 %v3408, 0.0
    %v3417 = vpack.c.bf16 %v3413, %v3409
    %v3418 = vpack.c.bf16 %v3414, %v3410
    %v3419 = vpack.c.bf16 %v3415, %v3411
    %v3420 = vpack.c.bf16 %v3416, %v3412
    %v3421 = vld [vmem:[#allocation5 + $0x110] sm:$0xff]
    %v3422 = vld [vmem:[#allocation5 + $0x118] sm:$0xff]
    %v3423 = vld [vmem:[#allocation5 + $0x120] sm:$0xff]
    %v3424 = vld [vmem:[#allocation5 + $0x128] sm:$0xff]
    %v3425 = vld [vmem:[#allocation5 + $0x130] sm:$0xff]
    %v3426 = vld [vmem:[#allocation5 + $0x138] sm:$0xff]
    %v3427 = vld [vmem:[#allocation5 + $0x140] sm:$0xff]
    %v3428 = vld [vmem:[#allocation5 + $0x148] sm:$0xff]
    %v3429 = vld [vmem:[#allocation5 + $0x150] sm:$0xff]
    %v3430 = vld [vmem:[#allocation5 + $0x158] sm:$0xff]
    %v3431 = vld [vmem:[#allocation5 + $0x160] sm:$0xff]
    %v3432 = vld [vmem:[#allocation5 + $0x168] sm:$0xff]
    %v3433 = vld [vmem:[#allocation5 + $0x170] sm:$0xff]
    %v3434 = vld [vmem:[#allocation5 + $0x178] sm:$0xff]
    %v3435 = vld [vmem:[#allocation5 + $0x180] sm:$0xff]
    %v3436 = vld [vmem:[#allocation5 + $0x188] sm:$0xff]
    %v3437 = vld [vmem:[#allocation5 + $0x190] sm:$0xff]
    %v3438 = vld [vmem:[#allocation5 + $0x198] sm:$0xff]
    %v3439 = vld [vmem:[#allocation5 + $0x1a0] sm:$0xff]
    %v3440 = vld [vmem:[#allocation5 + $0x1a8] sm:$0xff]
    %v3441 = vld [vmem:[#allocation5 + $0x1b0] sm:$0xff]
    %v3442 = vld [vmem:[#allocation5 + $0x1b8] sm:$0xff]
    %v3443 = vld [vmem:[#allocation5 + $0x1c0] sm:$0xff]
    %v3444 = vld [vmem:[#allocation5 + $0x1c8] sm:$0xff]
    %v3445 = vld [vmem:[#allocation5 + $0x1d0] sm:$0xff]
    %v3446 = vld [vmem:[#allocation5 + $0x1d8] sm:$0xff]
    %v3447 = vld [vmem:[#allocation5 + $0x1e0] sm:$0xff]
    %v3448 = vld [vmem:[#allocation5 + $0x1e8] sm:$0xff]
    %v3449 = vld [vmem:[#allocation5 + $0x1f0] sm:$0xff]
    %v3450 = vld [vmem:[#allocation5 + $0x1f8] sm:$0xff]
    %v3451 = vld [vmem:[#allocation5 + $0x200] sm:$0xff]
    %v3452 = vld [vmem:[#allocation5 + $0x208] sm:$0xff]
    %v3453 = vld [vmem:[#allocation5 + $0x210] sm:$0xff]
    %v3454 = vld [vmem:[#allocation5 + $0x218] sm:$0xff]
    %v3455 = vld [vmem:[#allocation5 + $0x220] sm:$0xff]
    %v3456 = vld [vmem:[#allocation5 + $0x228] sm:$0xff]
    %v3457 = vld [vmem:[#allocation5 + $0x230] sm:$0xff]
    %v3458 = vld [vmem:[#allocation5 + $0x238] sm:$0xff]
    %v3459 = vld [vmem:[#allocation5 + $0x240] sm:$0xff]
    %v3460 = vld [vmem:[#allocation5 + $0x248] sm:$0xff]
    %v3461 = vld [vmem:[#allocation5 + $0x250] sm:$0xff]
    %v3462 = vld [vmem:[#allocation5 + $0x258] sm:$0xff]
    %v3463 = vld [vmem:[#allocation5 + $0x260] sm:$0xff]
    %v3464 = vld [vmem:[#allocation5 + $0x268] sm:$0xff]
    %v3465 = vld [vmem:[#allocation5 + $0x270] sm:$0xff]
    %v3466 = vld [vmem:[#allocation5 + $0x278] sm:$0xff]
    %v3467 = vld [vmem:[#allocation5 + $0x280] sm:$0xff]
    %v3468 = vld [vmem:[#allocation5 + $0x288] sm:$0xff]
    %v3469 = vld [vmem:[#allocation5 + $0x290] sm:$0xff]
    %v3470 = vld [vmem:[#allocation5 + $0x298] sm:$0xff]
    %v3471 = vld [vmem:[#allocation5 + $0x2a0] sm:$0xff]
    %v3472 = vld [vmem:[#allocation5 + $0x2a8] sm:$0xff]
    %v3473 = vld [vmem:[#allocation5 + $0x2b0] sm:$0xff]
    %v3474 = vld [vmem:[#allocation5 + $0x2b8] sm:$0xff]
    %v3475 = vld [vmem:[#allocation5 + $0x2c0] sm:$0xff]
    %v3476 = vld [vmem:[#allocation5 + $0x2c8] sm:$0xff]
    %v3477 = vld [vmem:[#allocation5 + $0x2d0] sm:$0xff]
    %v3478 = vld [vmem:[#allocation5 + $0x2d8] sm:$0xff]
    %v3479 = vld [vmem:[#allocation5 + $0x2e0] sm:$0xff]
    %v3480 = vld [vmem:[#allocation5 + $0x2e8] sm:$0xff]
    %v3481 = vld [vmem:[#allocation5 + $0x2f0] sm:$0xff]
    %v3482 = vld [vmem:[#allocation5 + $0x2f8] sm:$0xff]
    %v3483 = vld [vmem:[#allocation5 + $0x300] sm:$0xff]
    %v3484 = vld [vmem:[#allocation5 + $0x308] sm:$0xff]
    %s3485 = scalar_lea.vmem [#allocation10], 6
    %v3486 = vld [vmem:[%s3485] ss:$8 sm:$0x3]
    %v3488 = vlaneseq
    %v3489 = vshrl.u32 %v3488, 7
    %v3490 = vsub.s32 0, %v3489
    %v3491 = vrot.slane %v3486, %v3490
    %v3492 = vlaneseq
    %v3493 = vshrl.u32 %v3492, 7
    %v3494 = vsub.s32 1, %v3493
    %v3495 = vrot.slane %v3486, %v3494
    %v3562 = vunpack.c.l.b16 %v3421
    %v3563 = vunpack.c.h.b16 %v3421
    %v3564 = vunpack.c.l.b16 %v3422
    %v3565 = vunpack.c.h.b16 %v3422
    %v3566 = vunpack.c.l.b16 %v3423
    %v3567 = vunpack.c.h.b16 %v3423
    %v3568 = vunpack.c.l.b16 %v3424
    %v3569 = vunpack.c.h.b16 %v3424
    %v3570 = vunpack.c.l.b16 %v3425
    %v3571 = vunpack.c.h.b16 %v3425
    %v3572 = vunpack.c.l.b16 %v3426
    %v3573 = vunpack.c.h.b16 %v3426
    %v3574 = vunpack.c.l.b16 %v3427
    %v3575 = vunpack.c.h.b16 %v3427
    %v3576 = vunpack.c.l.b16 %v3428
    %v3577 = vunpack.c.h.b16 %v3428
    %v3578 = vunpack.c.l.b16 %v3429
    %v3579 = vunpack.c.h.b16 %v3429
    %v3580 = vunpack.c.l.b16 %v3430
    %v3581 = vunpack.c.h.b16 %v3430
    %v3582 = vunpack.c.l.b16 %v3431
    %v3583 = vunpack.c.h.b16 %v3431
    %v3584 = vunpack.c.l.b16 %v3432
    %v3585 = vunpack.c.h.b16 %v3432
    %v3586 = vunpack.c.l.b16 %v3433
    %v3587 = vunpack.c.h.b16 %v3433
    %v3588 = vunpack.c.l.b16 %v3434
    %v3589 = vunpack.c.h.b16 %v3434
    %v3590 = vunpack.c.l.b16 %v3435
    %v3591 = vunpack.c.h.b16 %v3435
    %v3592 = vunpack.c.l.b16 %v3436
    %v3593 = vunpack.c.h.b16 %v3436
    %v3594 = vunpack.c.l.b16 %v3437
    %v3595 = vunpack.c.h.b16 %v3437
    %v3596 = vunpack.c.l.b16 %v3438
    %v3597 = vunpack.c.h.b16 %v3438
    %v3598 = vunpack.c.l.b16 %v3439
    %v3599 = vunpack.c.h.b16 %v3439
    %v3600 = vunpack.c.l.b16 %v3440
    %v3601 = vunpack.c.h.b16 %v3440
    %v3602 = vunpack.c.l.b16 %v3441
    %v3603 = vunpack.c.h.b16 %v3441
    %v3604 = vunpack.c.l.b16 %v3442
    %v3605 = vunpack.c.h.b16 %v3442
    %v3606 = vunpack.c.l.b16 %v3443
    %v3607 = vunpack.c.h.b16 %v3443
    %v3608 = vunpack.c.l.b16 %v3444
    %v3609 = vunpack.c.h.b16 %v3444
    %v3610 = vunpack.c.l.b16 %v3445
    %v3611 = vunpack.c.h.b16 %v3445
    %v3612 = vunpack.c.l.b16 %v3446
    %v3613 = vunpack.c.h.b16 %v3446
    %v3614 = vunpack.c.l.b16 %v3447
    %v3615 = vunpack.c.h.b16 %v3447
    %v3616 = vunpack.c.l.b16 %v3448
    %v3617 = vunpack.c.h.b16 %v3448
    %v3618 = vunpack.c.l.b16 %v3449
    %v3619 = vunpack.c.h.b16 %v3449
    %v3620 = vunpack.c.l.b16 %v3450
    %v3621 = vunpack.c.h.b16 %v3450
    %v3622 = vunpack.c.l.b16 %v3451
    %v3623 = vunpack.c.h.b16 %v3451
    %v3624 = vunpack.c.l.b16 %v3452
    %v3625 = vunpack.c.h.b16 %v3452
    %v3626 = vunpack.c.l.b16 %v3453
    %v3627 = vunpack.c.h.b16 %v3453
    %v3628 = vunpack.c.l.b16 %v3454
    %v3629 = vunpack.c.h.b16 %v3454
    %v3630 = vunpack.c.l.b16 %v3455
    %v3631 = vunpack.c.h.b16 %v3455
    %v3632 = vunpack.c.l.b16 %v3456
    %v3633 = vunpack.c.h.b16 %v3456
    %v3634 = vunpack.c.l.b16 %v3457
    %v3635 = vunpack.c.h.b16 %v3457
    %v3636 = vunpack.c.l.b16 %v3458
    %v3637 = vunpack.c.h.b16 %v3458
    %v3638 = vunpack.c.l.b16 %v3459
    %v3639 = vunpack.c.h.b16 %v3459
    %v3640 = vunpack.c.l.b16 %v3460
    %v3641 = vunpack.c.h.b16 %v3460
    %v3642 = vunpack.c.l.b16 %v3461
    %v3643 = vunpack.c.h.b16 %v3461
    %v3644 = vunpack.c.l.b16 %v3462
    %v3645 = vunpack.c.h.b16 %v3462
    %v3646 = vunpack.c.l.b16 %v3463
    %v3647 = vunpack.c.h.b16 %v3463
    %v3648 = vunpack.c.l.b16 %v3464
    %v3649 = vunpack.c.h.b16 %v3464
    %v3650 = vunpack.c.l.b16 %v3465
    %v3651 = vunpack.c.h.b16 %v3465
    %v3652 = vunpack.c.l.b16 %v3466
    %v3653 = vunpack.c.h.b16 %v3466
    %v3654 = vunpack.c.l.b16 %v3467
    %v3655 = vunpack.c.h.b16 %v3467
    %v3656 = vunpack.c.l.b16 %v3468
    %v3657 = vunpack.c.h.b16 %v3468
    %v3658 = vunpack.c.l.b16 %v3469
    %v3659 = vunpack.c.h.b16 %v3469
    %v3660 = vunpack.c.l.b16 %v3470
    %v3661 = vunpack.c.h.b16 %v3470
    %v3662 = vunpack.c.l.b16 %v3471
    %v3663 = vunpack.c.h.b16 %v3471
    %v3664 = vunpack.c.l.b16 %v3472
    %v3665 = vunpack.c.h.b16 %v3472
    %v3666 = vunpack.c.l.b16 %v3473
    %v3667 = vunpack.c.h.b16 %v3473
    %v3668 = vunpack.c.l.b16 %v3474
    %v3669 = vunpack.c.h.b16 %v3474
    %v3670 = vunpack.c.l.b16 %v3475
    %v3671 = vunpack.c.h.b16 %v3475
    %v3672 = vunpack.c.l.b16 %v3476
    %v3673 = vunpack.c.h.b16 %v3476
    %v3674 = vunpack.c.l.b16 %v3477
    %v3675 = vunpack.c.h.b16 %v3477
    %v3676 = vunpack.c.l.b16 %v3478
    %v3677 = vunpack.c.h.b16 %v3478
    %v3678 = vunpack.c.l.b16 %v3479
    %v3679 = vunpack.c.h.b16 %v3479
    %v3680 = vunpack.c.l.b16 %v3480
    %v3681 = vunpack.c.h.b16 %v3480
    %v3682 = vunpack.c.l.b16 %v3481
    %v3683 = vunpack.c.h.b16 %v3481
    %v3684 = vunpack.c.l.b16 %v3482
    %v3685 = vunpack.c.h.b16 %v3482
    %v3686 = vunpack.c.l.b16 %v3483
    %v3687 = vunpack.c.h.b16 %v3483
    %v3688 = vunpack.c.l.b16 %v3484
    %v3689 = vunpack.c.h.b16 %v3484
    %v3690 = vpack.c.b16 %v3564, %v3562
    %v3691 = vpack.c.b16 %v3565, %v3563
    %v3692 = vpack.c.b16 %v3568, %v3566
    %v3693 = vpack.c.b16 %v3569, %v3567
    %v3694 = vpack.c.b16 %v3572, %v3570
    %v3695 = vpack.c.b16 %v3573, %v3571
    %v3696 = vpack.c.b16 %v3576, %v3574
    %v3697 = vpack.c.b16 %v3577, %v3575
    %v3698 = vpack.c.b16 %v3580, %v3578
    %v3699 = vpack.c.b16 %v3581, %v3579
    %v3700 = vpack.c.b16 %v3584, %v3582
    %v3701 = vpack.c.b16 %v3585, %v3583
    %v3702 = vpack.c.b16 %v3588, %v3586
    %v3703 = vpack.c.b16 %v3589, %v3587
    %v3704 = vpack.c.b16 %v3592, %v3590
    %v3705 = vpack.c.b16 %v3593, %v3591
    %v3706 = vpack.c.b16 %v3596, %v3594
    %v3707 = vpack.c.b16 %v3597, %v3595
    %v3708 = vpack.c.b16 %v3600, %v3598
    %v3709 = vpack.c.b16 %v3601, %v3599
    %v3710 = vpack.c.b16 %v3604, %v3602
    %v3711 = vpack.c.b16 %v3605, %v3603
    %v3712 = vpack.c.b16 %v3608, %v3606
    %v3713 = vpack.c.b16 %v3609, %v3607
    %v3714 = vpack.c.b16 %v3612, %v3610
    %v3715 = vpack.c.b16 %v3613, %v3611
    %v3716 = vpack.c.b16 %v3616, %v3614
    %v3717 = vpack.c.b16 %v3617, %v3615
    %v3718 = vpack.c.b16 %v3620, %v3618
    %v3719 = vpack.c.b16 %v3621, %v3619
    %v3720 = vpack.c.b16 %v3624, %v3622
    %v3721 = vpack.c.b16 %v3625, %v3623
    %v3722 = vpack.c.b16 %v3628, %v3626
    %v3723 = vpack.c.b16 %v3629, %v3627
    %v3724 = vpack.c.b16 %v3632, %v3630
    %v3725 = vpack.c.b16 %v3633, %v3631
    %v3726 = vpack.c.b16 %v3636, %v3634
    %v3727 = vpack.c.b16 %v3637, %v3635
    %v3728 = vpack.c.b16 %v3640, %v3638
    %v3729 = vpack.c.b16 %v3641, %v3639
    %v3730 = vpack.c.b16 %v3644, %v3642
    %v3731 = vpack.c.b16 %v3645, %v3643
    %v3732 = vpack.c.b16 %v3648, %v3646
    %v3733 = vpack.c.b16 %v3649, %v3647
    %v3734 = vpack.c.b16 %v3652, %v3650
    %v3735 = vpack.c.b16 %v3653, %v3651
    %v3736 = vpack.c.b16 %v3656, %v3654
    %v3737 = vpack.c.b16 %v3657, %v3655
    %v3738 = vpack.c.b16 %v3660, %v3658
    %v3739 = vpack.c.b16 %v3661, %v3659
    %v3740 = vpack.c.b16 %v3664, %v3662
    %v3741 = vpack.c.b16 %v3665, %v3663
    %v3742 = vpack.c.b16 %v3668, %v3666
    %v3743 = vpack.c.b16 %v3669, %v3667
    %v3744 = vpack.c.b16 %v3672, %v3670
    %v3745 = vpack.c.b16 %v3673, %v3671
    %v3746 = vpack.c.b16 %v3676, %v3674
    %v3747 = vpack.c.b16 %v3677, %v3675
    %v3748 = vpack.c.b16 %v3680, %v3678
    %v3749 = vpack.c.b16 %v3681, %v3679
    %v3750 = vpack.c.b16 %v3684, %v3682
    %v3751 = vpack.c.b16 %v3685, %v3683
    %v3752 = vpack.c.b16 %v3688, %v3686
    %v3753 = vpack.c.b16 %v3689, %v3687
    %3818 = vmatprep.subr.bf16.mxu0 %v3691
    %3819 = vmatpush1.bf16.msra.mxu0 %v3690
    %3820 = vmatprep.subr.bf16.mxu0 %v3693
    %3821 = vmatpush1.bf16.msra.mxu0 %v3692
    %3822 = vmatprep.subr.bf16.mxu0 %v3695
    %3823 = vmatpush1.bf16.msra.mxu0 %v3694
    %3824 = vmatprep.subr.bf16.mxu0 %v3697
    %3825 = vmatpush1.bf16.msra.mxu0 %v3696
    %3826 = vmatprep.subr.bf16.mxu0 %v3699
    %3827 = vmatpush1.bf16.msra.mxu0 %v3698
    %3828 = vmatprep.subr.bf16.mxu0 %v3701
    %3829 = vmatpush1.bf16.msra.mxu0 %v3700
    %3830 = vmatprep.subr.bf16.mxu0 %v3703
    %3831 = vmatpush1.bf16.msra.mxu0 %v3702
    %3832 = vmatprep.subr.bf16.mxu0 %v3705
    %3833 = vmatpush1.bf16.msra.mxu0 %v3704
    %3834 = vmatprep.subr.bf16.mxu0 %v3707
    %3835 = vmatpush1.bf16.msra.mxu0 %v3706
    %3836 = vmatprep.subr.bf16.mxu0 %v3709
    %3837 = vmatpush1.bf16.msra.mxu0 %v3708
    %3838 = vmatprep.subr.bf16.mxu0 %v3711
    %3839 = vmatpush1.bf16.msra.mxu0 %v3710
    %3840 = vmatprep.subr.bf16.mxu0 %v3713
    %3841 = vmatpush1.bf16.msra.mxu0 %v3712
    %3842 = vmatprep.subr.bf16.mxu0 %v3715
    %3843 = vmatpush1.bf16.msra.mxu0 %v3714
    %3844 = vmatprep.subr.bf16.mxu0 %v3717
    %3845 = vmatpush1.bf16.msra.mxu0 %v3716
    %3846 = vmatprep.subr.bf16.mxu0 %v3719
    %3847 = vmatpush1.bf16.msra.mxu0 %v3718
    %3848 = vmatprep.subr.bf16.mxu0 %v3721
    %3849 = vmatpush1.bf16.msra.mxu0 %v3720
    %3850 = vmatprep.mubr.bf16.mxu0 %v3418
    %3851 = vmatmul.mubr.bf16.gmra.mrb[0].mxu0 %v3417
    %v3852 = vpop.f32.mrb[0].mxu0
    %v3853 = vadd.f32 %v3491, %v3852
    %v3854 = vpop.f32.mrb[0].mxu0
    %v3855 = vadd.f32 %v3495, %v3854
    %v3856 = vpop.f32.mrb[0].mxu0
    %v3857 = vadd.f32 %v3491, %v3856
    %v3858 = vpop.f32.mrb[0].mxu0
    %v3859 = vadd.f32 %v3495, %v3858
    %3860 = vdwg.mxu0
    %3861 = vmatprep.subr.bf16.mxu0 %v3723
    %3862 = vmatpush1.bf16.msra.mxu0 %v3722
    %3863 = vmatprep.subr.bf16.mxu0 %v3725
    %3864 = vmatpush1.bf16.msra.mxu0 %v3724
    %3865 = vmatprep.subr.bf16.mxu0 %v3727
    %3866 = vmatpush1.bf16.msra.mxu0 %v3726
    %3867 = vmatprep.subr.bf16.mxu0 %v3729
    %3868 = vmatpush1.bf16.msra.mxu0 %v3728
    %3869 = vmatprep.subr.bf16.mxu0 %v3731
    %3870 = vmatpush1.bf16.msra.mxu0 %v3730
    %3871 = vmatprep.subr.bf16.mxu0 %v3733
    %3872 = vmatpush1.bf16.msra.mxu0 %v3732
    %3873 = vmatprep.subr.bf16.mxu0 %v3735
    %3874 = vmatpush1.bf16.msra.mxu0 %v3734
    %3875 = vmatprep.subr.bf16.mxu0 %v3737
    %3876 = vmatpush1.bf16.msra.mxu0 %v3736
    %3877 = vmatprep.subr.bf16.mxu0 %v3739
    %3878 = vmatpush1.bf16.msra.mxu0 %v3738
    %3879 = vmatprep.subr.bf16.mxu0 %v3741
    %3880 = vmatpush1.bf16.msra.mxu0 %v3740
    %3881 = vmatprep.subr.bf16.mxu0 %v3743
    %3882 = vmatpush1.bf16.msra.mxu0 %v3742
    %3883 = vmatprep.subr.bf16.mxu0 %v3745
    %3884 = vmatpush1.bf16.msra.mxu0 %v3744
    %3885 = vmatprep.subr.bf16.mxu0 %v3747
    %3886 = vmatpush1.bf16.msra.mxu0 %v3746
    %3887 = vmatprep.subr.bf16.mxu0 %v3749
    %3888 = vmatpush1.bf16.msra.mxu0 %v3748
    %3889 = vmatprep.subr.bf16.mxu0 %v3751
    %3890 = vmatpush1.bf16.msra.mxu0 %v3750
    %3891 = vmatprep.subr.bf16.mxu0 %v3753
    %3892 = vmatpush1.bf16.msra.mxu0 %v3752
    %3893 = vmatprep.mubr.bf16.mxu0 %v3420
    %3894 = vmatmul.mubr.bf16.gmra.mrb[0].mxu0 %v3419
    %v3895 = vpop.f32.mrb[0].mxu0
    %v3896 = vadd.f32 %v3853, %v3895
    %v3897 = vpop.f32.mrb[0].mxu0
    %v3898 = vadd.f32 %v3855, %v3897
    %v3899 = vpop.f32.mrb[0].mxu0
    %v3900 = vadd.f32 %v3857, %v3899
    %v3901 = vpop.f32.mrb[0].mxu0
    %v3902 = vadd.f32 %v3859, %v3901
    %3903 = vdwg.mxu0
    %v3904 = vmax.f32 %v3896, 0.0
    %v3905 = vmax.f32 %v3898, 0.0
    %v3906 = vmax.f32 %v3900, 0.0
    %v3907 = vmax.f32 %v3902, 0.0
    %v3908 = vpack.c.bf16 %v3906, %v3904
    %v3909 = vpack.c.bf16 %v3907, %v3905
    %v3910 = vld [vmem:[#allocation8] sm:$0xf]
    %v3911 = vld [vmem:[#allocation8 + $0x4] sm:$0xf]
    %v3912 = vld [vmem:[#allocation8 + $0x8] sm:$0xf]
    %v3913 = vld [vmem:[#allocation8 + $0xc] sm:$0xf]
    %v3914 = vld [vmem:[#allocation8 + $0x10] sm:$0xf]
    %v3915 = vld [vmem:[#allocation8 + $0x14] sm:$0xf]
    %v3916 = vld [vmem:[#allocation8 + $0x18] sm:$0xf]
    %v3917 = vld [vmem:[#allocation8 + $0x1c] sm:$0xf]
    %v3918 = vld [vmem:[#allocation8 + $0x20] sm:$0xf]
    %v3919 = vld [vmem:[#allocation8 + $0x24] sm:$0xf]
    %v3920 = vld [vmem:[#allocation8 + $0x28] sm:$0xf]
    %v3921 = vld [vmem:[#allocation8 + $0x2c] sm:$0xf]
    %v3922 = vld [vmem:[#allocation8 + $0x30] sm:$0xf]
    %v3923 = vld [vmem:[#allocation8 + $0x34] sm:$0xf]
    %v3924 = vld [vmem:[#allocation8 + $0x38] sm:$0xf]
    %v3925 = vld [vmem:[#allocation8 + $0x3c] sm:$0xf]
    %v3926 = vld [vmem:[#allocation8 + $0x40] sm:$0xf]
    %v3927 = vld [vmem:[#allocation8 + $0x44] sm:$0xf]
    %v3928 = vld [vmem:[#allocation8 + $0x48] sm:$0xf]
    %v3929 = vld [vmem:[#allocation8 + $0x4c] sm:$0xf]
    %v3930 = vld [vmem:[#allocation8 + $0x50] sm:$0xf]
    %v3931 = vld [vmem:[#allocation8 + $0x54] sm:$0xf]
    %v3932 = vld [vmem:[#allocation8 + $0x58] sm:$0xf]
    %v3933 = vld [vmem:[#allocation8 + $0x5c] sm:$0xf]
    %v3934 = vld [vmem:[#allocation8 + $0x60] sm:$0xf]
    %v3935 = vld [vmem:[#allocation8 + $0x64] sm:$0xf]
    %v3936 = vld [vmem:[#allocation8 + $0x68] sm:$0xf]
    %v3937 = vld [vmem:[#allocation8 + $0x6c] sm:$0xf]
    %v3938 = vld [vmem:[#allocation8 + $0x70] sm:$0xf]
    %v3939 = vld [vmem:[#allocation8 + $0x74] sm:$0xf]
    %v3940 = vld [vmem:[#allocation8 + $0x78] sm:$0xf]
    %v3941 = vld [vmem:[#allocation8 + $0x7c] sm:$0xf]
    %v3942 = vld [vmem:[#allocation10 + $0x7] ss:$0 sm:$0xff]
    %v3975 = vunpack.c.l.b16 %v3910
    %v3976 = vunpack.c.l.b16 %v3911
    %v3977 = vunpack.c.l.b16 %v3912
    %v3978 = vunpack.c.l.b16 %v3913
    %v3979 = vunpack.c.l.b16 %v3914
    %v3980 = vunpack.c.l.b16 %v3915
    %v3981 = vunpack.c.l.b16 %v3916
    %v3982 = vunpack.c.l.b16 %v3917
    %v3983 = vunpack.c.l.b16 %v3918
    %v3984 = vunpack.c.l.b16 %v3919
    %v3985 = vunpack.c.l.b16 %v3920
    %v3986 = vunpack.c.l.b16 %v3921
    %v3987 = vunpack.c.l.b16 %v3922
    %v3988 = vunpack.c.l.b16 %v3923
    %v3989 = vunpack.c.l.b16 %v3924
    %v3990 = vunpack.c.l.b16 %v3925
    %v3991 = vunpack.c.l.b16 %v3926
    %v3992 = vunpack.c.l.b16 %v3927
    %v3993 = vunpack.c.l.b16 %v3928
    %v3994 = vunpack.c.l.b16 %v3929
    %v3995 = vunpack.c.l.b16 %v3930
    %v3996 = vunpack.c.l.b16 %v3931
    %v3997 = vunpack.c.l.b16 %v3932
    %v3998 = vunpack.c.l.b16 %v3933
    %v3999 = vunpack.c.l.b16 %v3934
    %v4000 = vunpack.c.l.b16 %v3935
    %v4001 = vunpack.c.l.b16 %v3936
    %v4002 = vunpack.c.l.b16 %v3937
    %v4003 = vunpack.c.l.b16 %v3938
    %v4004 = vunpack.c.l.b16 %v3939
    %v4005 = vunpack.c.l.b16 %v3940
    %v4006 = vunpack.c.l.b16 %v3941
    %v4007 = vpack.c.b16 %v3976, %v3975
    %v4008 = vpack.c.b16 %v3978, %v3977
    %v4009 = vpack.c.b16 %v3980, %v3979
    %v4010 = vpack.c.b16 %v3982, %v3981
    %v4011 = vpack.c.b16 %v3984, %v3983
    %v4012 = vpack.c.b16 %v3986, %v3985
    %v4013 = vpack.c.b16 %v3988, %v3987
    %v4014 = vpack.c.b16 %v3990, %v3989
    %v4015 = vpack.c.b16 %v3992, %v3991
    %v4016 = vpack.c.b16 %v3994, %v3993
    %v4017 = vpack.c.b16 %v3996, %v3995
    %v4018 = vpack.c.b16 %v3998, %v3997
    %v4019 = vpack.c.b16 %v4000, %v3999
    %v4020 = vpack.c.b16 %v4002, %v4001
    %v4021 = vpack.c.b16 %v4004, %v4003
    %v4022 = vpack.c.b16 %v4006, %v4005
    %4039 = vmatprep.subr.bf16.mxu0 0
    %4040 = vmatpush1.bf16.msra.mxu0 %v4007
    %4041 = vmatprep.subr.bf16.mxu0 0
    %4042 = vmatpush1.bf16.msra.mxu0 %v4008
    %4043 = vmatprep.subr.bf16.mxu0 0
    %4044 = vmatpush1.bf16.msra.mxu0 %v4009
    %4045 = vmatprep.subr.bf16.mxu0 0
    %4046 = vmatpush1.bf16.msra.mxu0 %v4010
    %4047 = vmatprep.subr.bf16.mxu0 0
    %4048 = vmatpush1.bf16.msra.mxu0 %v4011
    %4049 = vmatprep.subr.bf16.mxu0 0
    %4050 = vmatpush1.bf16.msra.mxu0 %v4012
    %4051 = vmatprep.subr.bf16.mxu0 0
    %4052 = vmatpush1.bf16.msra.mxu0 %v4013
    %4053 = vmatprep.subr.bf16.mxu0 0
    %4054 = vmatpush1.bf16.msra.mxu0 %v4014
    %4055 = vmatprep.subr.bf16.mxu0 0
    %4056 = vmatpush1.bf16.msra.mxu0 %v4015
    %4057 = vmatprep.subr.bf16.mxu0 0
    %4058 = vmatpush1.bf16.msra.mxu0 %v4016
    %4059 = vmatprep.subr.bf16.mxu0 0
    %4060 = vmatpush1.bf16.msra.mxu0 %v4017
    %4061 = vmatprep.subr.bf16.mxu0 0
    %4062 = vmatpush1.bf16.msra.mxu0 %v4018
    %4063 = vmatprep.subr.bf16.mxu0 0
    %4064 = vmatpush1.bf16.msra.mxu0 %v4019
    %4065 = vmatprep.subr.bf16.mxu0 0
    %4066 = vmatpush1.bf16.msra.mxu0 %v4020
    %4067 = vmatprep.subr.bf16.mxu0 0
    %4068 = vmatpush1.bf16.msra.mxu0 %v4021
    %4069 = vmatprep.subr.bf16.mxu0 0
    %4070 = vmatpush1.bf16.msra.mxu0 %v4022
    %4071 = vmatprep.mubr.bf16.mxu0 %v3909
    %4072 = vmatmul.mubr.bf16.gmra.mrb[0].mxu0 %v3908
    %v4073 = vpop.f32.mrb[0].mxu0
    %v4074 = vadd.f32 %v3942, %v4073
    %v4075 = vpop.f32.mrb[0].mxu0
    %v4076 = vpop.f32.mrb[0].mxu0
    %v4077 = vadd.f32 %v3942, %v4076
    %v4078 = vpop.f32.mrb[0].mxu0
    %4079 = vdwg.mxu0
    %4080 = vst [vmem:[#allocation11] sm:$0xff] %v4074
    %4081 = vst [vmem:[#allocation11 + $0x8] sm:$0xff] %v4077
    // Predicated region
    $region42: #{tpu_custom_call.1} parent=1 // pred_check
      _
    $region43: #{tpu_custom_call.1} parent=1 // pred_check_branch
      %4083 = sbr.rel (0) target = $region45
    $region44: #{tpu_custom_call.1} parent=1 // pred_region
      %s4085 = ssub.s32 256, 256
      %4086 = vsyncadd [#allocation4], %s4085
      %s4087 = sshll.u32 [#allocation11], 4
      %s4088 = int_to_ptr.vmem [resolvable:$true] %s4087
      %4093 = dma.vmem_to_hbm [thread:$0]  %s4088, 256, %s5, [#allocation4], 128, 128, 8
    $region45: #{tpu_custom_call.1} parent=1 // pred_fallthru
      _
    // Predicated region
    $region46: #{tpu_custom_call.1} parent=1 // pred_check
      _
    $region47: #{tpu_custom_call.1} parent=1 // pred_check_branch
      %4095 = sbr.rel (0) target = $region49
    $region48: #{tpu_custom_call.1} parent=1 // pred_region
      %4096 = dma.done [#allocation4], 256
    $region49: #{tpu_custom_call.1} parent=1 // pred_fallthru
      _
    %4097 = vsyncpa [#allocation3], 1
    %4098 = vsyncpa [#allocation6], 1
    %4099 = vsyncpa [#allocation9], 1
    %4100 = vsyncpa [#allocation4], 1

</llo_original>
